<compile_context>
chip_gen: v7x
topology: tpu7x:2x2x1
jax: 0.10.0
libtpu: 0.0.40
codegen_flags: <defaults>
</compile_context>

<pallas_src>
import jax
import jax.numpy as jnp
import numpy as np
from jax import lax
from jax.experimental import pallas as pl
from jax.experimental.pallas import tpu as pltpu

DIM = 64
NEG_SLOPE = 0.01          # nn.LeakyReLU() default negative_slope
K1P = 128                 # conv1 im2col K (=27) zero-padded to a full lane width


# ------------------------------ kernel helpers ----------------------------- #
def _lrelu(v):
    return jnp.where(v >= 0, v, NEG_SLOPE * v)


def _even_rows(z):
    """Pick rows 0, 2, 4, ... of z with a tiny 0/1 selection matmul (MXU)."""
    m = z.shape[0] // 2
    r = lax.broadcasted_iota(jnp.int32, (m, z.shape[0]), 0)
    c = lax.broadcasted_iota(jnp.int32, (m, z.shape[0]), 1)
    sel = (c == 2 * r).astype(jnp.float32)
    return jnp.dot(sel, z, preferred_element_type=jnp.float32)


def _conv_from_vmem(a_ref, w_ref, h_out, c_in, c_out):
    """3x3 stride-2 conv reading the zero-padded activation (2*h_out+2, ., c_in)
    from VMEM scratch.  Returns the (h_out*h_out, c_out) f32 pre-activation,
    rows ordered (h, w) row-major."""
    w_full = 2 * h_out                                   # unpadded input width
    z = jnp.zeros((h_out * w_full, c_out), jnp.float32)
    for kh in range(3):
        for kw in range(3):
            # unit-stride window read (static offsets), then stride-2 row pick
            # via a leading-dim reshape (pure vreg regrouping).
            blk = a_ref[kh:kh + w_full, kw:kw + w_full, :]       # (2Ho, W, Cin)
            blk = blk.reshape(h_out, 2, w_full, c_in)[:, 0]      # rows 2i+kh
            s = blk.reshape(h_out * w_full, c_in).astype(jnp.bfloat16)
            z = z + jnp.dot(s, w_ref[kh, kw],
                            preferred_element_type=jnp.float32)
    # Columns: even rows of z are exactly positions w = 2j (W is even).
    return _even_rows(z)                                  # (Ho*Wo, Cout)


# ------------------------------ fused kernel ------------------------------- #
def _disc_kernel(p1_ref, w1_ref, b1_ref, w2_ref, b2_ref, w3_ref, b3_ref,
                 wl_ref, bl_ref, out_ref, a2_ref, a3_ref):
    # conv1: one MXU matmul on wrapper-built im2col patches (K padded to 128).
    y1 = jnp.dot(p1_ref[0], w1_ref[...], preferred_element_type=jnp.float32)
    y1 = _lrelu(y1 + b1_ref[...])                         # (256, 64)

    # conv2 input: zero-padded (18, 18, 64) activation, VMEM resident.
    a2_ref[...] = jnp.zeros(a2_ref.shape, jnp.float32)
    a2_ref[1:17, 1:17, :] = y1.reshape(16, 16, DIM)
    y2 = _lrelu(_conv_from_vmem(a2_ref, w2_ref, 8, DIM, 2 * DIM)
                + b2_ref[...])                            # (64, 128)

    # conv3 input: zero-padded (10, 10, 128) activation, VMEM resident.
    a3_ref[...] = jnp.zeros(a3_ref.shape, jnp.float32)
    a3_ref[1:9, 1:9, :] = y2.reshape(8, 8, 2 * DIM)
    y3 = _lrelu(_conv_from_vmem(a3_ref, w3_ref, 4, 2 * DIM, 4 * DIM)
                + b3_ref[...])                            # (16, 256) NHWC-flat

    # Linear (output width 1): VPU multiply + reduction (no 1-wide MXU matmul,
    # no masked 1-lane activation store); NCHW permutation already folded
    # into wl_ref by the wrapper.
    prod = y3 * wl_ref[...]                               # (16, 256)
    s = jnp.sum(prod, axis=1, keepdims=True)              # (16, 1)
    s = jnp.sum(s, axis=0, keepdims=True)                 # (1, 1)
    out_ref[...] = jnp.broadcast_to((s + bl_ref[...]).reshape(1, 1, 1),
                                    (1, 1, 128))


# ------------------------------ JAX wrapper -------------------------------- #
def _conv1_patches(x_nhwc):
    """im2col for conv1 only (raw input): (N,32,32,3) -> (N,256,128) bf16."""
    n = x_nhwc.shape[0]
    xp = jnp.pad(x_nhwc, ((0, 0), (1, 1), (1, 1), (0, 0)))
    taps = [xp[:, kh:kh + 32:2, kw:kw + 32:2, :]
            for kh in range(3) for kw in range(3)]        # 9 x (N,16,16,3)
    patches = jnp.stack(taps, axis=3).reshape(n, 16 * 16, 27)
    patches = jnp.pad(patches, ((0, 0), (0, 0), (0, K1P - 27)))
    return patches.astype(jnp.bfloat16)


def discriminator_forward(x_nchw, params):
    assert x_nchw.shape[1:] == (3, 32, 32), "kernel specialized to 3x32x32"
    n = x_nchw.shape[0]
    x = jnp.transpose(x_nchw, (0, 2, 3, 1)).astype(jnp.float32)   # NHWC

    p1 = _conv1_patches(x)

    # (Cout,Cin,KH,KW) -> (KH,KW,Cin,Cout); conv1 additionally -> (27,64) -> pad.
    w1p = jnp.transpose(params["w1"], (2, 3, 1, 0)).reshape(27, DIM)
    w1p = jnp.pad(w1p, ((0, K1P - 27), (0, 0))).astype(jnp.bfloat16)
    w2k = jnp.transpose(params["w2"], (2, 3, 1, 0)).astype(jnp.bfloat16)
    w3k = jnp.transpose(params["w3"], (2, 3, 1, 0)).astype(jnp.bfloat16)
    b1 = params["b1"].reshape(1, DIM).astype(jnp.float32)
    b2 = params["b2"].reshape(1, 2 * DIM).astype(jnp.float32)
    b3 = params["b3"].reshape(1, 4 * DIM).astype(jnp.float32)
    # Fold PyTorch's NCHW flatten into the linear weight:
    #   wl_mat[h*4+w, c] = wl[0, c*16 + h*4 + w]
    wl_mat = jnp.transpose(params["wl"].reshape(4 * DIM, 4, 4), (1, 2, 0))
    wl_mat = wl_mat.reshape(16, 4 * DIM).astype(jnp.float32)
    bl = params["bl"].reshape(1, 1).astype(jnp.float32)

    out = pl.pallas_call(
        _disc_kernel,
        out_shape=jax.ShapeDtypeStruct((n, 1, 128), jnp.float32),
        grid=(n,),
        in_specs=[
            pl.BlockSpec((1, 16 * 16, K1P), lambda i: (i, 0, 0)),        # p1
            pl.BlockSpec((K1P, DIM), lambda i: (0, 0)),                  # w1
            pl.BlockSpec((1, DIM), lambda i: (0, 0)),                    # b1
            pl.BlockSpec((3, 3, DIM, 2 * DIM), lambda i: (0, 0, 0, 0)),  # w2
            pl.BlockSpec((1, 2 * DIM), lambda i: (0, 0)),                # b2
            pl.BlockSpec((3, 3, 2 * DIM, 4 * DIM), lambda i: (0, 0, 0, 0)),  # w3
            pl.BlockSpec((1, 4 * DIM), lambda i: (0, 0)),                # b3
            pl.BlockSpec((16, 4 * DIM), lambda i: (0, 0)),               # wl
            pl.BlockSpec((1, 1), lambda i: (0, 0)),                      # bl
        ],
        out_specs=pl.BlockSpec((1, 1, 128), lambda i: (i, 0, 0)),
        scratch_shapes=[
            pltpu.VMEM((18, 18, DIM), jnp.float32),       # padded conv2 input
            pltpu.VMEM((10, 10, 2 * DIM), jnp.float32),   # padded conv3 input
        ],
        compiler_params=pltpu.CompilerParams(
            dimension_semantics=("parallel",)),
    )(p1, w1p, b1, w2k, b2, w3k, b3, wl_mat, bl)
    return out[:, 0, :1]                                  # (N, 1)


# ----------------------- deterministic parameter init ---------------------- #
def init_params(key):
    ks = jax.random.split(key, 8)

    def conv_w(k, cout, cin):
        bound = 1.0 / np.sqrt(cin * 9)
        return jax.random.uniform(k, (cout, cin, 3, 3), jnp.float32, -bound, bound)

    def vec(k, n, fan_in):
        bound = 1.0 / np.sqrt(fan_in)
        return jax.random.uniform(k, (n,), jnp.float32, -bound, bound)

    return {
        "w1": conv_w(ks[0], DIM, 3),            "b1": vec(ks[1], DIM, 3 * 9),
        "w2": conv_w(ks[2], 2 * DIM, DIM),      "b2": vec(ks[3], 2 * DIM, DIM * 9),
        "w3": conv_w(ks[4], 4 * DIM, 2 * DIM),  "b3": vec(ks[5], 4 * DIM, 2 * DIM * 9),
        "wl": jax.random.uniform(ks[6], (1, 4 * 4 * 4 * DIM), jnp.float32,
                                 -1.0 / 64.0, 1.0 / 64.0),
        "bl": vec(ks[7], 1, 4 * 4 * 4 * DIM),
    }


# --------------------------------- reference ------------------------------- #
def reference_forward(x, params):
    def conv(x, w, b):
        y = lax.conv_general_dilated(
            x, w, window_strides=(2, 2), padding=((1, 1), (1, 1)),
            dimension_numbers=("NCHW", "OIHW", "NCHW"))
        y = y + b[None, :, None, None]
        return jnp.where(y >= 0, y, NEG_SLOPE * y)

    y = conv(x, params["w1"], params["b1"])
    y = conv(y, params["w2"], params["b2"])
    y = conv(y, params["w3"], params["b3"])
    y = y.reshape(-1, 4 * 4 * 4 * DIM)
    return y @ params["wl"].T + params["bl"]


if __name__ == "__main__":
    key = jax.random.PRNGKey(0)
    k_x, k_p = jax.random.split(key)
    # Input implied by the module: 3x32x32 images (flatten == 4*4*4*DIM). Batch 2.
    x = jax.random.normal(k_x, (2, 3, 32, 32), jnp.float32)
    params = init_params(k_p)

    fwd = jax.jit(discriminator_forward)
    out = jax.block_until_ready(fwd(x, params))
    assert out.shape == (2, 1)

    ref = jax.block_until_ready(reference_forward(x, params))
    # bf16 MXU operands (with f32 accumulation) => looser tolerance than f32.
    np.testing.assert_allclose(np.asarray(out), np.asarray(ref),
                               rtol=5e-2, atol=1e-2)

    print("KERNEL_OK")
</pallas_src>

<mosaic_0001>
module attributes {stable_mosaic.version = 11 : i64} {
  func.func @_disc_kernel(%arg0: i32, %arg1: memref<1x256x128xbf16, #tpu.memory_space<vmem>>, %arg2: memref<128x64xbf16, #tpu.memory_space<vmem>>, %arg3: memref<1x64xf32, #tpu.memory_space<vmem>>, %arg4: memref<3x3x64x128xbf16, #tpu.memory_space<vmem>>, %arg5: memref<1x128xf32, #tpu.memory_space<vmem>>, %arg6: memref<3x3x128x256xbf16, #tpu.memory_space<vmem>>, %arg7: memref<1x256xf32, #tpu.memory_space<vmem>>, %arg8: memref<16x256xf32, #tpu.memory_space<vmem>>, %arg9: memref<1x1xf32, #tpu.memory_space<vmem>>, %arg10: memref<1x1x128xf32, #tpu.memory_space<vmem>>, %arg11: memref<18x18x64xf32, #tpu.memory_space<vmem>>, %arg12: memref<10x10x128xf32, #tpu.memory_space<vmem>>) attributes {dimension_semantics = [#tpu.dimension_semantics<parallel>], iteration_bounds = array<i64: 2>, scalar_prefetch = 0 : i64, scratch_operands = 2 : i64, tpu.core_type = #tpu.core_type<tc>, window_params = [{transform_indices = @transform_0, window_bounds = array<i64: 1, 256, 128>}, {pipeline_mode = #tpu.pipeline_mode<synchronous>, transform_indices = @transform_1, window_bounds = array<i64: 128, 64>}, {pipeline_mode = #tpu.pipeline_mode<synchronous>, transform_indices = @transform_2, window_bounds = array<i64: 1, 64>}, {pipeline_mode = #tpu.pipeline_mode<synchronous>, transform_indices = @transform_3, window_bounds = array<i64: 3, 3, 64, 128>}, {pipeline_mode = #tpu.pipeline_mode<synchronous>, transform_indices = @transform_4, window_bounds = array<i64: 1, 128>}, {pipeline_mode = #tpu.pipeline_mode<synchronous>, transform_indices = @transform_5, window_bounds = array<i64: 3, 3, 128, 256>}, {pipeline_mode = #tpu.pipeline_mode<synchronous>, transform_indices = @transform_6, window_bounds = array<i64: 1, 256>}, {pipeline_mode = #tpu.pipeline_mode<synchronous>, transform_indices = @transform_7, window_bounds = array<i64: 16, 256>}, {pipeline_mode = #tpu.pipeline_mode<synchronous>, transform_indices = @transform_8, window_bounds = array<i64: 1, 1>}, {transform_indices = @transform_9, window_bounds = array<i64: 1, 1, 128>}]} {
    %c0 = arith.constant 0 : index
    %c0_0 = arith.constant 0 : index
    %c0_1 = arith.constant 0 : index
    %0 = vector.load %arg1[%c0, %c0_0, %c0_1] : memref<1x256x128xbf16, #tpu.memory_space<vmem>>, vector<1x256x128xbf16>
    %1 = vector.shape_cast %0 : vector<1x256x128xbf16> to vector<256x128xbf16>
    %c0_2 = arith.constant 0 : index
    %c0_3 = arith.constant 0 : index
    %2 = vector.load %arg2[%c0_2, %c0_3] : memref<128x64xbf16, #tpu.memory_space<vmem>>, vector<128x64xbf16>
    %cst = arith.constant dense<0.000000e+00> : vector<256x64xf32>
    %3 = tpu.matmul %1, %2, %cst {dimension_numbers = #tpu.dot_dimension_numbers<[1], [0], [0], [1], [0, 0, 1, 1], [], []>} : vector<256x128xbf16>, vector<128x64xbf16>, vector<256x64xf32> -> vector<256x64xf32>
    %c0_4 = arith.constant 0 : index
    %c0_5 = arith.constant 0 : index
    %4 = vector.load %arg3[%c0_4, %c0_5] : memref<1x64xf32, #tpu.memory_space<vmem>>, vector<1x64xf32>
    %5 = vector.broadcast %4 : vector<1x64xf32> to vector<256x64xf32>
    %6 = arith.addf %3, %5 : vector<256x64xf32>
    %cst_6 = arith.constant 0.000000e+00 : f32
    %7 = vector.broadcast %cst_6 : f32 to vector<256x64xf32>
    %8 = arith.cmpf oge, %6, %7 : vector<256x64xf32>
    %cst_7 = arith.constant 0.00999999977 : f32
    %9 = vector.broadcast %cst_7 : f32 to vector<256x64xf32>
    %10 = arith.mulf %9, %6 : vector<256x64xf32>
    %11 = arith.select %8, %6, %10 : vector<256x64xi1>, vector<256x64xf32>
    %cst_8 = arith.constant 0.000000e+00 : f32
    %12 = vector.broadcast %cst_8 : f32 to vector<18x18x64xf32>
    %c0_9 = arith.constant 0 : index
    %c0_10 = arith.constant 0 : index
    %c0_11 = arith.constant 0 : index
    %13 = vector.load %arg11[%c0_9, %c0_10, %c0_11] : memref<18x18x64xf32, #tpu.memory_space<vmem>>, vector<18x18x64xf32>
    tpu.vector_store %arg11[%c0_9, %c0_10, %c0_11], %12 {strides = array<i32>} : memref<18x18x64xf32, #tpu.memory_space<vmem>>, vector<18x18x64xf32>,
    %14 = vector.shape_cast %11 : vector<256x64xf32> to vector<16x16x64xf32>
    %c1 = arith.constant 1 : index
    %c1_12 = arith.constant 1 : index
    %c0_13 = arith.constant 0 : index
    %15 = vector.load %arg11[%c1, %c1_12, %c0_13] : memref<18x18x64xf32, #tpu.memory_space<vmem>>, vector<16x16x64xf32>
    tpu.vector_store %arg11[%c1, %c1_12, %c0_13], %14 {strides = array<i32>} : memref<18x18x64xf32, #tpu.memory_space<vmem>>, vector<16x16x64xf32>,
    %cst_14 = arith.constant 0.000000e+00 : f32
    %16 = vector.broadcast %cst_14 : f32 to vector<128x128xf32>
    %c0_15 = arith.constant 0 : index
    %c0_16 = arith.constant 0 : index
    %c0_17 = arith.constant 0 : index
    %17 = vector.load %arg11[%c0_15, %c0_16, %c0_17] : memref<18x18x64xf32, #tpu.memory_space<vmem>>, vector<16x16x64xf32>
    %18 = vector.shape_cast %17 : vector<16x16x64xf32> to vector<8x2x16x64xf32>
    %19 = vector.extract_strided_slice %18 {offsets = [0, 0, 0, 0], sizes = [8, 1, 16, 64], strides = [1, 1, 1, 1]} : vector<8x2x16x64xf32> to vector<8x1x16x64xf32>
    %20 = vector.shape_cast %19 : vector<8x1x16x64xf32> to vector<8x16x64xf32>
    %21 = vector.shape_cast %20 : vector<8x16x64xf32> to vector<128x64xf32>
    %22 = arith.truncf %21 : vector<128x64xf32> to vector<128x64xbf16>
    %c0_18 = arith.constant 0 : index
    %c0_19 = arith.constant 0 : index
    %c0_20 = arith.constant 0 : index
    %c0_21 = arith.constant 0 : index
    %23 = vector.load %arg4[%c0_18, %c0_19, %c0_20, %c0_21] : memref<3x3x64x128xbf16, #tpu.memory_space<vmem>>, vector<1x1x64x128xbf16>
    %24 = vector.shape_cast %23 : vector<1x1x64x128xbf16> to vector<64x128xbf16>
    %cst_22 = arith.constant dense<0.000000e+00> : vector<128x128xf32>
    %25 = tpu.matmul %22, %24, %cst_22 {dimension_numbers = #tpu.dot_dimension_numbers<[1], [0], [0], [1], [0, 0, 1, 1], [], []>} : vector<128x64xbf16>, vector<64x128xbf16>, vector<128x128xf32> -> vector<128x128xf32>
    %26 = arith.addf %16, %25 : vector<128x128xf32>
    %c0_23 = arith.constant 0 : index
    %c1_24 = arith.constant 1 : index
    %c0_25 = arith.constant 0 : index
    %27 = vector.load %arg11[%c0_23, %c1_24, %c0_25] : memref<18x18x64xf32, #tpu.memory_space<vmem>>, vector<16x16x64xf32>
    %28 = vector.shape_cast %27 : vector<16x16x64xf32> to vector<8x2x16x64xf32>
    %29 = vector.extract_strided_slice %28 {offsets = [0, 0, 0, 0], sizes = [8, 1, 16, 64], strides = [1, 1, 1, 1]} : vector<8x2x16x64xf32> to vector<8x1x16x64xf32>
    %30 = vector.shape_cast %29 : vector<8x1x16x64xf32> to vector<8x16x64xf32>
    %31 = vector.shape_cast %30 : vector<8x16x64xf32> to vector<128x64xf32>
    %32 = arith.truncf %31 : vector<128x64xf32> to vector<128x64xbf16>
    %c0_26 = arith.constant 0 : index
    %c1_27 = arith.constant 1 : index
    %c0_28 = arith.constant 0 : index
    %c0_29 = arith.constant 0 : index
    %33 = vector.load %arg4[%c0_26, %c1_27, %c0_28, %c0_29] : memref<3x3x64x128xbf16, #tpu.memory_space<vmem>>, vector<1x1x64x128xbf16>
    %34 = vector.shape_cast %33 : vector<1x1x64x128xbf16> to vector<64x128xbf16>
    %cst_30 = arith.constant dense<0.000000e+00> : vector<128x128xf32>
    %35 = tpu.matmul %32, %34, %cst_30 {dimension_numbers = #tpu.dot_dimension_numbers<[1], [0], [0], [1], [0, 0, 1, 1], [], []>} : vector<128x64xbf16>, vector<64x128xbf16>, vector<128x128xf32> -> vector<128x128xf32>
    %36 = arith.addf %26, %35 : vector<128x128xf32>
    %c0_31 = arith.constant 0 : index
    %c2 = arith.constant 2 : index
    %c0_32 = arith.constant 0 : index
    %37 = vector.load %arg11[%c0_31, %c2, %c0_32] : memref<18x18x64xf32, #tpu.memory_space<vmem>>, vector<16x16x64xf32>
    %38 = vector.shape_cast %37 : vector<16x16x64xf32> to vector<8x2x16x64xf32>
    %39 = vector.extract_strided_slice %38 {offsets = [0, 0, 0, 0], sizes = [8, 1, 16, 64], strides = [1, 1, 1, 1]} : vector<8x2x16x64xf32> to vector<8x1x16x64xf32>
    %40 = vector.shape_cast %39 : vector<8x1x16x64xf32> to vector<8x16x64xf32>
    %41 = vector.shape_cast %40 : vector<8x16x64xf32> to vector<128x64xf32>
    %42 = arith.truncf %41 : vector<128x64xf32> to vector<128x64xbf16>
    %c0_33 = arith.constant 0 : index
    %c2_34 = arith.constant 2 : index
    %c0_35 = arith.constant 0 : index
    %c0_36 = arith.constant 0 : index
    %43 = vector.load %arg4[%c0_33, %c2_34, %c0_35, %c0_36] : memref<3x3x64x128xbf16, #tpu.memory_space<vmem>>, vector<1x1x64x128xbf16>
    %44 = vector.shape_cast %43 : vector<1x1x64x128xbf16> to vector<64x128xbf16>
    %cst_37 = arith.constant dense<0.000000e+00> : vector<128x128xf32>
    %45 = tpu.matmul %42, %44, %cst_37 {dimension_numbers = #tpu.dot_dimension_numbers<[1], [0], [0], [1], [0, 0, 1, 1], [], []>} : vector<128x64xbf16>, vector<64x128xbf16>, vector<128x128xf32> -> vector<128x128xf32>
    %46 = arith.addf %36, %45 : vector<128x128xf32>
    %c1_38 = arith.constant 1 : index
    %c0_39 = arith.constant 0 : index
    %c0_40 = arith.constant 0 : index
    %47 = vector.load %arg11[%c1_38, %c0_39, %c0_40] : memref<18x18x64xf32, #tpu.memory_space<vmem>>, vector<16x16x64xf32>
    %48 = vector.shape_cast %47 : vector<16x16x64xf32> to vector<8x2x16x64xf32>
    %49 = vector.extract_strided_slice %48 {offsets = [0, 0, 0, 0], sizes = [8, 1, 16, 64], strides = [1, 1, 1, 1]} : vector<8x2x16x64xf32> to vector<8x1x16x64xf32>
    %50 = vector.shape_cast %49 : vector<8x1x16x64xf32> to vector<8x16x64xf32>
    %51 = vector.shape_cast %50 : vector<8x16x64xf32> to vector<128x64xf32>
    %52 = arith.truncf %51 : vector<128x64xf32> to vector<128x64xbf16>
    %c1_41 = arith.constant 1 : index
    %c0_42 = arith.constant 0 : index
    %c0_43 = arith.constant 0 : index
    %c0_44 = arith.constant 0 : index
    %53 = vector.load %arg4[%c1_41, %c0_42, %c0_43, %c0_44] : memref<3x3x64x128xbf16, #tpu.memory_space<vmem>>, vector<1x1x64x128xbf16>
    %54 = vector.shape_cast %53 : vector<1x1x64x128xbf16> to vector<64x128xbf16>
    %cst_45 = arith.constant dense<0.000000e+00> : vector<128x128xf32>
    %55 = tpu.matmul %52, %54, %cst_45 {dimension_numbers = #tpu.dot_dimension_numbers<[1], [0], [0], [1], [0, 0, 1, 1], [], []>} : vector<128x64xbf16>, vector<64x128xbf16>, vector<128x128xf32> -> vector<128x128xf32>
    %56 = arith.addf %46, %55 : vector<128x128xf32>
    %c1_46 = arith.constant 1 : index
    %c1_47 = arith.constant 1 : index
    %c0_48 = arith.constant 0 : index
    %57 = vector.load %arg11[%c1_46, %c1_47, %c0_48] : memref<18x18x64xf32, #tpu.memory_space<vmem>>, vector<16x16x64xf32>
    %58 = vector.shape_cast %57 : vector<16x16x64xf32> to vector<8x2x16x64xf32>
    %59 = vector.extract_strided_slice %58 {offsets = [0, 0, 0, 0], sizes = [8, 1, 16, 64], strides = [1, 1, 1, 1]} : vector<8x2x16x64xf32> to vector<8x1x16x64xf32>
    %60 = vector.shape_cast %59 : vector<8x1x16x64xf32> to vector<8x16x64xf32>
    %61 = vector.shape_cast %60 : vector<8x16x64xf32> to vector<128x64xf32>
    %62 = arith.truncf %61 : vector<128x64xf32> to vector<128x64xbf16>
    %c1_49 = arith.constant 1 : index
    %c1_50 = arith.constant 1 : index
    %c0_51 = arith.constant 0 : index
    %c0_52 = arith.constant 0 : index
    %63 = vector.load %arg4[%c1_49, %c1_50, %c0_51, %c0_52] : memref<3x3x64x128xbf16, #tpu.memory_space<vmem>>, vector<1x1x64x128xbf16>
    %64 = vector.shape_cast %63 : vector<1x1x64x128xbf16> to vector<64x128xbf16>
    %cst_53 = arith.constant dense<0.000000e+00> : vector<128x128xf32>
    %65 = tpu.matmul %62, %64, %cst_53 {dimension_numbers = #tpu.dot_dimension_numbers<[1], [0], [0], [1], [0, 0, 1, 1], [], []>} : vector<128x64xbf16>, vector<64x128xbf16>, vector<128x128xf32> -> vector<128x128xf32>
    %66 = arith.addf %56, %65 : vector<128x128xf32>
    %c1_54 = arith.constant 1 : index
    %c2_55 = arith.constant 2 : index
    %c0_56 = arith.constant 0 : index
    %67 = vector.load %arg11[%c1_54, %c2_55, %c0_56] : memref<18x18x64xf32, #tpu.memory_space<vmem>>, vector<16x16x64xf32>
    %68 = vector.shape_cast %67 : vector<16x16x64xf32> to vector<8x2x16x64xf32>
    %69 = vector.extract_strided_slice %68 {offsets = [0, 0, 0, 0], sizes = [8, 1, 16, 64], strides = [1, 1, 1, 1]} : vector<8x2x16x64xf32> to vector<8x1x16x64xf32>
    %70 = vector.shape_cast %69 : vector<8x1x16x64xf32> to vector<8x16x64xf32>
    %71 = vector.shape_cast %70 : vector<8x16x64xf32> to vector<128x64xf32>
    %72 = arith.truncf %71 : vector<128x64xf32> to vector<128x64xbf16>
    %c1_57 = arith.constant 1 : index
    %c2_58 = arith.constant 2 : index
    %c0_59 = arith.constant 0 : index
    %c0_60 = arith.constant 0 : index
    %73 = vector.load %arg4[%c1_57, %c2_58, %c0_59, %c0_60] : memref<3x3x64x128xbf16, #tpu.memory_space<vmem>>, vector<1x1x64x128xbf16>
    %74 = vector.shape_cast %73 : vector<1x1x64x128xbf16> to vector<64x128xbf16>
    %cst_61 = arith.constant dense<0.000000e+00> : vector<128x128xf32>
    %75 = tpu.matmul %72, %74, %cst_61 {dimension_numbers = #tpu.dot_dimension_numbers<[1], [0], [0], [1], [0, 0, 1, 1], [], []>} : vector<128x64xbf16>, vector<64x128xbf16>, vector<128x128xf32> -> vector<128x128xf32>
    %76 = arith.addf %66, %75 : vector<128x128xf32>
    %c2_62 = arith.constant 2 : index
    %c0_63 = arith.constant 0 : index
    %c0_64 = arith.constant 0 : index
    %77 = vector.load %arg11[%c2_62, %c0_63, %c0_64] : memref<18x18x64xf32, #tpu.memory_space<vmem>>, vector<16x16x64xf32>
    %78 = vector.shape_cast %77 : vector<16x16x64xf32> to vector<8x2x16x64xf32>
    %79 = vector.extract_strided_slice %78 {offsets = [0, 0, 0, 0], sizes = [8, 1, 16, 64], strides = [1, 1, 1, 1]} : vector<8x2x16x64xf32> to vector<8x1x16x64xf32>
    %80 = vector.shape_cast %79 : vector<8x1x16x64xf32> to vector<8x16x64xf32>
    %81 = vector.shape_cast %80 : vector<8x16x64xf32> to vector<128x64xf32>
    %82 = arith.truncf %81 : vector<128x64xf32> to vector<128x64xbf16>
    %c2_65 = arith.constant 2 : index
    %c0_66 = arith.constant 0 : index
    %c0_67 = arith.constant 0 : index
    %c0_68 = arith.constant 0 : index
    %83 = vector.load %arg4[%c2_65, %c0_66, %c0_67, %c0_68] : memref<3x3x64x128xbf16, #tpu.memory_space<vmem>>, vector<1x1x64x128xbf16>
    %84 = vector.shape_cast %83 : vector<1x1x64x128xbf16> to vector<64x128xbf16>
    %cst_69 = arith.constant dense<0.000000e+00> : vector<128x128xf32>
    %85 = tpu.matmul %82, %84, %cst_69 {dimension_numbers = #tpu.dot_dimension_numbers<[1], [0], [0], [1], [0, 0, 1, 1], [], []>} : vector<128x64xbf16>, vector<64x128xbf16>, vector<128x128xf32> -> vector<128x128xf32>
    %86 = arith.addf %76, %85 : vector<128x128xf32>
    %c2_70 = arith.constant 2 : index
    %c1_71 = arith.constant 1 : index
    %c0_72 = arith.constant 0 : index
    %87 = vector.load %arg11[%c2_70, %c1_71, %c0_72] : memref<18x18x64xf32, #tpu.memory_space<vmem>>, vector<16x16x64xf32>
    %88 = vector.shape_cast %87 : vector<16x16x64xf32> to vector<8x2x16x64xf32>
    %89 = vector.extract_strided_slice %88 {offsets = [0, 0, 0, 0], sizes = [8, 1, 16, 64], strides = [1, 1, 1, 1]} : vector<8x2x16x64xf32> to vector<8x1x16x64xf32>
    %90 = vector.shape_cast %89 : vector<8x1x16x64xf32> to vector<8x16x64xf32>
    %91 = vector.shape_cast %90 : vector<8x16x64xf32> to vector<128x64xf32>
    %92 = arith.truncf %91 : vector<128x64xf32> to vector<128x64xbf16>
    %c2_73 = arith.constant 2 : index
    %c1_74 = arith.constant 1 : index
    %c0_75 = arith.constant 0 : index
    %c0_76 = arith.constant 0 : index
    %93 = vector.load %arg4[%c2_73, %c1_74, %c0_75, %c0_76] : memref<3x3x64x128xbf16, #tpu.memory_space<vmem>>, vector<1x1x64x128xbf16>
    %94 = vector.shape_cast %93 : vector<1x1x64x128xbf16> to vector<64x128xbf16>
    %cst_77 = arith.constant dense<0.000000e+00> : vector<128x128xf32>
    %95 = tpu.matmul %92, %94, %cst_77 {dimension_numbers = #tpu.dot_dimension_numbers<[1], [0], [0], [1], [0, 0, 1, 1], [], []>} : vector<128x64xbf16>, vector<64x128xbf16>, vector<128x128xf32> -> vector<128x128xf32>
    %96 = arith.addf %86, %95 : vector<128x128xf32>
    %c2_78 = arith.constant 2 : index
    %c2_79 = arith.constant 2 : index
    %c0_80 = arith.constant 0 : index
    %97 = vector.load %arg11[%c2_78, %c2_79, %c0_80] : memref<18x18x64xf32, #tpu.memory_space<vmem>>, vector<16x16x64xf32>
    %98 = vector.shape_cast %97 : vector<16x16x64xf32> to vector<8x2x16x64xf32>
    %99 = vector.extract_strided_slice %98 {offsets = [0, 0, 0, 0], sizes = [8, 1, 16, 64], strides = [1, 1, 1, 1]} : vector<8x2x16x64xf32> to vector<8x1x16x64xf32>
    %100 = vector.shape_cast %99 : vector<8x1x16x64xf32> to vector<8x16x64xf32>
    %101 = vector.shape_cast %100 : vector<8x16x64xf32> to vector<128x64xf32>
    %102 = arith.truncf %101 : vector<128x64xf32> to vector<128x64xbf16>
    %c2_81 = arith.constant 2 : index
    %c2_82 = arith.constant 2 : index
    %c0_83 = arith.constant 0 : index
    %c0_84 = arith.constant 0 : index
    %103 = vector.load %arg4[%c2_81, %c2_82, %c0_83, %c0_84] : memref<3x3x64x128xbf16, #tpu.memory_space<vmem>>, vector<1x1x64x128xbf16>
    %104 = vector.shape_cast %103 : vector<1x1x64x128xbf16> to vector<64x128xbf16>
    %cst_85 = arith.constant dense<0.000000e+00> : vector<128x128xf32>
    %105 = tpu.matmul %102, %104, %cst_85 {dimension_numbers = #tpu.dot_dimension_numbers<[1], [0], [0], [1], [0, 0, 1, 1], [], []>} : vector<128x64xbf16>, vector<64x128xbf16>, vector<128x128xf32> -> vector<128x128xf32>
    %106 = arith.addf %96, %105 : vector<128x128xf32>
    %107 = tpu.iota {dimensions = array<i32: 0>} : vector<64x128xi32>
    %108 = tpu.iota {dimensions = array<i32: 1>} : vector<64x128xi32>
    %c2_i32 = arith.constant 2 : i32
    %109 = vector.broadcast %c2_i32 : i32 to vector<64x128xi32>
    %110 = arith.muli %109, %107 : vector<64x128xi32>
    %111 = arith.cmpi eq, %108, %110 : vector<64x128xi32>
    %112 = arith.extui %111 : vector<64x128xi1> to vector<64x128xi32>
    %113 = arith.sitofp %112 : vector<64x128xi32> to vector<64x128xf32>
    %cst_86 = arith.constant dense<0.000000e+00> : vector<64x128xf32>
    %114 = tpu.matmul %113, %106, %cst_86 {dimension_numbers = #tpu.dot_dimension_numbers<[1], [0], [0], [1], [0, 0, 1, 1], [], []>} : vector<64x128xf32>, vector<128x128xf32>, vector<64x128xf32> -> vector<64x128xf32>
    %c0_87 = arith.constant 0 : index
    %c0_88 = arith.constant 0 : index
    %115 = vector.load %arg5[%c0_87, %c0_88] : memref<1x128xf32, #tpu.memory_space<vmem>>, vector<1x128xf32>
    %116 = vector.broadcast %115 : vector<1x128xf32> to vector<64x128xf32>
    %117 = arith.addf %114, %116 : vector<64x128xf32>
    %cst_89 = arith.constant 0.000000e+00 : f32
    %118 = vector.broadcast %cst_89 : f32 to vector<64x128xf32>
    %119 = arith.cmpf oge, %117, %118 : vector<64x128xf32>
    %cst_90 = arith.constant 0.00999999977 : f32
    %120 = vector.broadcast %cst_90 : f32 to vector<64x128xf32>
    %121 = arith.mulf %120, %117 : vector<64x128xf32>
    %122 = arith.select %119, %117, %121 : vector<64x128xi1>, vector<64x128xf32>
    %cst_91 = arith.constant 0.000000e+00 : f32
    %123 = vector.broadcast %cst_91 : f32 to vector<10x10x128xf32>
    %c0_92 = arith.constant 0 : index
    %c0_93 = arith.constant 0 : index
    %c0_94 = arith.constant 0 : index
    %124 = vector.load %arg12[%c0_92, %c0_93, %c0_94] : memref<10x10x128xf32, #tpu.memory_space<vmem>>, vector<10x10x128xf32>
    tpu.vector_store %arg12[%c0_92, %c0_93, %c0_94], %123 {strides = array<i32>} : memref<10x10x128xf32, #tpu.memory_space<vmem>>, vector<10x10x128xf32>,
    %125 = vector.shape_cast %122 : vector<64x128xf32> to vector<8x8x128xf32>
    %c1_95 = arith.constant 1 : index
    %c1_96 = arith.constant 1 : index
    %c0_97 = arith.constant 0 : index
    %126 = vector.load %arg12[%c1_95, %c1_96, %c0_97] : memref<10x10x128xf32, #tpu.memory_space<vmem>>, vector<8x8x128xf32>
    tpu.vector_store %arg12[%c1_95, %c1_96, %c0_97], %125 {strides = array<i32>} : memref<10x10x128xf32, #tpu.memory_space<vmem>>, vector<8x8x128xf32>,
    %cst_98 = arith.constant 0.000000e+00 : f32
    %127 = vector.broadcast %cst_98 : f32 to vector<32x256xf32>
    %c0_99 = arith.constant 0 : index
    %c0_100 = arith.constant 0 : index
    %c0_101 = arith.constant 0 : index
    %128 = vector.load %arg12[%c0_99, %c0_100, %c0_101] : memref<10x10x128xf32, #tpu.memory_space<vmem>>, vector<8x8x128xf32>
    %129 = vector.shape_cast %128 : vector<8x8x128xf32> to vector<4x2x8x128xf32>
    %130 = vector.extract_strided_slice %129 {offsets = [0, 0, 0, 0], sizes = [4, 1, 8, 128], strides = [1, 1, 1, 1]} : vector<4x2x8x128xf32> to vector<4x1x8x128xf32>
    %131 = vector.shape_cast %130 : vector<4x1x8x128xf32> to vector<4x8x128xf32>
    %132 = vector.shape_cast %131 : vector<4x8x128xf32> to vector<32x128xf32>
    %133 = arith.truncf %132 : vector<32x128xf32> to vector<32x128xbf16>
    %c0_102 = arith.constant 0 : index
    %c0_103 = arith.constant 0 : index
    %c0_104 = arith.constant 0 : index
    %c0_105 = arith.constant 0 : index
    %134 = vector.load %arg6[%c0_102, %c0_103, %c0_104, %c0_105] : memref<3x3x128x256xbf16, #tpu.memory_space<vmem>>, vector<1x1x128x256xbf16>
    %135 = vector.shape_cast %134 : vector<1x1x128x256xbf16> to vector<128x256xbf16>
    %cst_106 = arith.constant dense<0.000000e+00> : vector<32x256xf32>
    %136 = tpu.matmul %133, %135, %cst_106 {dimension_numbers = #tpu.dot_dimension_numbers<[1], [0], [0], [1], [0, 0, 1, 1], [], []>} : vector<32x128xbf16>, vector<128x256xbf16>, vector<32x256xf32> -> vector<32x256xf32>
    %137 = arith.addf %127, %136 : vector<32x256xf32>
    %c0_107 = arith.constant 0 : index
    %c1_108 = arith.constant 1 : index
    %c0_109 = arith.constant 0 : index
    %138 = vector.load %arg12[%c0_107, %c1_108, %c0_109] : memref<10x10x128xf32, #tpu.memory_space<vmem>>, vector<8x8x128xf32>
    %139 = vector.shape_cast %138 : vector<8x8x128xf32> to vector<4x2x8x128xf32>
    %140 = vector.extract_strided_slice %139 {offsets = [0, 0, 0, 0], sizes = [4, 1, 8, 128], strides = [1, 1, 1, 1]} : vector<4x2x8x128xf32> to vector<4x1x8x128xf32>
    %141 = vector.shape_cast %140 : vector<4x1x8x128xf32> to vector<4x8x128xf32>
    %142 = vector.shape_cast %141 : vector<4x8x128xf32> to vector<32x128xf32>
    %143 = arith.truncf %142 : vector<32x128xf32> to vector<32x128xbf16>
    %c0_110 = arith.constant 0 : index
    %c1_111 = arith.constant 1 : index
    %c0_112 = arith.constant 0 : index
    %c0_113 = arith.constant 0 : index
    %144 = vector.load %arg6[%c0_110, %c1_111, %c0_112, %c0_113] : memref<3x3x128x256xbf16, #tpu.memory_space<vmem>>, vector<1x1x128x256xbf16>
    %145 = vector.shape_cast %144 : vector<1x1x128x256xbf16> to vector<128x256xbf16>
    %cst_114 = arith.constant dense<0.000000e+00> : vector<32x256xf32>
    %146 = tpu.matmul %143, %145, %cst_114 {dimension_numbers = #tpu.dot_dimension_numbers<[1], [0], [0], [1], [0, 0, 1, 1], [], []>} : vector<32x128xbf16>, vector<128x256xbf16>, vector<32x256xf32> -> vector<32x256xf32>
    %147 = arith.addf %137, %146 : vector<32x256xf32>
    %c0_115 = arith.constant 0 : index
    %c2_116 = arith.constant 2 : index
    %c0_117 = arith.constant 0 : index
    %148 = vector.load %arg12[%c0_115, %c2_116, %c0_117] : memref<10x10x128xf32, #tpu.memory_space<vmem>>, vector<8x8x128xf32>
    %149 = vector.shape_cast %148 : vector<8x8x128xf32> to vector<4x2x8x128xf32>
    %150 = vector.extract_strided_slice %149 {offsets = [0, 0, 0, 0], sizes = [4, 1, 8, 128], strides = [1, 1, 1, 1]} : vector<4x2x8x128xf32> to vector<4x1x8x128xf32>
    %151 = vector.shape_cast %150 : vector<4x1x8x128xf32> to vector<4x8x128xf32>
    %152 = vector.shape_cast %151 : vector<4x8x128xf32> to vector<32x128xf32>
    %153 = arith.truncf %152 : vector<32x128xf32> to vector<32x128xbf16>
    %c0_118 = arith.constant 0 : index
    %c2_119 = arith.constant 2 : index
    %c0_120 = arith.constant 0 : index
    %c0_121 = arith.constant 0 : index
    %154 = vector.load %arg6[%c0_118, %c2_119, %c0_120, %c0_121] : memref<3x3x128x256xbf16, #tpu.memory_space<vmem>>, vector<1x1x128x256xbf16>
    %155 = vector.shape_cast %154 : vector<1x1x128x256xbf16> to vector<128x256xbf16>
    %cst_122 = arith.constant dense<0.000000e+00> : vector<32x256xf32>
    %156 = tpu.matmul %153, %155, %cst_122 {dimension_numbers = #tpu.dot_dimension_numbers<[1], [0], [0], [1], [0, 0, 1, 1], [], []>} : vector<32x128xbf16>, vector<128x256xbf16>, vector<32x256xf32> -> vector<32x256xf32>
    %157 = arith.addf %147, %156 : vector<32x256xf32>
    %c1_123 = arith.constant 1 : index
    %c0_124 = arith.constant 0 : index
    %c0_125 = arith.constant 0 : index
    %158 = vector.load %arg12[%c1_123, %c0_124, %c0_125] : memref<10x10x128xf32, #tpu.memory_space<vmem>>, vector<8x8x128xf32>
    %159 = vector.shape_cast %158 : vector<8x8x128xf32> to vector<4x2x8x128xf32>
    %160 = vector.extract_strided_slice %159 {offsets = [0, 0, 0, 0], sizes = [4, 1, 8, 128], strides = [1, 1, 1, 1]} : vector<4x2x8x128xf32> to vector<4x1x8x128xf32>
    %161 = vector.shape_cast %160 : vector<4x1x8x128xf32> to vector<4x8x128xf32>
    %162 = vector.shape_cast %161 : vector<4x8x128xf32> to vector<32x128xf32>
    %163 = arith.truncf %162 : vector<32x128xf32> to vector<32x128xbf16>
    %c1_126 = arith.constant 1 : index
    %c0_127 = arith.constant 0 : index
    %c0_128 = arith.constant 0 : index
    %c0_129 = arith.constant 0 : index
    %164 = vector.load %arg6[%c1_126, %c0_127, %c0_128, %c0_129] : memref<3x3x128x256xbf16, #tpu.memory_space<vmem>>, vector<1x1x128x256xbf16>
    %165 = vector.shape_cast %164 : vector<1x1x128x256xbf16> to vector<128x256xbf16>
    %cst_130 = arith.constant dense<0.000000e+00> : vector<32x256xf32>
    %166 = tpu.matmul %163, %165, %cst_130 {dimension_numbers = #tpu.dot_dimension_numbers<[1], [0], [0], [1], [0, 0, 1, 1], [], []>} : vector<32x128xbf16>, vector<128x256xbf16>, vector<32x256xf32> -> vector<32x256xf32>
    %167 = arith.addf %157, %166 : vector<32x256xf32>
    %c1_131 = arith.constant 1 : index
    %c1_132 = arith.constant 1 : index
    %c0_133 = arith.constant 0 : index
    %168 = vector.load %arg12[%c1_131, %c1_132, %c0_133] : memref<10x10x128xf32, #tpu.memory_space<vmem>>, vector<8x8x128xf32>
    %169 = vector.shape_cast %168 : vector<8x8x128xf32> to vector<4x2x8x128xf32>
    %170 = vector.extract_strided_slice %169 {offsets = [0, 0, 0, 0], sizes = [4, 1, 8, 128], strides = [1, 1, 1, 1]} : vector<4x2x8x128xf32> to vector<4x1x8x128xf32>
    %171 = vector.shape_cast %170 : vector<4x1x8x128xf32> to vector<4x8x128xf32>
    %172 = vector.shape_cast %171 : vector<4x8x128xf32> to vector<32x128xf32>
    %173 = arith.truncf %172 : vector<32x128xf32> to vector<32x128xbf16>
    %c1_134 = arith.constant 1 : index
    %c1_135 = arith.constant 1 : index
    %c0_136 = arith.constant 0 : index
    %c0_137 = arith.constant 0 : index
    %174 = vector.load %arg6[%c1_134, %c1_135, %c0_136, %c0_137] : memref<3x3x128x256xbf16, #tpu.memory_space<vmem>>, vector<1x1x128x256xbf16>
    %175 = vector.shape_cast %174 : vector<1x1x128x256xbf16> to vector<128x256xbf16>
    %cst_138 = arith.constant dense<0.000000e+00> : vector<32x256xf32>
    %176 = tpu.matmul %173, %175, %cst_138 {dimension_numbers = #tpu.dot_dimension_numbers<[1], [0], [0], [1], [0, 0, 1, 1], [], []>} : vector<32x128xbf16>, vector<128x256xbf16>, vector<32x256xf32> -> vector<32x256xf32>
    %177 = arith.addf %167, %176 : vector<32x256xf32>
    %c1_139 = arith.constant 1 : index
    %c2_140 = arith.constant 2 : index
    %c0_141 = arith.constant 0 : index
    %178 = vector.load %arg12[%c1_139, %c2_140, %c0_141] : memref<10x10x128xf32, #tpu.memory_space<vmem>>, vector<8x8x128xf32>
    %179 = vector.shape_cast %178 : vector<8x8x128xf32> to vector<4x2x8x128xf32>
    %180 = vector.extract_strided_slice %179 {offsets = [0, 0, 0, 0], sizes = [4, 1, 8, 128], strides = [1, 1, 1, 1]} : vector<4x2x8x128xf32> to vector<4x1x8x128xf32>
    %181 = vector.shape_cast %180 : vector<4x1x8x128xf32> to vector<4x8x128xf32>
    %182 = vector.shape_cast %181 : vector<4x8x128xf32> to vector<32x128xf32>
    %183 = arith.truncf %182 : vector<32x128xf32> to vector<32x128xbf16>
    %c1_142 = arith.constant 1 : index
    %c2_143 = arith.constant 2 : index
    %c0_144 = arith.constant 0 : index
    %c0_145 = arith.constant 0 : index
    %184 = vector.load %arg6[%c1_142, %c2_143, %c0_144, %c0_145] : memref<3x3x128x256xbf16, #tpu.memory_space<vmem>>, vector<1x1x128x256xbf16>
    %185 = vector.shape_cast %184 : vector<1x1x128x256xbf16> to vector<128x256xbf16>
    %cst_146 = arith.constant dense<0.000000e+00> : vector<32x256xf32>
    %186 = tpu.matmul %183, %185, %cst_146 {dimension_numbers = #tpu.dot_dimension_numbers<[1], [0], [0], [1], [0, 0, 1, 1], [], []>} : vector<32x128xbf16>, vector<128x256xbf16>, vector<32x256xf32> -> vector<32x256xf32>
    %187 = arith.addf %177, %186 : vector<32x256xf32>
    %c2_147 = arith.constant 2 : index
    %c0_148 = arith.constant 0 : index
    %c0_149 = arith.constant 0 : index
    %188 = vector.load %arg12[%c2_147, %c0_148, %c0_149] : memref<10x10x128xf32, #tpu.memory_space<vmem>>, vector<8x8x128xf32>
    %189 = vector.shape_cast %188 : vector<8x8x128xf32> to vector<4x2x8x128xf32>
    %190 = vector.extract_strided_slice %189 {offsets = [0, 0, 0, 0], sizes = [4, 1, 8, 128], strides = [1, 1, 1, 1]} : vector<4x2x8x128xf32> to vector<4x1x8x128xf32>
    %191 = vector.shape_cast %190 : vector<4x1x8x128xf32> to vector<4x8x128xf32>
    %192 = vector.shape_cast %191 : vector<4x8x128xf32> to vector<32x128xf32>
    %193 = arith.truncf %192 : vector<32x128xf32> to vector<32x128xbf16>
    %c2_150 = arith.constant 2 : index
    %c0_151 = arith.constant 0 : index
    %c0_152 = arith.constant 0 : index
    %c0_153 = arith.constant 0 : index
    %194 = vector.load %arg6[%c2_150, %c0_151, %c0_152, %c0_153] : memref<3x3x128x256xbf16, #tpu.memory_space<vmem>>, vector<1x1x128x256xbf16>
    %195 = vector.shape_cast %194 : vector<1x1x128x256xbf16> to vector<128x256xbf16>
    %cst_154 = arith.constant dense<0.000000e+00> : vector<32x256xf32>
    %196 = tpu.matmul %193, %195, %cst_154 {dimension_numbers = #tpu.dot_dimension_numbers<[1], [0], [0], [1], [0, 0, 1, 1], [], []>} : vector<32x128xbf16>, vector<128x256xbf16>, vector<32x256xf32> -> vector<32x256xf32>
    %197 = arith.addf %187, %196 : vector<32x256xf32>
    %c2_155 = arith.constant 2 : index
    %c1_156 = arith.constant 1 : index
    %c0_157 = arith.constant 0 : index
    %198 = vector.load %arg12[%c2_155, %c1_156, %c0_157] : memref<10x10x128xf32, #tpu.memory_space<vmem>>, vector<8x8x128xf32>
    %199 = vector.shape_cast %198 : vector<8x8x128xf32> to vector<4x2x8x128xf32>
    %200 = vector.extract_strided_slice %199 {offsets = [0, 0, 0, 0], sizes = [4, 1, 8, 128], strides = [1, 1, 1, 1]} : vector<4x2x8x128xf32> to vector<4x1x8x128xf32>
    %201 = vector.shape_cast %200 : vector<4x1x8x128xf32> to vector<4x8x128xf32>
    %202 = vector.shape_cast %201 : vector<4x8x128xf32> to vector<32x128xf32>
    %203 = arith.truncf %202 : vector<32x128xf32> to vector<32x128xbf16>
    %c2_158 = arith.constant 2 : index
    %c1_159 = arith.constant 1 : index
    %c0_160 = arith.constant 0 : index
    %c0_161 = arith.constant 0 : index
    %204 = vector.load %arg6[%c2_158, %c1_159, %c0_160, %c0_161] : memref<3x3x128x256xbf16, #tpu.memory_space<vmem>>, vector<1x1x128x256xbf16>
    %205 = vector.shape_cast %204 : vector<1x1x128x256xbf16> to vector<128x256xbf16>
    %cst_162 = arith.constant dense<0.000000e+00> : vector<32x256xf32>
    %206 = tpu.matmul %203, %205, %cst_162 {dimension_numbers = #tpu.dot_dimension_numbers<[1], [0], [0], [1], [0, 0, 1, 1], [], []>} : vector<32x128xbf16>, vector<128x256xbf16>, vector<32x256xf32> -> vector<32x256xf32>
    %207 = arith.addf %197, %206 : vector<32x256xf32>
    %c2_163 = arith.constant 2 : index
    %c2_164 = arith.constant 2 : index
    %c0_165 = arith.constant 0 : index
    %208 = vector.load %arg12[%c2_163, %c2_164, %c0_165] : memref<10x10x128xf32, #tpu.memory_space<vmem>>, vector<8x8x128xf32>
    %209 = vector.shape_cast %208 : vector<8x8x128xf32> to vector<4x2x8x128xf32>
    %210 = vector.extract_strided_slice %209 {offsets = [0, 0, 0, 0], sizes = [4, 1, 8, 128], strides = [1, 1, 1, 1]} : vector<4x2x8x128xf32> to vector<4x1x8x128xf32>
    %211 = vector.shape_cast %210 : vector<4x1x8x128xf32> to vector<4x8x128xf32>
    %212 = vector.shape_cast %211 : vector<4x8x128xf32> to vector<32x128xf32>
    %213 = arith.truncf %212 : vector<32x128xf32> to vector<32x128xbf16>
    %c2_166 = arith.constant 2 : index
    %c2_167 = arith.constant 2 : index
    %c0_168 = arith.constant 0 : index
    %c0_169 = arith.constant 0 : index
    %214 = vector.load %arg6[%c2_166, %c2_167, %c0_168, %c0_169] : memref<3x3x128x256xbf16, #tpu.memory_space<vmem>>, vector<1x1x128x256xbf16>
    %215 = vector.shape_cast %214 : vector<1x1x128x256xbf16> to vector<128x256xbf16>
    %cst_170 = arith.constant dense<0.000000e+00> : vector<32x256xf32>
    %216 = tpu.matmul %213, %215, %cst_170 {dimension_numbers = #tpu.dot_dimension_numbers<[1], [0], [0], [1], [0, 0, 1, 1], [], []>} : vector<32x128xbf16>, vector<128x256xbf16>, vector<32x256xf32> -> vector<32x256xf32>
    %217 = arith.addf %207, %216 : vector<32x256xf32>
    %218 = tpu.iota {dimensions = array<i32: 0>} : vector<16x32xi32>
    %219 = tpu.iota {dimensions = array<i32: 1>} : vector<16x32xi32>
    %c2_i32_171 = arith.constant 2 : i32
    %220 = vector.broadcast %c2_i32_171 : i32 to vector<16x32xi32>
    %221 = arith.muli %220, %218 : vector<16x32xi32>
    %222 = arith.cmpi eq, %219, %221 : vector<16x32xi32>
    %223 = arith.extui %222 : vector<16x32xi1> to vector<16x32xi32>
    %224 = arith.sitofp %223 : vector<16x32xi32> to vector<16x32xf32>
    %cst_172 = arith.constant dense<0.000000e+00> : vector<16x256xf32>
    %225 = tpu.matmul %224, %217, %cst_172 {dimension_numbers = #tpu.dot_dimension_numbers<[1], [0], [0], [1], [0, 0, 1, 1], [], []>} : vector<16x32xf32>, vector<32x256xf32>, vector<16x256xf32> -> vector<16x256xf32>
    %c0_173 = arith.constant 0 : index
    %c0_174 = arith.constant 0 : index
    %226 = vector.load %arg7[%c0_173, %c0_174] : memref<1x256xf32, #tpu.memory_space<vmem>>, vector<1x256xf32>
    %227 = vector.broadcast %226 : vector<1x256xf32> to vector<16x256xf32>
    %228 = arith.addf %225, %227 : vector<16x256xf32>
    %cst_175 = arith.constant 0.000000e+00 : f32
    %229 = vector.broadcast %cst_175 : f32 to vector<16x256xf32>
    %230 = arith.cmpf oge, %228, %229 : vector<16x256xf32>
    %cst_176 = arith.constant 0.00999999977 : f32
    %231 = vector.broadcast %cst_176 : f32 to vector<16x256xf32>
    %232 = arith.mulf %231, %228 : vector<16x256xf32>
    %233 = arith.select %230, %228, %232 : vector<16x256xi1>, vector<16x256xf32>
    %c0_177 = arith.constant 0 : index
    %c0_178 = arith.constant 0 : index
    %234 = vector.load %arg8[%c0_177, %c0_178] : memref<16x256xf32, #tpu.memory_space<vmem>>, vector<16x256xf32>
    %235 = arith.mulf %233, %234 : vector<16x256xf32>
    %cst_179 = arith.constant dense<0.000000e+00> : vector<16xf32>
    %236 = vector.multi_reduction <add>, %235, %cst_179 [1] : vector<16x256xf32> to vector<16xf32>
    %237 = vector.shape_cast %236 : vector<16xf32> to vector<16x1xf32>
    %cst_180 = arith.constant dense<0.000000e+00> : vector<1xf32>
    %238 = vector.multi_reduction <add>, %237, %cst_180 [0] : vector<16x1xf32> to vector<1xf32>
    %239 = vector.shape_cast %238 : vector<1xf32> to vector<1x1xf32>
    %c0_181 = arith.constant 0 : index
    %c0_182 = arith.constant 0 : index
    %240 = vector.load %arg9[%c0_181, %c0_182] : memref<1x1xf32, #tpu.memory_space<vmem>>, vector<1x1xf32>
    %241 = arith.addf %239, %240 : vector<1x1xf32>
    %242 = vector.shape_cast %241 : vector<1x1xf32> to vector<1x1x1xf32>
    %243 = vector.shape_cast %242 : vector<1x1x1xf32> to vector<1x1x1xf32>
    %244 = vector.broadcast %243 : vector<1x1x1xf32> to vector<1x1x128xf32>
    %c0_183 = arith.constant 0 : index
    %c0_184 = arith.constant 0 : index
    %c0_185 = arith.constant 0 : index
    %245 = vector.load %arg10[%c0_183, %c0_184, %c0_185] : memref<1x1x128xf32, #tpu.memory_space<vmem>>, vector<1x1x128xf32>
    tpu.vector_store %arg10[%c0_183, %c0_184, %c0_185], %244 {strides = array<i32>} : memref<1x1x128xf32, #tpu.memory_space<vmem>>, vector<1x1x128xf32>,
    return
  }
  func.func @transform_0(%arg0: i32) -> (i32, i32, i32) {
    %c0_i32 = arith.constant 0 : i32
    %c0_i32_0 = arith.constant 0 : i32
    %c0_i32_1 = arith.constant 0 : i32
    return %arg0, %c0_i32, %c0_i32_0 : i32, i32, i32
  }
  func.func @transform_1(%arg0: i32) -> (i32, i32) {
    %c0_i32 = arith.constant 0 : i32
    %c0_i32_0 = arith.constant 0 : i32
    %c0_i32_1 = arith.constant 0 : i32
    return %c0_i32, %c0_i32_0 : i32, i32
  }
  func.func @transform_2(%arg0: i32) -> (i32, i32) {
    %c0_i32 = arith.constant 0 : i32
    %c0_i32_0 = arith.constant 0 : i32
    %c0_i32_1 = arith.constant 0 : i32
    return %c0_i32, %c0_i32_0 : i32, i32
  }
  func.func @transform_3(%arg0: i32) -> (i32, i32, i32, i32) {
    %c0_i32 = arith.constant 0 : i32
    %c0_i32_0 = arith.constant 0 : i32
    %c0_i32_1 = arith.constant 0 : i32
    %c0_i32_2 = arith.constant 0 : i32
    %c0_i32_3 = arith.constant 0 : i32
    return %c0_i32, %c0_i32_0, %c0_i32_1, %c0_i32_2 : i32, i32, i32, i32
  }
  func.func @transform_4(%arg0: i32) -> (i32, i32) {
    %c0_i32 = arith.constant 0 : i32
    %c0_i32_0 = arith.constant 0 : i32
    %c0_i32_1 = arith.constant 0 : i32
    return %c0_i32, %c0_i32_0 : i32, i32
  }
  func.func @transform_5(%arg0: i32) -> (i32, i32, i32, i32) {
    %c0_i32 = arith.constant 0 : i32
    %c0_i32_0 = arith.constant 0 : i32
    %c0_i32_1 = arith.constant 0 : i32
    %c0_i32_2 = arith.constant 0 : i32
    %c0_i32_3 = arith.constant 0 : i32
    return %c0_i32, %c0_i32_0, %c0_i32_1, %c0_i32_2 : i32, i32, i32, i32
  }
  func.func @transform_6(%arg0: i32) -> (i32, i32) {
    %c0_i32 = arith.constant 0 : i32
    %c0_i32_0 = arith.constant 0 : i32
    %c0_i32_1 = arith.constant 0 : i32
    return %c0_i32, %c0_i32_0 : i32, i32
  }
  func.func @transform_7(%arg0: i32) -> (i32, i32) {
    %c0_i32 = arith.constant 0 : i32
    %c0_i32_0 = arith.constant 0 : i32
    %c0_i32_1 = arith.constant 0 : i32
    return %c0_i32, %c0_i32_0 : i32, i32
  }
  func.func @transform_8(%arg0: i32) -> (i32, i32) {
    %c0_i32 = arith.constant 0 : i32
    %c0_i32_0 = arith.constant 0 : i32
    %c0_i32_1 = arith.constant 0 : i32
    return %c0_i32, %c0_i32_0 : i32, i32
  }
  func.func @transform_9(%arg0: i32) -> (i32, i32, i32) {
    %c0_i32 = arith.constant 0 : i32
    %c0_i32_0 = arith.constant 0 : i32
    %c0_i32_1 = arith.constant 0 : i32
    return %arg0, %c0_i32, %c0_i32_0 : i32, i32, i32
  }
}

</mosaic_0001>

<llo_original>
// kernel: discriminator_forward.1
$region0: #{discriminator_forward.1}
  #allocation0 [shape = 'u32[]', space=smem, size = 0x4, offset = 0x4, fixed_abs, tag = 'smem constant byte address 0x4 - core index']
  #allocation1 [shape = 'u32[144,128]{1,0:T(1,128)}', space=vmem, size = 0x12000, scoped, tag = 'internal scratch']
  #allocation2 [shape = 'f32[18,18,64]{2,1,0:T(8,128)}', space=vmem, size = 0x36000, scoped, tag = 'scratch operand']
  #allocation3 [shape = 'f32[10,10,128]{2,1,0:T(8,128)}', space=vmem, size = 0x14000, scoped, tag = 'scratch operand']
  #allocation4 [shape = 'f32[1,1]{1,0:T(1,128)S(1)}', space=vmem, size = 0x200, scoped, tag = 'scoped memory for discriminator_forward.1']
  %s0 = inlined_call_operand.vmem [shape: bf16[2,256,128], index: 0, kind: input, shape index: {}]
  %s1 = inlined_call_operand.vmem [shape: bf16[128,64], index: 1, kind: input, shape index: {}]
  %s2 = inlined_call_operand.vmem [shape: f32[1,64], index: 2, kind: input, shape index: {}]
  %s3 = inlined_call_operand.vmem [shape: bf16[3,3,64,128], index: 3, kind: input, shape index: {}]
  %s4 = inlined_call_operand.vmem [shape: f32[1,128], index: 4, kind: input, shape index: {}]
  %s5 = inlined_call_operand.vmem [shape: bf16[3,3,128,256], index: 5, kind: input, shape index: {}]
  %s6 = inlined_call_operand.vmem [shape: f32[1,256], index: 6, kind: input, shape index: {}]
  %s7 = inlined_call_operand.vmem [shape: f32[16,256], index: 7, kind: input, shape index: {}]
  %s8 = inlined_call_operand.<no memory space> [shape: f32[1,1], index: 8, kind: input, shape index: {}]
  %s9 = inlined_call_operand.vmem [shape: f32[2,1,128], index: 9, kind: output, shape index: {}]
  %s10 = sld [smem:[#allocation0]]
  $region69: #{discriminator_forward.1} parent=0
    _
  %s12 = ssub.s32 1, %s10
  %s13 = scalar_select 0, %s12, %s10
  %v14 = vstv %s8
  %15 = vst [vmem:[#allocation4] sm:$0x1] %v14
  loop: start=0, step=1, limit=4
  $region2: #{discriminator_forward.1} parent=0 // loop_pre_header
    _
  $region3: #{discriminator_forward.1} parent=0 // loop_header
    %s17 = sphi 0, %s21
    %p18 = scmp.ge.s32.totalorder %s17, 4
    %s27 = sphi 0, %s29
    %s30 = sphi 0, %s27
    %s31 = sphi 0, %s30
    %s47 = sphi 0, %s31
    %s51 = sphi 0, %s51
    %s53 = sphi 0, %s51
    %s54 = sphi 0, %s53
    %s68 = sphi 0, %s54
    %s72 = sphi 0, %s72
    %s74 = sphi 0, %s72
    %s75 = sphi 0, %s74
    %s89 = sphi 0, %s75
    %s93 = sphi 0, %s93
    %s95 = sphi 0, %s93
    %s96 = sphi 0, %s95
    %s110 = sphi 0, %s96
    %s114 = sphi 0, %s114
    %s116 = sphi 0, %s114
    %s117 = sphi 0, %s116
    %s131 = sphi 0, %s117
    %s135 = sphi 0, %s135
    %s137 = sphi 0, %s135
    %s138 = sphi 0, %s137
    %s152 = sphi 0, %s138
    %s156 = sphi 0, %s156
    %s158 = sphi 0, %s156
    %s159 = sphi 0, %s158
    %s173 = sphi 0, %s159
    %s177 = sphi 0, %s177
    %s179 = sphi 0, %s177
    %s180 = sphi 0, %s179
    %s194 = sphi 0, %s180
    %s198 = sphi 0, %s198
    %s200 = sphi 0, %s198
    %s201 = sphi 0, %s200
    %s215 = sphi 0, %s201
    %s221 = sphi 0, %s223
    %s224 = sphi 0, %s221
    %s225 = sphi 0, %s224
    %s241 = sphi 0, %s225
  $region4: #{discriminator_forward.1} parent=0 // loop_header_branch
    %20 = sbr.rel (%p18) target = $region8
  $region5: #{discriminator_forward.1} parent=0 // loop_body
    %s22 = ssub.s32 %s17, 1
    %s23 = ssub.s32 %s17, 2
    %s24 = sadd.s32 %s17, 1
    %s25 = ssub.s32 %s17, %s24
    %p26 = scmp.eq.s32.totalorder %s25, 0
    %s28 = sadd.s32 %s27, 1
    %s29 = scalar_select %p26, %s27, %s28
    %p32 = pneg %p26
    %p33 = scmp.eq.s32.totalorder %s17, 1
    %p34 = por %p32, %p33
    %p35 = scmp.ne.s32.totalorder %s27, %s30
    %p36 = scmp.eq.s32.totalorder %s17, 0
    %p37 = por %p35, %p36
    %p38 = scmp.ne.s32.totalorder %s27, %s30
    %p39 = scmp.eq.s32.totalorder %s22, 1
    %p40 = por %p38, %p39
    %p41 = scmp.ne.s32.totalorder %s30, %s31
    %p42 = scmp.eq.s32.totalorder %s22, 0
    %p43 = por %p41, %p42
    %p44 = scmp.ne.s32.totalorder %s30, %s31
    %p45 = scmp.eq.s32.totalorder %s23, 1
    %p46 = por %p44, %p45
    %p48 = scmp.ne.s32.totalorder %s31, %s47
    %p49 = scmp.eq.s32.totalorder %s23, 0
    %p50 = por %p48, %p49
    %s52 = sadd.s32 %s51, 1
    %p55 = scmp.eq.s32.totalorder %s17, 1
    %p56 = scmp.ne.s32.totalorder %s51, %s53
    %p57 = scmp.eq.s32.totalorder %s17, 0
    %p58 = por %p56, %p57
    %p59 = scmp.ne.s32.totalorder %s51, %s53
    %p60 = scmp.eq.s32.totalorder %s22, 1
    %p61 = por %p59, %p60
    %p62 = scmp.ne.s32.totalorder %s53, %s54
    %p63 = scmp.eq.s32.totalorder %s22, 0
    %p64 = por %p62, %p63
    %p65 = scmp.ne.s32.totalorder %s53, %s54
    %p66 = scmp.eq.s32.totalorder %s23, 1
    %p67 = por %p65, %p66
    %p69 = scmp.ne.s32.totalorder %s54, %s68
    %p70 = scmp.eq.s32.totalorder %s23, 0
    %p71 = por %p69, %p70
    %s73 = sadd.s32 %s72, 1
    %p76 = scmp.eq.s32.totalorder %s17, 1
    %p77 = scmp.ne.s32.totalorder %s72, %s74
    %p78 = scmp.eq.s32.totalorder %s17, 0
    %p79 = por %p77, %p78
    %p80 = scmp.ne.s32.totalorder %s72, %s74
    %p81 = scmp.eq.s32.totalorder %s22, 1
    %p82 = por %p80, %p81
    %p83 = scmp.ne.s32.totalorder %s74, %s75
    %p84 = scmp.eq.s32.totalorder %s22, 0
    %p85 = por %p83, %p84
    %p86 = scmp.ne.s32.totalorder %s74, %s75
    %p87 = scmp.eq.s32.totalorder %s23, 1
    %p88 = por %p86, %p87
    %p90 = scmp.ne.s32.totalorder %s75, %s89
    %p91 = scmp.eq.s32.totalorder %s23, 0
    %p92 = por %p90, %p91
    %s94 = sadd.s32 %s93, 1
    %p97 = scmp.eq.s32.totalorder %s17, 1
    %p98 = scmp.ne.s32.totalorder %s93, %s95
    %p99 = scmp.eq.s32.totalorder %s17, 0
    %p100 = por %p98, %p99
    %p101 = scmp.ne.s32.totalorder %s93, %s95
    %p102 = scmp.eq.s32.totalorder %s22, 1
    %p103 = por %p101, %p102
    %p104 = scmp.ne.s32.totalorder %s95, %s96
    %p105 = scmp.eq.s32.totalorder %s22, 0
    %p106 = por %p104, %p105
    %p107 = scmp.ne.s32.totalorder %s95, %s96
    %p108 = scmp.eq.s32.totalorder %s23, 1
    %p109 = por %p107, %p108
    %p111 = scmp.ne.s32.totalorder %s96, %s110
    %p112 = scmp.eq.s32.totalorder %s23, 0
    %p113 = por %p111, %p112
    %s115 = sadd.s32 %s114, 1
    %p118 = scmp.eq.s32.totalorder %s17, 1
    %p119 = scmp.ne.s32.totalorder %s114, %s116
    %p120 = scmp.eq.s32.totalorder %s17, 0
    %p121 = por %p119, %p120
    %p122 = scmp.ne.s32.totalorder %s114, %s116
    %p123 = scmp.eq.s32.totalorder %s22, 1
    %p124 = por %p122, %p123
    %p125 = scmp.ne.s32.totalorder %s116, %s117
    %p126 = scmp.eq.s32.totalorder %s22, 0
    %p127 = por %p125, %p126
    %p128 = scmp.ne.s32.totalorder %s116, %s117
    %p129 = scmp.eq.s32.totalorder %s23, 1
    %p130 = por %p128, %p129
    %p132 = scmp.ne.s32.totalorder %s117, %s131
    %p133 = scmp.eq.s32.totalorder %s23, 0
    %p134 = por %p132, %p133
    %s136 = sadd.s32 %s135, 1
    %p139 = scmp.eq.s32.totalorder %s17, 1
    %p140 = scmp.ne.s32.totalorder %s135, %s137
    %p141 = scmp.eq.s32.totalorder %s17, 0
    %p142 = por %p140, %p141
    %p143 = scmp.ne.s32.totalorder %s135, %s137
    %p144 = scmp.eq.s32.totalorder %s22, 1
    %p145 = por %p143, %p144
    %p146 = scmp.ne.s32.totalorder %s137, %s138
    %p147 = scmp.eq.s32.totalorder %s22, 0
    %p148 = por %p146, %p147
    %p149 = scmp.ne.s32.totalorder %s137, %s138
    %p150 = scmp.eq.s32.totalorder %s23, 1
    %p151 = por %p149, %p150
    %p153 = scmp.ne.s32.totalorder %s138, %s152
    %p154 = scmp.eq.s32.totalorder %s23, 0
    %p155 = por %p153, %p154
    %s157 = sadd.s32 %s156, 1
    %p160 = scmp.eq.s32.totalorder %s17, 1
    %p161 = scmp.ne.s32.totalorder %s156, %s158
    %p162 = scmp.eq.s32.totalorder %s17, 0
    %p163 = por %p161, %p162
    %p164 = scmp.ne.s32.totalorder %s156, %s158
    %p165 = scmp.eq.s32.totalorder %s22, 1
    %p166 = por %p164, %p165
    %p167 = scmp.ne.s32.totalorder %s158, %s159
    %p168 = scmp.eq.s32.totalorder %s22, 0
    %p169 = por %p167, %p168
    %p170 = scmp.ne.s32.totalorder %s158, %s159
    %p171 = scmp.eq.s32.totalorder %s23, 1
    %p172 = por %p170, %p171
    %p174 = scmp.ne.s32.totalorder %s159, %s173
    %p175 = scmp.eq.s32.totalorder %s23, 0
    %p176 = por %p174, %p175
    %s178 = sadd.s32 %s177, 1
    %p181 = scmp.eq.s32.totalorder %s17, 1
    %p182 = scmp.ne.s32.totalorder %s177, %s179
    %p183 = scmp.eq.s32.totalorder %s17, 0
    %p184 = por %p182, %p183
    %p185 = scmp.ne.s32.totalorder %s177, %s179
    %p186 = scmp.eq.s32.totalorder %s22, 1
    %p187 = por %p185, %p186
    %p188 = scmp.ne.s32.totalorder %s179, %s180
    %p189 = scmp.eq.s32.totalorder %s22, 0
    %p190 = por %p188, %p189
    %p191 = scmp.ne.s32.totalorder %s179, %s180
    %p192 = scmp.eq.s32.totalorder %s23, 1
    %p193 = por %p191, %p192
    %p195 = scmp.ne.s32.totalorder %s180, %s194
    %p196 = scmp.eq.s32.totalorder %s23, 0
    %p197 = por %p195, %p196
    %s199 = sadd.s32 %s198, 1
    %p202 = scmp.eq.s32.totalorder %s17, 1
    %p203 = scmp.ne.s32.totalorder %s198, %s200
    %p204 = scmp.eq.s32.totalorder %s17, 0
    %p205 = por %p203, %p204
    %p206 = scmp.ne.s32.totalorder %s198, %s200
    %p207 = scmp.eq.s32.totalorder %s22, 1
    %p208 = por %p206, %p207
    %p209 = scmp.ne.s32.totalorder %s200, %s201
    %p210 = scmp.eq.s32.totalorder %s22, 0
    %p211 = por %p209, %p210
    %p212 = scmp.ne.s32.totalorder %s200, %s201
    %p213 = scmp.eq.s32.totalorder %s23, 1
    %p214 = por %p212, %p213
    %p216 = scmp.ne.s32.totalorder %s201, %s215
    %p217 = scmp.eq.s32.totalorder %s23, 0
    %p218 = por %p216, %p217
    %s219 = ssub.s32 %s17, %s24
    %p220 = scmp.eq.s32.totalorder %s219, 0
    %s222 = sadd.s32 %s221, 1
    %s223 = scalar_select %p220, %s221, %s222
    %p226 = pneg %p220
    %p227 = scmp.eq.s32.totalorder %s17, 1
    %p228 = por %p226, %p227
    %p229 = scmp.ne.s32.totalorder %s221, %s224
    %p230 = scmp.eq.s32.totalorder %s17, 0
    %p231 = por %p229, %p230
    %p232 = scmp.ne.s32.totalorder %s221, %s224
    %p233 = scmp.eq.s32.totalorder %s22, 1
    %p234 = por %p232, %p233
    %p235 = scmp.ne.s32.totalorder %s224, %s225
    %p236 = scmp.eq.s32.totalorder %s22, 0
    %p237 = por %p235, %p236
    %p238 = scmp.ne.s32.totalorder %s224, %s225
    %p239 = scmp.eq.s32.totalorder %s23, 1
    %p240 = por %p238, %p239
    %p242 = scmp.ne.s32.totalorder %s225, %s241
    %p243 = scmp.eq.s32.totalorder %s23, 0
    %p244 = por %p242, %p243
    %p245 = scmp.le.s32.totalorder 1, %s17
    %p246 = scmp.lt.s32.totalorder %s17, 3
    %p247 = pnand %p245, %p246
    %p248 = pneg %p247
    // Predicated region
    $region9: #{discriminator_forward.1} parent=5 // pred_check
      _
    $region10: #{discriminator_forward.1} parent=5 // pred_check_branch
      %250 = sbr.rel (%p247) target = $region12
    $region11: #{discriminator_forward.1} parent=5 // pred_region
      %s251 = ssub.s32 %s17, 1
      // Predicated region
      $region13: #{discriminator_forward.1} parent=11 // pred_check
        %p252 = pneg %p64
      $region14: #{discriminator_forward.1} parent=11 // pred_check_branch
        %254 = sbr.rel (%p252) target = $region16
      $region15: #{discriminator_forward.1} parent=11 // pred_region
        _
      $region16: #{discriminator_forward.1} parent=11 // pred_fallthru
        _
      // Predicated region
      $region17: #{discriminator_forward.1} parent=11 // pred_check
        %p255 = pneg %p85
      $region18: #{discriminator_forward.1} parent=11 // pred_check_branch
        %257 = sbr.rel (%p255) target = $region20
      $region19: #{discriminator_forward.1} parent=11 // pred_region
        _
      $region20: #{discriminator_forward.1} parent=11 // pred_fallthru
        _
      // Predicated region
      $region21: #{discriminator_forward.1} parent=11 // pred_check
        %p258 = pneg %p106
      $region22: #{discriminator_forward.1} parent=11 // pred_check_branch
        %260 = sbr.rel (%p258) target = $region24
      $region23: #{discriminator_forward.1} parent=11 // pred_region
        _
      $region24: #{discriminator_forward.1} parent=11 // pred_fallthru
        _
      // Predicated region
      $region25: #{discriminator_forward.1} parent=11 // pred_check
        %p261 = pneg %p127
      $region26: #{discriminator_forward.1} parent=11 // pred_check_branch
        %263 = sbr.rel (%p261) target = $region28
      $region27: #{discriminator_forward.1} parent=11 // pred_region
        _
      $region28: #{discriminator_forward.1} parent=11 // pred_fallthru
        _
      // Predicated region
      $region29: #{discriminator_forward.1} parent=11 // pred_check
        %p264 = pneg %p148
      $region30: #{discriminator_forward.1} parent=11 // pred_check_branch
        %266 = sbr.rel (%p264) target = $region32
      $region31: #{discriminator_forward.1} parent=11 // pred_region
        _
      $region32: #{discriminator_forward.1} parent=11 // pred_fallthru
        _
      // Predicated region
      $region33: #{discriminator_forward.1} parent=11 // pred_check
        %p267 = pneg %p169
      $region34: #{discriminator_forward.1} parent=11 // pred_check_branch
        %269 = sbr.rel (%p267) target = $region36
      $region35: #{discriminator_forward.1} parent=11 // pred_region
        _
      $region36: #{discriminator_forward.1} parent=11 // pred_fallthru
        _
      // Predicated region
      $region37: #{discriminator_forward.1} parent=11 // pred_check
        %p270 = pneg %p190
      $region38: #{discriminator_forward.1} parent=11 // pred_check_branch
        %272 = sbr.rel (%p270) target = $region40
      $region39: #{discriminator_forward.1} parent=11 // pred_region
        _
      $region40: #{discriminator_forward.1} parent=11 // pred_fallthru
        _
      // Predicated region
      $region41: #{discriminator_forward.1} parent=11 // pred_check
        %p273 = pneg %p211
      $region42: #{discriminator_forward.1} parent=11 // pred_check_branch
        %275 = sbr.rel (%p273) target = $region44
      $region43: #{discriminator_forward.1} parent=11 // pred_region
        _
      $region44: #{discriminator_forward.1} parent=11 // pred_fallthru
        _
    $region12: #{discriminator_forward.1} parent=5 // pred_fallthru
      _
    %p276 = scmp.lt.s32.totalorder %s17, 2
    // Predicated region
    $region45: #{discriminator_forward.1} parent=5 // pred_check
      %p277 = pneg %p276
    $region46: #{discriminator_forward.1} parent=5 // pred_check_branch
      %279 = sbr.rel (%p277) target = $region48
    $region47: #{discriminator_forward.1} parent=5 // pred_region
      // Predicated region
      $region49: #{discriminator_forward.1} parent=47 // pred_check
        %p280 = pneg %p37
      $region50: #{discriminator_forward.1} parent=47 // pred_check_branch
        %282 = sbr.rel (%p280) target = $region52
      $region51: #{discriminator_forward.1} parent=47 // pred_region
        %p283 = scmp.lt.s32.totalorder %s17, 1
        %s284 = scalar_select %p283, %s17, 1
        %s285 = smul.addr %s284, 32
        %s286 = smul.addr %s285, 4
        %s287 = scalar_lea.vmem %s0, %s286
      $region52: #{discriminator_forward.1} parent=47 // pred_fallthru
        _
    $region48: #{discriminator_forward.1} parent=5 // pred_fallthru
      _
    %p288 = scmp.le.s32.totalorder 1, %s17
    %p289 = scmp.lt.s32.totalorder %s17, 3
    %p290 = pnand %p288, %p289
    %p291 = pneg %p290
    // Predicated region
    $region53: #{discriminator_forward.1} parent=5 // pred_check
      _
    $region54: #{discriminator_forward.1} parent=5 // pred_check_branch
      %293 = sbr.rel (%p290) target = $region56
    $region55: #{discriminator_forward.1} parent=5 // pred_region
      %s294 = ssub.s32 %s17, 1
      %p295 = scmp.lt.s32.totalorder %s22, 1
      %s296 = scalar_select %p295, %s22, 1
      %s297 = smul.addr %s296, 32
      %s298 = smul.addr %s297, 4
      %s299 = scalar_lea.vmem %s0, %s298
      %p300 = pneg %p43
      %p301 = pneg %p40
      %p302 = pneg %p64
      %p303 = pneg %p61
      %p304 = pneg %p85
      %p305 = pneg %p82
      %p306 = pneg %p106
      %p307 = pneg %p103
      %p308 = pneg %p127
      %p309 = pneg %p124
      %p310 = pneg %p148
      %p311 = pneg %p145
      %p312 = pneg %p169
      %p313 = pneg %p166
      %p314 = pneg %p190
      %p315 = pneg %p187
      %p316 = pneg %p211
      %p317 = pneg %p208
      %p318 = pneg %p237
      %p319 = pneg %p234
      %p320 = scmp.lt.s32.totalorder %s22, 1
      %s321 = scalar_select %p320, %s22, 1
      %s322 = scalar_lea.vmem %s9, %s321
      %p323 = scmp.lt.s32.totalorder %s22, 1
      %s324 = scalar_select %p323, %s22, 1
      %s325 = smul.addr %s324, 32
      %s326 = smul.addr %s325, 4
      %s327 = scalar_lea.vmem %s0, %s326
      %p328 = scmp.lt.s32.totalorder %s22, 1
      %s329 = scalar_select %p328, %s22, 1
      %s330 = scalar_lea.vmem %s9, %s329
      %v332 = vld [vmem:[%s327] sm:$0xf]
      %v333 = vld [vmem:[%s327 + $0x4] sm:$0xf]
      %v334 = vld [vmem:[%s327 + $0x8] sm:$0xf]
      %v335 = vld [vmem:[%s327 + $0xc] sm:$0xf]
      %v336 = vld [vmem:[%s327 + $0x10] sm:$0xf]
      %v337 = vld [vmem:[%s327 + $0x14] sm:$0xf]
      %v338 = vld [vmem:[%s327 + $0x18] sm:$0xf]
      %v339 = vld [vmem:[%s327 + $0x1c] sm:$0xf]
      %v340 = vld [vmem:[%s327 + $0x20] sm:$0xf]
      %v341 = vld [vmem:[%s327 + $0x24] sm:$0xf]
      %v342 = vld [vmem:[%s327 + $0x28] sm:$0xf]
      %v343 = vld [vmem:[%s327 + $0x2c] sm:$0xf]
      %v344 = vld [vmem:[%s327 + $0x30] sm:$0xf]
      %v345 = vld [vmem:[%s327 + $0x34] sm:$0xf]
      %v346 = vld [vmem:[%s327 + $0x38] sm:$0xf]
      %v347 = vld [vmem:[%s327 + $0x3c] sm:$0xf]
      %v348 = vld [vmem:[%s327 + $0x40] sm:$0xf]
      %v349 = vld [vmem:[%s327 + $0x44] sm:$0xf]
      %v350 = vld [vmem:[%s327 + $0x48] sm:$0xf]
      %v351 = vld [vmem:[%s327 + $0x4c] sm:$0xf]
      %v352 = vld [vmem:[%s327 + $0x50] sm:$0xf]
      %v353 = vld [vmem:[%s327 + $0x54] sm:$0xf]
      %v354 = vld [vmem:[%s327 + $0x58] sm:$0xf]
      %v355 = vld [vmem:[%s327 + $0x5c] sm:$0xf]
      %v356 = vld [vmem:[%s327 + $0x60] sm:$0xf]
      %v357 = vld [vmem:[%s327 + $0x64] sm:$0xf]
      %v358 = vld [vmem:[%s327 + $0x68] sm:$0xf]
      %v359 = vld [vmem:[%s327 + $0x6c] sm:$0xf]
      %v360 = vld [vmem:[%s327 + $0x70] sm:$0xf]
      %v361 = vld [vmem:[%s327 + $0x74] sm:$0xf]
      %v362 = vld [vmem:[%s327 + $0x78] sm:$0xf]
      %v363 = vld [vmem:[%s327 + $0x7c] sm:$0xf]
      %v364 = vld [vmem:[%s1] sm:$0xf]
      %v365 = vld [vmem:[%s1 + $0x4] sm:$0xf]
      %v366 = vld [vmem:[%s1 + $0x8] sm:$0xf]
      %v367 = vld [vmem:[%s1 + $0xc] sm:$0xf]
      %v368 = vld [vmem:[%s1 + $0x10] sm:$0xf]
      %v369 = vld [vmem:[%s1 + $0x14] sm:$0xf]
      %v370 = vld [vmem:[%s1 + $0x18] sm:$0xf]
      %v371 = vld [vmem:[%s1 + $0x1c] sm:$0xf]
      %v372 = vld [vmem:[%s1 + $0x20] sm:$0xf]
      %v373 = vld [vmem:[%s1 + $0x24] sm:$0xf]
      %v374 = vld [vmem:[%s1 + $0x28] sm:$0xf]
      %v375 = vld [vmem:[%s1 + $0x2c] sm:$0xf]
      %v376 = vld [vmem:[%s1 + $0x30] sm:$0xf]
      %v377 = vld [vmem:[%s1 + $0x34] sm:$0xf]
      %v378 = vld [vmem:[%s1 + $0x38] sm:$0xf]
      %v379 = vld [vmem:[%s1 + $0x3c] sm:$0xf]
      %v380 = vld [vmem:[%s2] sm:$0x1]
      %v382 = vlaneseq
      %v383 = vshrl.u32 %v382, 7
      %v384 = vsub.s32 0, %v383
      %v385 = vrot.slane %v380, %v384
      %v419 = vunpack.c.l.b16 %v332
      %v420 = vunpack.c.l.b16 %v333
      %v421 = vunpack.c.l.b16 %v334
      %v422 = vunpack.c.l.b16 %v335
      %v423 = vunpack.c.l.b16 %v336
      %v424 = vunpack.c.l.b16 %v337
      %v425 = vunpack.c.l.b16 %v338
      %v426 = vunpack.c.l.b16 %v339
      %v427 = vunpack.c.l.b16 %v340
      %v428 = vunpack.c.l.b16 %v341
      %v429 = vunpack.c.l.b16 %v342
      %v430 = vunpack.c.l.b16 %v343
      %v431 = vunpack.c.l.b16 %v344
      %v432 = vunpack.c.l.b16 %v345
      %v433 = vunpack.c.l.b16 %v346
      %v434 = vunpack.c.l.b16 %v347
      %v435 = vunpack.c.l.b16 %v348
      %v436 = vunpack.c.l.b16 %v349
      %v437 = vunpack.c.l.b16 %v350
      %v438 = vunpack.c.l.b16 %v351
      %v439 = vunpack.c.l.b16 %v352
      %v440 = vunpack.c.l.b16 %v353
      %v441 = vunpack.c.l.b16 %v354
      %v442 = vunpack.c.l.b16 %v355
      %v443 = vunpack.c.l.b16 %v356
      %v444 = vunpack.c.l.b16 %v357
      %v445 = vunpack.c.l.b16 %v358
      %v446 = vunpack.c.l.b16 %v359
      %v447 = vunpack.c.l.b16 %v360
      %v448 = vunpack.c.l.b16 %v361
      %v449 = vunpack.c.l.b16 %v362
      %v450 = vunpack.c.l.b16 %v363
      %v451 = vpack.c.b16 %v420, %v419
      %v452 = vpack.c.b16 %v422, %v421
      %v453 = vpack.c.b16 %v424, %v423
      %v454 = vpack.c.b16 %v426, %v425
      %v455 = vpack.c.b16 %v428, %v427
      %v456 = vpack.c.b16 %v430, %v429
      %v457 = vpack.c.b16 %v432, %v431
      %v458 = vpack.c.b16 %v434, %v433
      %v459 = vpack.c.b16 %v436, %v435
      %v460 = vpack.c.b16 %v438, %v437
      %v461 = vpack.c.b16 %v440, %v439
      %v462 = vpack.c.b16 %v442, %v441
      %v463 = vpack.c.b16 %v444, %v443
      %v464 = vpack.c.b16 %v446, %v445
      %v465 = vpack.c.b16 %v448, %v447
      %v466 = vpack.c.b16 %v450, %v449
      %v499 = vunpack.c.l.b16 %v364
      %v500 = vunpack.c.l.b16 %v365
      %v501 = vunpack.c.l.b16 %v366
      %v502 = vunpack.c.l.b16 %v367
      %v503 = vunpack.c.l.b16 %v368
      %v504 = vunpack.c.l.b16 %v369
      %v505 = vunpack.c.l.b16 %v370
      %v506 = vunpack.c.l.b16 %v371
      %v507 = vunpack.c.l.b16 %v372
      %v508 = vunpack.c.l.b16 %v373
      %v509 = vunpack.c.l.b16 %v374
      %v510 = vunpack.c.l.b16 %v375
      %v511 = vunpack.c.l.b16 %v376
      %v512 = vunpack.c.l.b16 %v377
      %v513 = vunpack.c.l.b16 %v378
      %v514 = vunpack.c.l.b16 %v379
      %v515 = vpack.c.b16 %v500, %v499
      %v516 = vpack.c.b16 %v502, %v501
      %v517 = vpack.c.b16 %v504, %v503
      %v518 = vpack.c.b16 %v506, %v505
      %v519 = vpack.c.b16 %v508, %v507
      %v520 = vpack.c.b16 %v510, %v509
      %v521 = vpack.c.b16 %v512, %v511
      %v522 = vpack.c.b16 %v514, %v513
      %531 = vmatprep.subr.bf16.mxu0 0
      %532 = vmatpush1.bf16.msra.mxu0 %v515
      %533 = vmatprep.subr.bf16.mxu0 0
      %534 = vmatpush1.bf16.msra.mxu0 %v516
      %535 = vmatprep.subr.bf16.mxu0 0
      %536 = vmatpush1.bf16.msra.mxu0 %v517
      %537 = vmatprep.subr.bf16.mxu0 0
      %538 = vmatpush1.bf16.msra.mxu0 %v518
      %539 = vmatprep.subr.bf16.mxu0 0
      %540 = vmatpush1.bf16.msra.mxu0 %v519
      %541 = vmatprep.subr.bf16.mxu0 0
      %542 = vmatpush1.bf16.msra.mxu0 %v520
      %543 = vmatprep.subr.bf16.mxu0 0
      %544 = vmatpush1.bf16.msra.mxu0 %v521
      %545 = vmatprep.subr.bf16.mxu0 0
      %546 = vmatpush1.bf16.msra.mxu0 %v522
      %547 = vmatprep.subr.bf16.mxu0 0
      %548 = vmatpush1.bf16.msra.mxu0 0
      %549 = vmatprep.subr.bf16.mxu0 0
      %550 = vmatpush1.bf16.msra.mxu0 0
      %551 = vmatprep.subr.bf16.mxu0 0
      %552 = vmatpush1.bf16.msra.mxu0 0
      %553 = vmatprep.subr.bf16.mxu0 0
      %554 = vmatpush1.bf16.msra.mxu0 0
      %555 = vmatprep.subr.bf16.mxu0 0
      %556 = vmatpush1.bf16.msra.mxu0 0
      %557 = vmatprep.subr.bf16.mxu0 0
      %558 = vmatpush1.bf16.msra.mxu0 0
      %559 = vmatprep.subr.bf16.mxu0 0
      %560 = vmatpush1.bf16.msra.mxu0 0
      %561 = vmatprep.subr.bf16.mxu0 0
      %562 = vmatpush1.bf16.msra.mxu0 0
      %563 = vmatprep.mubr.bf16.mxu0 0
      %564 = vmatmul.mubr.bf16.gmra.mrb[0].mxu0 %v451
      %v565 = vpop.f32.mrb[0].mxu0
      %v566 = vadd.f32 %v385, %v565
      %v567 = vpop.f32.mrb[0].mxu0
      %v568 = vpop.f32.mrb[0].mxu0
      %v569 = vadd.f32 %v385, %v568
      %v570 = vpop.f32.mrb[0].mxu0
      %571 = vmatprep.mubr.bf16.mxu0 0
      %572 = vmatmul.mubr.bf16.gmra.mrb[0].mxu0 %v452
      %v573 = vpop.f32.mrb[0].mxu0
      %v574 = vadd.f32 %v385, %v573
      %v575 = vpop.f32.mrb[0].mxu0
      %v576 = vpop.f32.mrb[0].mxu0
      %v577 = vadd.f32 %v385, %v576
      %v578 = vpop.f32.mrb[0].mxu0
      %579 = vmatprep.mubr.bf16.mxu0 0
      %580 = vmatmul.mubr.bf16.gmra.mrb[0].mxu0 %v453
      %v581 = vpop.f32.mrb[0].mxu0
      %v582 = vadd.f32 %v385, %v581
      %v583 = vpop.f32.mrb[0].mxu0
      %v584 = vpop.f32.mrb[0].mxu0
      %v585 = vadd.f32 %v385, %v584
      %v586 = vpop.f32.mrb[0].mxu0
      %587 = vmatprep.mubr.bf16.mxu0 0
      %588 = vmatmul.mubr.bf16.gmra.mrb[0].mxu0 %v454
      %v589 = vpop.f32.mrb[0].mxu0
      %v590 = vadd.f32 %v385, %v589
      %v591 = vpop.f32.mrb[0].mxu0
      %v592 = vpop.f32.mrb[0].mxu0
      %v593 = vadd.f32 %v385, %v592
      %v594 = vpop.f32.mrb[0].mxu0
      %595 = vmatprep.mubr.bf16.mxu0 0
      %596 = vmatmul.mubr.bf16.gmra.mrb[0].mxu0 %v455
      %v597 = vpop.f32.mrb[0].mxu0
      %v598 = vadd.f32 %v385, %v597
      %v599 = vpop.f32.mrb[0].mxu0
      %v600 = vpop.f32.mrb[0].mxu0
      %v601 = vadd.f32 %v385, %v600
      %v602 = vpop.f32.mrb[0].mxu0
      %603 = vmatprep.mubr.bf16.mxu0 0
      %604 = vmatmul.mubr.bf16.gmra.mrb[0].mxu0 %v456
      %v605 = vpop.f32.mrb[0].mxu0
      %v606 = vadd.f32 %v385, %v605
      %v607 = vpop.f32.mrb[0].mxu0
      %v608 = vpop.f32.mrb[0].mxu0
      %v609 = vadd.f32 %v385, %v608
      %v610 = vpop.f32.mrb[0].mxu0
      %611 = vmatprep.mubr.bf16.mxu0 0
      %612 = vmatmul.mubr.bf16.gmra.mrb[0].mxu0 %v457
      %v613 = vpop.f32.mrb[0].mxu0
      %v614 = vadd.f32 %v385, %v613
      %v615 = vpop.f32.mrb[0].mxu0
      %v616 = vpop.f32.mrb[0].mxu0
      %v617 = vadd.f32 %v385, %v616
      %v618 = vpop.f32.mrb[0].mxu0
      %619 = vmatprep.mubr.bf16.mxu0 0
      %620 = vmatmul.mubr.bf16.gmra.mrb[0].mxu0 %v458
      %v621 = vpop.f32.mrb[0].mxu0
      %v622 = vadd.f32 %v385, %v621
      %v623 = vpop.f32.mrb[0].mxu0
      %v624 = vpop.f32.mrb[0].mxu0
      %v625 = vadd.f32 %v385, %v624
      %v626 = vpop.f32.mrb[0].mxu0
      %627 = vmatprep.mubr.bf16.mxu0 0
      %628 = vmatmul.mubr.bf16.gmra.mrb[0].mxu0 %v459
      %v629 = vpop.f32.mrb[0].mxu0
      %v630 = vadd.f32 %v385, %v629
      %v631 = vpop.f32.mrb[0].mxu0
      %v632 = vpop.f32.mrb[0].mxu0
      %v633 = vadd.f32 %v385, %v632
      %v634 = vpop.f32.mrb[0].mxu0
      %635 = vmatprep.mubr.bf16.mxu0 0
      %636 = vmatmul.mubr.bf16.gmra.mrb[0].mxu0 %v460
      %v637 = vpop.f32.mrb[0].mxu0
      %v638 = vadd.f32 %v385, %v637
      %v639 = vpop.f32.mrb[0].mxu0
      %v640 = vpop.f32.mrb[0].mxu0
      %v641 = vadd.f32 %v385, %v640
      %v642 = vpop.f32.mrb[0].mxu0
      %643 = vmatprep.mubr.bf16.mxu0 0
      %644 = vmatmul.mubr.bf16.gmra.mrb[0].mxu0 %v461
      %v645 = vpop.f32.mrb[0].mxu0
      %v646 = vadd.f32 %v385, %v645
      %v647 = vpop.f32.mrb[0].mxu0
      %v648 = vpop.f32.mrb[0].mxu0
      %v649 = vadd.f32 %v385, %v648
      %v650 = vpop.f32.mrb[0].mxu0
      %651 = vmatprep.mubr.bf16.mxu0 0
      %652 = vmatmul.mubr.bf16.gmra.mrb[0].mxu0 %v462
      %v653 = vpop.f32.mrb[0].mxu0
      %v654 = vadd.f32 %v385, %v653
      %v655 = vpop.f32.mrb[0].mxu0
      %v656 = vpop.f32.mrb[0].mxu0
      %v657 = vadd.f32 %v385, %v656
      %v658 = vpop.f32.mrb[0].mxu0
      %659 = vmatprep.mubr.bf16.mxu0 0
      %660 = vmatmul.mubr.bf16.gmra.mrb[0].mxu0 %v463
      %v661 = vpop.f32.mrb[0].mxu0
      %v662 = vadd.f32 %v385, %v661
      %v663 = vpop.f32.mrb[0].mxu0
      %v664 = vpop.f32.mrb[0].mxu0
      %v665 = vadd.f32 %v385, %v664
      %v666 = vpop.f32.mrb[0].mxu0
      %667 = vmatprep.mubr.bf16.mxu0 0
      %668 = vmatmul.mubr.bf16.gmra.mrb[0].mxu0 %v464
      %v669 = vpop.f32.mrb[0].mxu0
      %v670 = vadd.f32 %v385, %v669
      %v671 = vpop.f32.mrb[0].mxu0
      %v672 = vpop.f32.mrb[0].mxu0
      %v673 = vadd.f32 %v385, %v672
      %v674 = vpop.f32.mrb[0].mxu0
      %675 = vmatprep.mubr.bf16.mxu0 0
      %676 = vmatmul.mubr.bf16.gmra.mrb[0].mxu0 %v465
      %v677 = vpop.f32.mrb[0].mxu0
      %v678 = vadd.f32 %v385, %v677
      %v679 = vpop.f32.mrb[0].mxu0
      %v680 = vpop.f32.mrb[0].mxu0
      %v681 = vadd.f32 %v385, %v680
      %v682 = vpop.f32.mrb[0].mxu0
      %683 = vmatprep.mubr.bf16.mxu0 0
      %684 = vmatmul.mubr.bf16.gmra.mrb[0].mxu0 %v466
      %v685 = vpop.f32.mrb[0].mxu0
      %v686 = vadd.f32 %v385, %v685
      %v687 = vpop.f32.mrb[0].mxu0
      %v688 = vpop.f32.mrb[0].mxu0
      %v689 = vadd.f32 %v385, %v688
      %v690 = vpop.f32.mrb[0].mxu0
      %691 = vdwg.mxu0
      %vm692 = vcmp.ge.f32.partialorder %v566, 0.0
      %vm693 = vcmp.ge.f32.partialorder %v569, 0.0
      %vm694 = vcmp.ge.f32.partialorder %v574, 0.0
      %vm695 = vcmp.ge.f32.partialorder %v577, 0.0
      %vm696 = vcmp.ge.f32.partialorder %v582, 0.0
      %vm697 = vcmp.ge.f32.partialorder %v585, 0.0
      %vm698 = vcmp.ge.f32.partialorder %v590, 0.0
      %vm699 = vcmp.ge.f32.partialorder %v593, 0.0
      %vm700 = vcmp.ge.f32.partialorder %v598, 0.0
      %vm701 = vcmp.ge.f32.partialorder %v601, 0.0
      %vm702 = vcmp.ge.f32.partialorder %v606, 0.0
      %vm703 = vcmp.ge.f32.partialorder %v609, 0.0
      %vm704 = vcmp.ge.f32.partialorder %v614, 0.0
      %vm705 = vcmp.ge.f32.partialorder %v617, 0.0
      %vm706 = vcmp.ge.f32.partialorder %v622, 0.0
      %vm707 = vcmp.ge.f32.partialorder %v625, 0.0
      %vm708 = vcmp.ge.f32.partialorder %v630, 0.0
      %vm709 = vcmp.ge.f32.partialorder %v633, 0.0
      %vm710 = vcmp.ge.f32.partialorder %v638, 0.0
      %vm711 = vcmp.ge.f32.partialorder %v641, 0.0
      %vm712 = vcmp.ge.f32.partialorder %v646, 0.0
      %vm713 = vcmp.ge.f32.partialorder %v649, 0.0
      %vm714 = vcmp.ge.f32.partialorder %v654, 0.0
      %vm715 = vcmp.ge.f32.partialorder %v657, 0.0
      %vm716 = vcmp.ge.f32.partialorder %v662, 0.0
      %vm717 = vcmp.ge.f32.partialorder %v665, 0.0
      %vm718 = vcmp.ge.f32.partialorder %v670, 0.0
      %vm719 = vcmp.ge.f32.partialorder %v673, 0.0
      %vm720 = vcmp.ge.f32.partialorder %v678, 0.0
      %vm721 = vcmp.ge.f32.partialorder %v681, 0.0
      %vm722 = vcmp.ge.f32.partialorder %v686, 0.0
      %vm723 = vcmp.ge.f32.partialorder %v689, 0.0
      %v724 = vmul.f32 %v566, 0.01
      %v725 = vmul.f32 %v569, 0.01
      %v726 = vmul.f32 %v574, 0.01
      %v727 = vmul.f32 %v577, 0.01
      %v728 = vmul.f32 %v582, 0.01
      %v729 = vmul.f32 %v585, 0.01
      %v730 = vmul.f32 %v590, 0.01
      %v731 = vmul.f32 %v593, 0.01
      %v732 = vmul.f32 %v598, 0.01
      %v733 = vmul.f32 %v601, 0.01
      %v734 = vmul.f32 %v606, 0.01
      %v735 = vmul.f32 %v609, 0.01
      %v736 = vmul.f32 %v614, 0.01
      %v737 = vmul.f32 %v617, 0.01
      %v738 = vmul.f32 %v622, 0.01
      %v739 = vmul.f32 %v625, 0.01
      %v740 = vmul.f32 %v630, 0.01
      %v741 = vmul.f32 %v633, 0.01
      %v742 = vmul.f32 %v638, 0.01
      %v743 = vmul.f32 %v641, 0.01
      %v744 = vmul.f32 %v646, 0.01
      %v745 = vmul.f32 %v649, 0.01
      %v746 = vmul.f32 %v654, 0.01
      %v747 = vmul.f32 %v657, 0.01
      %v748 = vmul.f32 %v662, 0.01
      %v749 = vmul.f32 %v665, 0.01
      %v750 = vmul.f32 %v670, 0.01
      %v751 = vmul.f32 %v673, 0.01
      %v752 = vmul.f32 %v678, 0.01
      %v753 = vmul.f32 %v681, 0.01
      %v754 = vmul.f32 %v686, 0.01
      %v755 = vmul.f32 %v689, 0.01
      %v756 = vsel %vm692, %v566, %v724
      %v757 = vsel %vm693, %v569, %v725
      %v758 = vsel %vm694, %v574, %v726
      %v759 = vsel %vm695, %v577, %v727
      %v760 = vsel %vm696, %v582, %v728
      %v761 = vsel %vm697, %v585, %v729
      %v762 = vsel %vm698, %v590, %v730
      %v763 = vsel %vm699, %v593, %v731
      %v764 = vsel %vm700, %v598, %v732
      %v765 = vsel %vm701, %v601, %v733
      %v766 = vsel %vm702, %v606, %v734
      %v767 = vsel %vm703, %v609, %v735
      %v768 = vsel %vm704, %v614, %v736
      %v769 = vsel %vm705, %v617, %v737
      %v770 = vsel %vm706, %v622, %v738
      %v771 = vsel %vm707, %v625, %v739
      %v772 = vsel %vm708, %v630, %v740
      %v773 = vsel %vm709, %v633, %v741
      %v774 = vsel %vm710, %v638, %v742
      %v775 = vsel %vm711, %v641, %v743
      %v776 = vsel %vm712, %v646, %v744
      %v777 = vsel %vm713, %v649, %v745
      %v778 = vsel %vm714, %v654, %v746
      %v779 = vsel %vm715, %v657, %v747
      %v780 = vsel %vm716, %v662, %v748
      %v781 = vsel %vm717, %v665, %v749
      %v782 = vsel %vm718, %v670, %v750
      %v783 = vsel %vm719, %v673, %v751
      %v784 = vsel %vm720, %v678, %v752
      %v785 = vsel %vm721, %v681, %v753
      %v786 = vsel %vm722, %v686, %v754
      %v787 = vsel %vm723, %v689, %v755
      %vm788 = vcmask 523264
      %789 = vst.msk [vmem:[#allocation2] sm:$0xff] %vm788, 0.0
      %790 = vst.msk [vmem:[#allocation2 + $0x8] sm:$0xff] %vm788, 0.0
      %vm791 = vcmask 517120
      %792 = vst.msk [vmem:[#allocation2 + $0x10] sm:$0x3] %vm791, 0.0
      %793 = vst.msk [vmem:[#allocation2 + $0x18] sm:$0xff] %vm788, 0.0
      %794 = vst.msk [vmem:[#allocation2 + $0x20] sm:$0xff] %vm788, 0.0
      %795 = vst.msk [vmem:[#allocation2 + $0x28] sm:$0x3] %vm791, 0.0
      %796 = vst.msk [vmem:[#allocation2 + $0x30] sm:$0xff] %vm788, 0.0
      %797 = vst.msk [vmem:[#allocation2 + $0x38] sm:$0xff] %vm788, 0.0
      %798 = vst.msk [vmem:[#allocation2 + $0x40] sm:$0x3] %vm791, 0.0
      %799 = vst.msk [vmem:[#allocation2 + $0x48] sm:$0xff] %vm788, 0.0
      %800 = vst.msk [vmem:[#allocation2 + $0x50] sm:$0xff] %vm788, 0.0
      %801 = vst.msk [vmem:[#allocation2 + $0x58] sm:$0x3] %vm791, 0.0
      %802 = vst.msk [vmem:[#allocation2 + $0x60] sm:$0xff] %vm788, 0.0
      %803 = vst.msk [vmem:[#allocation2 + $0x68] sm:$0xff] %vm788, 0.0
      %804 = vst.msk [vmem:[#allocation2 + $0x70] sm:$0x3] %vm791, 0.0
      %805 = vst.msk [vmem:[#allocation2 + $0x78] sm:$0xff] %vm788, 0.0
      %806 = vst.msk [vmem:[#allocation2 + $0x80] sm:$0xff] %vm788, 0.0
      %807 = vst.msk [vmem:[#allocation2 + $0x88] sm:$0x3] %vm791, 0.0
      %808 = vst.msk [vmem:[#allocation2 + $0x90] sm:$0xff] %vm788, 0.0
      %809 = vst.msk [vmem:[#allocation2 + $0x98] sm:$0xff] %vm788, 0.0
      %810 = vst.msk [vmem:[#allocation2 + $0xa0] sm:$0x3] %vm791, 0.0
      %811 = vst.msk [vmem:[#allocation2 + $0xa8] sm:$0xff] %vm788, 0.0
      %812 = vst.msk [vmem:[#allocation2 + $0xb0] sm:$0xff] %vm788, 0.0
      %813 = vst.msk [vmem:[#allocation2 + $0xb8] sm:$0x3] %vm791, 0.0
      %814 = vst.msk [vmem:[#allocation2 + $0xc0] sm:$0xff] %vm788, 0.0
      %815 = vst.msk [vmem:[#allocation2 + $0xc8] sm:$0xff] %vm788, 0.0
      %816 = vst.msk [vmem:[#allocation2 + $0xd0] sm:$0x3] %vm791, 0.0
      %817 = vst.msk [vmem:[#allocation2 + $0xd8] sm:$0xff] %vm788, 0.0
      %818 = vst.msk [vmem:[#allocation2 + $0xe0] sm:$0xff] %vm788, 0.0
      %819 = vst.msk [vmem:[#allocation2 + $0xe8] sm:$0x3] %vm791, 0.0
      %820 = vst.msk [vmem:[#allocation2 + $0xf0] sm:$0xff] %vm788, 0.0
      %821 = vst.msk [vmem:[#allocation2 + $0xf8] sm:$0xff] %vm788, 0.0
      %822 = vst.msk [vmem:[#allocation2 + $0x100] sm:$0x3] %vm791, 0.0
      %823 = vst.msk [vmem:[#allocation2 + $0x108] sm:$0xff] %vm788, 0.0
      %824 = vst.msk [vmem:[#allocation2 + $0x110] sm:$0xff] %vm788, 0.0
      %825 = vst.msk [vmem:[#allocation2 + $0x118] sm:$0x3] %vm791, 0.0
      %826 = vst.msk [vmem:[#allocation2 + $0x120] sm:$0xff] %vm788, 0.0
      %827 = vst.msk [vmem:[#allocation2 + $0x128] sm:$0xff] %vm788, 0.0
      %828 = vst.msk [vmem:[#allocation2 + $0x130] sm:$0x3] %vm791, 0.0
      %829 = vst.msk [vmem:[#allocation2 + $0x138] sm:$0xff] %vm788, 0.0
      %830 = vst.msk [vmem:[#allocation2 + $0x140] sm:$0xff] %vm788, 0.0
      %831 = vst.msk [vmem:[#allocation2 + $0x148] sm:$0x3] %vm791, 0.0
      %832 = vst.msk [vmem:[#allocation2 + $0x150] sm:$0xff] %vm788, 0.0
      %833 = vst.msk [vmem:[#allocation2 + $0x158] sm:$0xff] %vm788, 0.0
      %834 = vst.msk [vmem:[#allocation2 + $0x160] sm:$0x3] %vm791, 0.0
      %835 = vst.msk [vmem:[#allocation2 + $0x168] sm:$0xff] %vm788, 0.0
      %836 = vst.msk [vmem:[#allocation2 + $0x170] sm:$0xff] %vm788, 0.0
      %837 = vst.msk [vmem:[#allocation2 + $0x178] sm:$0x3] %vm791, 0.0
      %838 = vst.msk [vmem:[#allocation2 + $0x180] sm:$0xff] %vm788, 0.0
      %839 = vst.msk [vmem:[#allocation2 + $0x188] sm:$0xff] %vm788, 0.0
      %840 = vst.msk [vmem:[#allocation2 + $0x190] sm:$0x3] %vm791, 0.0
      %841 = vst.msk [vmem:[#allocation2 + $0x198] sm:$0xff] %vm788, 0.0
      %842 = vst.msk [vmem:[#allocation2 + $0x1a0] sm:$0xff] %vm788, 0.0
      %843 = vst.msk [vmem:[#allocation2 + $0x1a8] sm:$0x3] %vm791, 0.0
      %s844 = scalar_lea.vmem [#allocation2], 24
      %845 = vst.msk [vmem:[%s844 + $0x1] sm:$0xff] %vm788, %v756
      %846 = vst.msk [vmem:[%s844 + $0x9] sm:$0xff] %vm788, %v757
      %847 = vst.msk [vmem:[%s844 + $0x19] sm:$0xff] %vm788, %v758
      %848 = vst.msk [vmem:[%s844 + $0x21] sm:$0xff] %vm788, %v759
      %849 = vst.msk [vmem:[%s844 + $0x31] sm:$0xff] %vm788, %v760
      %850 = vst.msk [vmem:[%s844 + $0x39] sm:$0xff] %vm788, %v761
      %851 = vst.msk [vmem:[%s844 + $0x49] sm:$0xff] %vm788, %v762
      %852 = vst.msk [vmem:[%s844 + $0x51] sm:$0xff] %vm788, %v763
      %853 = vst.msk [vmem:[%s844 + $0x61] sm:$0xff] %vm788, %v764
      %854 = vst.msk [vmem:[%s844 + $0x69] sm:$0xff] %vm788, %v765
      %855 = vst.msk [vmem:[%s844 + $0x79] sm:$0xff] %vm788, %v766
      %856 = vst.msk [vmem:[%s844 + $0x81] sm:$0xff] %vm788, %v767
      %857 = vst.msk [vmem:[%s844 + $0x91] sm:$0xff] %vm788, %v768
      %858 = vst.msk [vmem:[%s844 + $0x99] sm:$0xff] %vm788, %v769
      %859 = vst.msk [vmem:[%s844 + $0xa9] sm:$0xff] %vm788, %v770
      %860 = vst.msk [vmem:[%s844 + $0xb1] sm:$0xff] %vm788, %v771
      %861 = vst.msk [vmem:[%s844 + $0xc1] sm:$0xff] %vm788, %v772
      %862 = vst.msk [vmem:[%s844 + $0xc9] sm:$0xff] %vm788, %v773
      %863 = vst.msk [vmem:[%s844 + $0xd9] sm:$0xff] %vm788, %v774
      %864 = vst.msk [vmem:[%s844 + $0xe1] sm:$0xff] %vm788, %v775
      %865 = vst.msk [vmem:[%s844 + $0xf1] sm:$0xff] %vm788, %v776
      %866 = vst.msk [vmem:[%s844 + $0xf9] sm:$0xff] %vm788, %v777
      %867 = vst.msk [vmem:[%s844 + $0x109] sm:$0xff] %vm788, %v778
      %868 = vst.msk [vmem:[%s844 + $0x111] sm:$0xff] %vm788, %v779
      %869 = vst.msk [vmem:[%s844 + $0x121] sm:$0xff] %vm788, %v780
      %870 = vst.msk [vmem:[%s844 + $0x129] sm:$0xff] %vm788, %v781
      %871 = vst.msk [vmem:[%s844 + $0x139] sm:$0xff] %vm788, %v782
      %872 = vst.msk [vmem:[%s844 + $0x141] sm:$0xff] %vm788, %v783
      %873 = vst.msk [vmem:[%s844 + $0x151] sm:$0xff] %vm788, %v784
      %874 = vst.msk [vmem:[%s844 + $0x159] sm:$0xff] %vm788, %v785
      %875 = vst.msk [vmem:[%s844 + $0x169] sm:$0xff] %vm788, %v786
      %876 = vst.msk [vmem:[%s844 + $0x171] sm:$0xff] %vm788, %v787
      %v877 = vld [vmem:[#allocation2] sm:$0xff]
      %v878 = vld [vmem:[#allocation2 + $0x8] sm:$0xff]
      %v879 = vld [vmem:[#allocation2 + $0x30] sm:$0xff]
      %v880 = vld [vmem:[#allocation2 + $0x38] sm:$0xff]
      %v881 = vld [vmem:[#allocation2 + $0x60] sm:$0xff]
      %v882 = vld [vmem:[#allocation2 + $0x68] sm:$0xff]
      %v883 = vld [vmem:[#allocation2 + $0x90] sm:$0xff]
      %v884 = vld [vmem:[#allocation2 + $0x98] sm:$0xff]
      %v885 = vld [vmem:[#allocation2 + $0xc0] sm:$0xff]
      %v886 = vld [vmem:[#allocation2 + $0xc8] sm:$0xff]
      %v887 = vld [vmem:[#allocation2 + $0xf0] sm:$0xff]
      %v888 = vld [vmem:[#allocation2 + $0xf8] sm:$0xff]
      %v889 = vld [vmem:[#allocation2 + $0x120] sm:$0xff]
      %v890 = vld [vmem:[#allocation2 + $0x128] sm:$0xff]
      %v891 = vld [vmem:[#allocation2 + $0x150] sm:$0xff]
      %v892 = vld [vmem:[#allocation2 + $0x158] sm:$0xff]
      %v893 = vpack.c.bf16 %v878, %v877
      %v894 = vpack.c.bf16 %v880, %v879
      %v895 = vpack.c.bf16 %v882, %v881
      %v896 = vpack.c.bf16 %v884, %v883
      %v897 = vpack.c.bf16 %v886, %v885
      %v898 = vpack.c.bf16 %v888, %v887
      %v899 = vpack.c.bf16 %v890, %v889
      %v900 = vpack.c.bf16 %v892, %v891
      %v901 = vld [vmem:[%s3] sm:$0xf]
      %v902 = vld [vmem:[%s3 + $0x4] sm:$0xf]
      %v903 = vld [vmem:[%s3 + $0x8] sm:$0xf]
      %v904 = vld [vmem:[%s3 + $0xc] sm:$0xf]
      %v905 = vld [vmem:[%s3 + $0x10] sm:$0xf]
      %v906 = vld [vmem:[%s3 + $0x14] sm:$0xf]
      %v907 = vld [vmem:[%s3 + $0x18] sm:$0xf]
      %v908 = vld [vmem:[%s3 + $0x1c] sm:$0xf]
      %v909 = vld [vmem:[#allocation2 + $0x1] sm:$0xff]
      %v910 = vld [vmem:[#allocation2 + $0x9] sm:$0xff]
      %v911 = vld [vmem:[#allocation2 + $0x31] sm:$0xff]
      %v912 = vld [vmem:[#allocation2 + $0x39] sm:$0xff]
      %v913 = vld [vmem:[#allocation2 + $0x61] sm:$0xff]
      %v914 = vld [vmem:[#allocation2 + $0x69] sm:$0xff]
      %v915 = vld [vmem:[#allocation2 + $0x91] sm:$0xff]
      %v916 = vld [vmem:[#allocation2 + $0x99] sm:$0xff]
      %v917 = vld [vmem:[#allocation2 + $0xc1] sm:$0xff]
      %v918 = vld [vmem:[#allocation2 + $0xc9] sm:$0xff]
      %v919 = vld [vmem:[#allocation2 + $0xf1] sm:$0xff]
      %v920 = vld [vmem:[#allocation2 + $0xf9] sm:$0xff]
      %v921 = vld [vmem:[#allocation2 + $0x121] sm:$0xff]
      %v922 = vld [vmem:[#allocation2 + $0x129] sm:$0xff]
      %v923 = vld [vmem:[#allocation2 + $0x151] sm:$0xff]
      %v924 = vld [vmem:[#allocation2 + $0x159] sm:$0xff]
      %v925 = vpack.c.bf16 %v910, %v909
      %v926 = vpack.c.bf16 %v912, %v911
      %v927 = vpack.c.bf16 %v914, %v913
      %v928 = vpack.c.bf16 %v916, %v915
      %v929 = vpack.c.bf16 %v918, %v917
      %v930 = vpack.c.bf16 %v920, %v919
      %v931 = vpack.c.bf16 %v922, %v921
      %v932 = vpack.c.bf16 %v924, %v923
      %s933 = scalar_lea.vmem %s3, 32
      %v934 = vld [vmem:[%s933] sm:$0xf]
      %v935 = vld [vmem:[%s933 + $0x4] sm:$0xf]
      %v936 = vld [vmem:[%s933 + $0x8] sm:$0xf]
      %v937 = vld [vmem:[%s933 + $0xc] sm:$0xf]
      %v938 = vld [vmem:[%s933 + $0x10] sm:$0xf]
      %v939 = vld [vmem:[%s933 + $0x14] sm:$0xf]
      %v940 = vld [vmem:[%s933 + $0x18] sm:$0xf]
      %v941 = vld [vmem:[%s933 + $0x1c] sm:$0xf]
      %v950 = vunpack.c.l.b16 %v934
      %v951 = vunpack.c.l.b16 %v935
      %v952 = vunpack.c.l.b16 %v936
      %v953 = vunpack.c.l.b16 %v937
      %v954 = vunpack.c.l.b16 %v938
      %v955 = vunpack.c.l.b16 %v939
      %v956 = vunpack.c.l.b16 %v940
      %v957 = vunpack.c.l.b16 %v941
      %v958 = vpack.c.b16 %v951, %v950
      %v959 = vpack.c.b16 %v953, %v952
      %v960 = vpack.c.b16 %v955, %v954
      %v961 = vpack.c.b16 %v957, %v956
      %v967 = vsel %vm788, %v925, 0
      %v970 = vsel %vm788, %v926, 0
      %v973 = vsel %vm788, %v927, 0
      %v976 = vsel %vm788, %v928, 0
      %v979 = vsel %vm788, %v929, 0
      %v982 = vsel %vm788, %v930, 0
      %v985 = vsel %vm788, %v931, 0
      %v988 = vsel %vm788, %v932, 0
      %990 = vmatprep.subr.bf16.mxu0 0
      %991 = vmatpush1.bf16.msra.mxu0 %v958
      %992 = vmatprep.subr.bf16.mxu0 0
      %993 = vmatpush1.bf16.msra.mxu0 %v959
      %994 = vmatprep.subr.bf16.mxu0 0
      %995 = vmatpush1.bf16.msra.mxu0 %v960
      %996 = vmatprep.subr.bf16.mxu0 0
      %997 = vmatpush1.bf16.msra.mxu0 %v961
      %998 = vmatprep.subr.bf16.mxu0 0
      %999 = vmatpush1.bf16.msra.mxu0 0
      %1000 = vmatprep.subr.bf16.mxu0 0
      %1001 = vmatpush1.bf16.msra.mxu0 0
      %1002 = vmatprep.subr.bf16.mxu0 0
      %1003 = vmatpush1.bf16.msra.mxu0 0
      %1004 = vmatprep.subr.bf16.mxu0 0
      %1005 = vmatpush1.bf16.msra.mxu0 0
      %1006 = vmatprep.subr.bf16.mxu0 0
      %1007 = vmatpush1.bf16.msra.mxu0 0
      %1008 = vmatprep.subr.bf16.mxu0 0
      %1009 = vmatpush1.bf16.msra.mxu0 0
      %1010 = vmatprep.subr.bf16.mxu0 0
      %1011 = vmatpush1.bf16.msra.mxu0 0
      %1012 = vmatprep.subr.bf16.mxu0 0
      %1013 = vmatpush1.bf16.msra.mxu0 0
      %1014 = vmatprep.subr.bf16.mxu0 0
      %1015 = vmatpush1.bf16.msra.mxu0 0
      %1016 = vmatprep.subr.bf16.mxu0 0
      %1017 = vmatpush1.bf16.msra.mxu0 0
      %1018 = vmatprep.subr.bf16.mxu0 0
      %1019 = vmatpush1.bf16.msra.mxu0 0
      %1020 = vmatprep.subr.bf16.mxu0 0
      %1021 = vmatpush1.bf16.msra.mxu0 0
      %1022 = vmatprep.mubr.bf16.mxu0 0
      %1023 = vmatmul.mubr.bf16.gmra.mrb[0].mxu0 %v967
      %v1024 = vpop.f32.mrb[0].mxu0
      %v1025 = vadd.f32 0.0, %v1024
      %v1026 = vpop.f32.mrb[0].mxu0
      %v1027 = vpop.f32.mrb[0].mxu0
      %v1028 = vadd.f32 0.0, %v1027
      %v1029 = vpop.f32.mrb[0].mxu0
      %1030 = vmatprep.mubr.bf16.mxu0 0
      %1031 = vmatmul.mubr.bf16.gmra.mrb[0].mxu0 %v970
      %v1032 = vpop.f32.mrb[0].mxu0
      %v1033 = vadd.f32 0.0, %v1032
      %v1034 = vpop.f32.mrb[0].mxu0
      %v1035 = vpop.f32.mrb[0].mxu0
      %v1036 = vadd.f32 0.0, %v1035
      %v1037 = vpop.f32.mrb[0].mxu0
      %1038 = vmatprep.mubr.bf16.mxu0 0
      %1039 = vmatmul.mubr.bf16.gmra.mrb[0].mxu0 %v973
      %v1040 = vpop.f32.mrb[0].mxu0
      %v1041 = vadd.f32 0.0, %v1040
      %v1042 = vpop.f32.mrb[0].mxu0
      %v1043 = vpop.f32.mrb[0].mxu0
      %v1044 = vadd.f32 0.0, %v1043
      %v1045 = vpop.f32.mrb[0].mxu0
      %1046 = vmatprep.mubr.bf16.mxu0 0
      %1047 = vmatmul.mubr.bf16.gmra.mrb[0].mxu0 %v976
      %v1048 = vpop.f32.mrb[0].mxu0
      %v1049 = vadd.f32 0.0, %v1048
      %v1050 = vpop.f32.mrb[0].mxu0
      %v1051 = vpop.f32.mrb[0].mxu0
      %v1052 = vadd.f32 0.0, %v1051
      %v1053 = vpop.f32.mrb[0].mxu0
      %1054 = vmatprep.mubr.bf16.mxu0 0
      %1055 = vmatmul.mubr.bf16.gmra.mrb[0].mxu0 %v979
      %v1056 = vpop.f32.mrb[0].mxu0
      %v1057 = vadd.f32 0.0, %v1056
      %v1058 = vpop.f32.mrb[0].mxu0
      %v1059 = vpop.f32.mrb[0].mxu0
      %v1060 = vadd.f32 0.0, %v1059
      %v1061 = vpop.f32.mrb[0].mxu0
      %1062 = vmatprep.mubr.bf16.mxu0 0
      %1063 = vmatmul.mubr.bf16.gmra.mrb[0].mxu0 %v982
      %v1064 = vpop.f32.mrb[0].mxu0
      %v1065 = vadd.f32 0.0, %v1064
      %v1066 = vpop.f32.mrb[0].mxu0
      %v1067 = vpop.f32.mrb[0].mxu0
      %v1068 = vadd.f32 0.0, %v1067
      %v1069 = vpop.f32.mrb[0].mxu0
      %1070 = vmatprep.mubr.bf16.mxu0 0
      %1071 = vmatmul.mubr.bf16.gmra.mrb[0].mxu0 %v985
      %v1072 = vpop.f32.mrb[0].mxu0
      %v1073 = vadd.f32 0.0, %v1072
      %v1074 = vpop.f32.mrb[0].mxu0
      %v1075 = vpop.f32.mrb[0].mxu0
      %v1076 = vadd.f32 0.0, %v1075
      %v1077 = vpop.f32.mrb[0].mxu0
      %1078 = vmatprep.mubr.bf16.mxu0 0
      %1079 = vmatmul.mubr.bf16.gmra.mrb[0].mxu0 %v988
      %v1080 = vpop.f32.mrb[0].mxu0
      %v1081 = vadd.f32 0.0, %v1080
      %v1082 = vpop.f32.mrb[0].mxu0
      %v1083 = vpop.f32.mrb[0].mxu0
      %v1084 = vadd.f32 0.0, %v1083
      %v1085 = vpop.f32.mrb[0].mxu0
      %1086 = vdwg.mxu0
      %v1095 = vunpack.c.l.b16 %v901
      %v1096 = vunpack.c.l.b16 %v902
      %v1097 = vunpack.c.l.b16 %v903
      %v1098 = vunpack.c.l.b16 %v904
      %v1099 = vunpack.c.l.b16 %v905
      %v1100 = vunpack.c.l.b16 %v906
      %v1101 = vunpack.c.l.b16 %v907
      %v1102 = vunpack.c.l.b16 %v908
      %v1103 = vpack.c.b16 %v1096, %v1095
      %v1104 = vpack.c.b16 %v1098, %v1097
      %v1105 = vpack.c.b16 %v1100, %v1099
      %v1106 = vpack.c.b16 %v1102, %v1101
      %v1112 = vsel %vm788, %v893, 0
      %v1115 = vsel %vm788, %v894, 0
      %v1118 = vsel %vm788, %v895, 0
      %v1121 = vsel %vm788, %v896, 0
      %v1124 = vsel %vm788, %v897, 0
      %v1127 = vsel %vm788, %v898, 0
      %v1130 = vsel %vm788, %v899, 0
      %v1133 = vsel %vm788, %v900, 0
      %1135 = vmatprep.subr.bf16.mxu0 0
      %1136 = vmatpush1.bf16.msra.mxu0 %v1103
      %1137 = vmatprep.subr.bf16.mxu0 0
      %1138 = vmatpush1.bf16.msra.mxu0 %v1104
      %1139 = vmatprep.subr.bf16.mxu0 0
      %1140 = vmatpush1.bf16.msra.mxu0 %v1105
      %1141 = vmatprep.subr.bf16.mxu0 0
      %1142 = vmatpush1.bf16.msra.mxu0 %v1106
      %1143 = vmatprep.subr.bf16.mxu0 0
      %1144 = vmatpush1.bf16.msra.mxu0 0
      %1145 = vmatprep.subr.bf16.mxu0 0
      %1146 = vmatpush1.bf16.msra.mxu0 0
      %1147 = vmatprep.subr.bf16.mxu0 0
      %1148 = vmatpush1.bf16.msra.mxu0 0
      %1149 = vmatprep.subr.bf16.mxu0 0
      %1150 = vmatpush1.bf16.msra.mxu0 0
      %1151 = vmatprep.subr.bf16.mxu0 0
      %1152 = vmatpush1.bf16.msra.mxu0 0
      %1153 = vmatprep.subr.bf16.mxu0 0
      %1154 = vmatpush1.bf16.msra.mxu0 0
      %1155 = vmatprep.subr.bf16.mxu0 0
      %1156 = vmatpush1.bf16.msra.mxu0 0
      %1157 = vmatprep.subr.bf16.mxu0 0
      %1158 = vmatpush1.bf16.msra.mxu0 0
      %1159 = vmatprep.subr.bf16.mxu0 0
      %1160 = vmatpush1.bf16.msra.mxu0 0
      %1161 = vmatprep.subr.bf16.mxu0 0
      %1162 = vmatpush1.bf16.msra.mxu0 0
      %1163 = vmatprep.subr.bf16.mxu0 0
      %1164 = vmatpush1.bf16.msra.mxu0 0
      %1165 = vmatprep.subr.bf16.mxu0 0
      %1166 = vmatpush1.bf16.msra.mxu0 0
      %1167 = vmatprep.mubr.bf16.mxu0 0
      %1168 = vmatmul.mubr.bf16.gmra.mrb[0].mxu0 %v1112
      %v1169 = vpop.f32.mrb[0].mxu0
      %v1170 = vadd.f32 %v1025, %v1169
      %v1171 = vpop.f32.mrb[0].mxu0
      %v1172 = vpop.f32.mrb[0].mxu0
      %v1173 = vadd.f32 %v1028, %v1172
      %v1174 = vpop.f32.mrb[0].mxu0
      %1175 = vmatprep.mubr.bf16.mxu0 0
      %1176 = vmatmul.mubr.bf16.gmra.mrb[0].mxu0 %v1115
      %v1177 = vpop.f32.mrb[0].mxu0
      %v1178 = vadd.f32 %v1033, %v1177
      %v1179 = vpop.f32.mrb[0].mxu0
      %v1180 = vpop.f32.mrb[0].mxu0
      %v1181 = vadd.f32 %v1036, %v1180
      %v1182 = vpop.f32.mrb[0].mxu0
      %1183 = vmatprep.mubr.bf16.mxu0 0
      %1184 = vmatmul.mubr.bf16.gmra.mrb[0].mxu0 %v1118
      %v1185 = vpop.f32.mrb[0].mxu0
      %v1186 = vadd.f32 %v1041, %v1185
      %v1187 = vpop.f32.mrb[0].mxu0
      %v1188 = vpop.f32.mrb[0].mxu0
      %v1189 = vadd.f32 %v1044, %v1188
      %v1190 = vpop.f32.mrb[0].mxu0
      %1191 = vmatprep.mubr.bf16.mxu0 0
      %1192 = vmatmul.mubr.bf16.gmra.mrb[0].mxu0 %v1121
      %v1193 = vpop.f32.mrb[0].mxu0
      %v1194 = vadd.f32 %v1049, %v1193
      %v1195 = vpop.f32.mrb[0].mxu0
      %v1196 = vpop.f32.mrb[0].mxu0
      %v1197 = vadd.f32 %v1052, %v1196
      %v1198 = vpop.f32.mrb[0].mxu0
      %1199 = vmatprep.mubr.bf16.mxu0 0
      %1200 = vmatmul.mubr.bf16.gmra.mrb[0].mxu0 %v1124
      %v1201 = vpop.f32.mrb[0].mxu0
      %v1202 = vadd.f32 %v1057, %v1201
      %v1203 = vpop.f32.mrb[0].mxu0
      %v1204 = vpop.f32.mrb[0].mxu0
      %v1205 = vadd.f32 %v1060, %v1204
      %v1206 = vpop.f32.mrb[0].mxu0
      %1207 = vmatprep.mubr.bf16.mxu0 0
      %1208 = vmatmul.mubr.bf16.gmra.mrb[0].mxu0 %v1127
      %v1209 = vpop.f32.mrb[0].mxu0
      %v1210 = vadd.f32 %v1065, %v1209
      %v1211 = vpop.f32.mrb[0].mxu0
      %v1212 = vpop.f32.mrb[0].mxu0
      %v1213 = vadd.f32 %v1068, %v1212
      %v1214 = vpop.f32.mrb[0].mxu0
      %1215 = vmatprep.mubr.bf16.mxu0 0
      %1216 = vmatmul.mubr.bf16.gmra.mrb[0].mxu0 %v1130
      %v1217 = vpop.f32.mrb[0].mxu0
      %v1218 = vadd.f32 %v1073, %v1217
      %v1219 = vpop.f32.mrb[0].mxu0
      %v1220 = vpop.f32.mrb[0].mxu0
      %v1221 = vadd.f32 %v1076, %v1220
      %v1222 = vpop.f32.mrb[0].mxu0
      %1223 = vmatprep.mubr.bf16.mxu0 0
      %1224 = vmatmul.mubr.bf16.gmra.mrb[0].mxu0 %v1133
      %v1225 = vpop.f32.mrb[0].mxu0
      %v1226 = vadd.f32 %v1081, %v1225
      %v1227 = vpop.f32.mrb[0].mxu0
      %v1228 = vpop.f32.mrb[0].mxu0
      %v1229 = vadd.f32 %v1084, %v1228
      %v1230 = vpop.f32.mrb[0].mxu0
      %1231 = vdwg.mxu0
      %v1232 = vld [vmem:[#allocation2 + $0x2] sm:$0xff]
      %v1233 = vld [vmem:[#allocation2 + $0xa] sm:$0xff]
      %v1234 = vld [vmem:[#allocation2 + $0x32] sm:$0xff]
      %v1235 = vld [vmem:[#allocation2 + $0x3a] sm:$0xff]
      %v1236 = vld [vmem:[#allocation2 + $0x62] sm:$0xff]
      %v1237 = vld [vmem:[#allocation2 + $0x6a] sm:$0xff]
      %v1238 = vld [vmem:[#allocation2 + $0x92] sm:$0xff]
      %v1239 = vld [vmem:[#allocation2 + $0x9a] sm:$0xff]
      %v1240 = vld [vmem:[#allocation2 + $0xc2] sm:$0xff]
      %v1241 = vld [vmem:[#allocation2 + $0xca] sm:$0xff]
      %v1242 = vld [vmem:[#allocation2 + $0xf2] sm:$0xff]
      %v1243 = vld [vmem:[#allocation2 + $0xfa] sm:$0xff]
      %v1244 = vld [vmem:[#allocation2 + $0x122] sm:$0xff]
      %v1245 = vld [vmem:[#allocation2 + $0x12a] sm:$0xff]
      %v1246 = vld [vmem:[#allocation2 + $0x152] sm:$0xff]
      %v1247 = vld [vmem:[#allocation2 + $0x15a] sm:$0xff]
      %v1248 = vpack.c.bf16 %v1233, %v1232
      %v1249 = vpack.c.bf16 %v1235, %v1234
      %v1250 = vpack.c.bf16 %v1237, %v1236
      %v1251 = vpack.c.bf16 %v1239, %v1238
      %v1252 = vpack.c.bf16 %v1241, %v1240
      %v1253 = vpack.c.bf16 %v1243, %v1242
      %v1254 = vpack.c.bf16 %v1245, %v1244
      %v1255 = vpack.c.bf16 %v1247, %v1246
      %s1256 = scalar_lea.vmem %s3, 64
      %v1257 = vld [vmem:[%s1256] sm:$0xf]
      %v1258 = vld [vmem:[%s1256 + $0x4] sm:$0xf]
      %v1259 = vld [vmem:[%s1256 + $0x8] sm:$0xf]
      %v1260 = vld [vmem:[%s1256 + $0xc] sm:$0xf]
      %v1261 = vld [vmem:[%s1256 + $0x10] sm:$0xf]
      %v1262 = vld [vmem:[%s1256 + $0x14] sm:$0xf]
      %v1263 = vld [vmem:[%s1256 + $0x18] sm:$0xf]
      %v1264 = vld [vmem:[%s1256 + $0x1c] sm:$0xf]
      %v1273 = vunpack.c.l.b16 %v1257
      %v1274 = vunpack.c.l.b16 %v1258
      %v1275 = vunpack.c.l.b16 %v1259
      %v1276 = vunpack.c.l.b16 %v1260
      %v1277 = vunpack.c.l.b16 %v1261
      %v1278 = vunpack.c.l.b16 %v1262
      %v1279 = vunpack.c.l.b16 %v1263
      %v1280 = vunpack.c.l.b16 %v1264
      %v1281 = vpack.c.b16 %v1274, %v1273
      %v1282 = vpack.c.b16 %v1276, %v1275
      %v1283 = vpack.c.b16 %v1278, %v1277
      %v1284 = vpack.c.b16 %v1280, %v1279
      %v1290 = vsel %vm788, %v1248, 0
      %v1293 = vsel %vm788, %v1249, 0
      %v1296 = vsel %vm788, %v1250, 0
      %v1299 = vsel %vm788, %v1251, 0
      %v1302 = vsel %vm788, %v1252, 0
      %v1305 = vsel %vm788, %v1253, 0
      %v1308 = vsel %vm788, %v1254, 0
      %v1311 = vsel %vm788, %v1255, 0
      %1313 = vmatprep.subr.bf16.mxu0 0
      %1314 = vmatpush1.bf16.msra.mxu0 %v1281
      %1315 = vmatprep.subr.bf16.mxu0 0
      %1316 = vmatpush1.bf16.msra.mxu0 %v1282
      %1317 = vmatprep.subr.bf16.mxu0 0
      %1318 = vmatpush1.bf16.msra.mxu0 %v1283
      %1319 = vmatprep.subr.bf16.mxu0 0
      %1320 = vmatpush1.bf16.msra.mxu0 %v1284
      %1321 = vmatprep.subr.bf16.mxu0 0
      %1322 = vmatpush1.bf16.msra.mxu0 0
      %1323 = vmatprep.subr.bf16.mxu0 0
      %1324 = vmatpush1.bf16.msra.mxu0 0
      %1325 = vmatprep.subr.bf16.mxu0 0
      %1326 = vmatpush1.bf16.msra.mxu0 0
      %1327 = vmatprep.subr.bf16.mxu0 0
      %1328 = vmatpush1.bf16.msra.mxu0 0
      %1329 = vmatprep.subr.bf16.mxu0 0
      %1330 = vmatpush1.bf16.msra.mxu0 0
      %1331 = vmatprep.subr.bf16.mxu0 0
      %1332 = vmatpush1.bf16.msra.mxu0 0
      %1333 = vmatprep.subr.bf16.mxu0 0
      %1334 = vmatpush1.bf16.msra.mxu0 0
      %1335 = vmatprep.subr.bf16.mxu0 0
      %1336 = vmatpush1.bf16.msra.mxu0 0
      %1337 = vmatprep.subr.bf16.mxu0 0
      %1338 = vmatpush1.bf16.msra.mxu0 0
      %1339 = vmatprep.subr.bf16.mxu0 0
      %1340 = vmatpush1.bf16.msra.mxu0 0
      %1341 = vmatprep.subr.bf16.mxu0 0
      %1342 = vmatpush1.bf16.msra.mxu0 0
      %1343 = vmatprep.subr.bf16.mxu0 0
      %1344 = vmatpush1.bf16.msra.mxu0 0
      %1345 = vmatprep.mubr.bf16.mxu0 0
      %1346 = vmatmul.mubr.bf16.gmra.mrb[0].mxu0 %v1290
      %v1347 = vpop.f32.mrb[0].mxu0
      %v1348 = vadd.f32 0.0, %v1347
      %v1349 = vpop.f32.mrb[0].mxu0
      %v1350 = vpop.f32.mrb[0].mxu0
      %v1351 = vadd.f32 0.0, %v1350
      %v1352 = vpop.f32.mrb[0].mxu0
      %1353 = vmatprep.mubr.bf16.mxu0 0
      %1354 = vmatmul.mubr.bf16.gmra.mrb[0].mxu0 %v1293
      %v1355 = vpop.f32.mrb[0].mxu0
      %v1356 = vadd.f32 0.0, %v1355
      %v1357 = vpop.f32.mrb[0].mxu0
      %v1358 = vpop.f32.mrb[0].mxu0
      %v1359 = vadd.f32 0.0, %v1358
      %v1360 = vpop.f32.mrb[0].mxu0
      %1361 = vmatprep.mubr.bf16.mxu0 0
      %1362 = vmatmul.mubr.bf16.gmra.mrb[0].mxu0 %v1296
      %v1363 = vpop.f32.mrb[0].mxu0
      %v1364 = vadd.f32 0.0, %v1363
      %v1365 = vpop.f32.mrb[0].mxu0
      %v1366 = vpop.f32.mrb[0].mxu0
      %v1367 = vadd.f32 0.0, %v1366
      %v1368 = vpop.f32.mrb[0].mxu0
      %1369 = vmatprep.mubr.bf16.mxu0 0
      %1370 = vmatmul.mubr.bf16.gmra.mrb[0].mxu0 %v1299
      %v1371 = vpop.f32.mrb[0].mxu0
      %v1372 = vadd.f32 0.0, %v1371
      %v1373 = vpop.f32.mrb[0].mxu0
      %v1374 = vpop.f32.mrb[0].mxu0
      %v1375 = vadd.f32 0.0, %v1374
      %v1376 = vpop.f32.mrb[0].mxu0
      %1377 = vmatprep.mubr.bf16.mxu0 0
      %1378 = vmatmul.mubr.bf16.gmra.mrb[0].mxu0 %v1302
      %v1379 = vpop.f32.mrb[0].mxu0
      %v1380 = vadd.f32 0.0, %v1379
      %v1381 = vpop.f32.mrb[0].mxu0
      %v1382 = vpop.f32.mrb[0].mxu0
      %v1383 = vadd.f32 0.0, %v1382
      %v1384 = vpop.f32.mrb[0].mxu0
      %1385 = vmatprep.mubr.bf16.mxu0 0
      %1386 = vmatmul.mubr.bf16.gmra.mrb[0].mxu0 %v1305
      %v1387 = vpop.f32.mrb[0].mxu0
      %v1388 = vadd.f32 0.0, %v1387
      %v1389 = vpop.f32.mrb[0].mxu0
      %v1390 = vpop.f32.mrb[0].mxu0
      %v1391 = vadd.f32 0.0, %v1390
      %v1392 = vpop.f32.mrb[0].mxu0
      %1393 = vmatprep.mubr.bf16.mxu0 0
      %1394 = vmatmul.mubr.bf16.gmra.mrb[0].mxu0 %v1308
      %v1395 = vpop.f32.mrb[0].mxu0
      %v1396 = vadd.f32 0.0, %v1395
      %v1397 = vpop.f32.mrb[0].mxu0
      %v1398 = vpop.f32.mrb[0].mxu0
      %v1399 = vadd.f32 0.0, %v1398
      %v1400 = vpop.f32.mrb[0].mxu0
      %1401 = vmatprep.mubr.bf16.mxu0 0
      %1402 = vmatmul.mubr.bf16.gmra.mrb[0].mxu0 %v1311
      %v1403 = vpop.f32.mrb[0].mxu0
      %v1404 = vadd.f32 0.0, %v1403
      %v1405 = vpop.f32.mrb[0].mxu0
      %v1406 = vpop.f32.mrb[0].mxu0
      %v1407 = vadd.f32 0.0, %v1406
      %v1408 = vpop.f32.mrb[0].mxu0
      %1409 = vdwg.mxu0
      %v1410 = vadd.f32 %v1170, %v1348
      %v1411 = vadd.f32 %v1173, %v1351
      %v1412 = vadd.f32 %v1178, %v1356
      %v1413 = vadd.f32 %v1181, %v1359
      %v1414 = vadd.f32 %v1186, %v1364
      %v1415 = vadd.f32 %v1189, %v1367
      %v1416 = vadd.f32 %v1194, %v1372
      %v1417 = vadd.f32 %v1197, %v1375
      %v1418 = vadd.f32 %v1202, %v1380
      %v1419 = vadd.f32 %v1205, %v1383
      %v1420 = vadd.f32 %v1210, %v1388
      %v1421 = vadd.f32 %v1213, %v1391
      %v1422 = vadd.f32 %v1218, %v1396
      %v1423 = vadd.f32 %v1221, %v1399
      %v1424 = vadd.f32 %v1226, %v1404
      %v1425 = vadd.f32 %v1229, %v1407
      %v1426 = vld [vmem:[%s844] sm:$0xff]
      %v1427 = vld [vmem:[%s844 + $0x8] sm:$0xff]
      %v1428 = vld [vmem:[%s844 + $0x30] sm:$0xff]
      %v1429 = vld [vmem:[%s844 + $0x38] sm:$0xff]
      %v1430 = vld [vmem:[%s844 + $0x60] sm:$0xff]
      %v1431 = vld [vmem:[%s844 + $0x68] sm:$0xff]
      %v1432 = vld [vmem:[%s844 + $0x90] sm:$0xff]
      %v1433 = vld [vmem:[%s844 + $0x98] sm:$0xff]
      %v1434 = vld [vmem:[%s844 + $0xc0] sm:$0xff]
      %v1435 = vld [vmem:[%s844 + $0xc8] sm:$0xff]
      %v1436 = vld [vmem:[%s844 + $0xf0] sm:$0xff]
      %v1437 = vld [vmem:[%s844 + $0xf8] sm:$0xff]
      %v1438 = vld [vmem:[%s844 + $0x120] sm:$0xff]
      %v1439 = vld [vmem:[%s844 + $0x128] sm:$0xff]
      %v1440 = vld [vmem:[%s844 + $0x150] sm:$0xff]
      %v1441 = vld [vmem:[%s844 + $0x158] sm:$0xff]
      %v1442 = vpack.c.bf16 %v1427, %v1426
      %v1443 = vpack.c.bf16 %v1429, %v1428
      %v1444 = vpack.c.bf16 %v1431, %v1430
      %v1445 = vpack.c.bf16 %v1433, %v1432
      %v1446 = vpack.c.bf16 %v1435, %v1434
      %v1447 = vpack.c.bf16 %v1437, %v1436
      %v1448 = vpack.c.bf16 %v1439, %v1438
      %v1449 = vpack.c.bf16 %v1441, %v1440
      %s1450 = scalar_lea.vmem %s3, 96
      %v1451 = vld [vmem:[%s1450] sm:$0xf]
      %v1452 = vld [vmem:[%s1450 + $0x4] sm:$0xf]
      %v1453 = vld [vmem:[%s1450 + $0x8] sm:$0xf]
      %v1454 = vld [vmem:[%s1450 + $0xc] sm:$0xf]
      %v1455 = vld [vmem:[%s1450 + $0x10] sm:$0xf]
      %v1456 = vld [vmem:[%s1450 + $0x14] sm:$0xf]
      %v1457 = vld [vmem:[%s1450 + $0x18] sm:$0xf]
      %v1458 = vld [vmem:[%s1450 + $0x1c] sm:$0xf]
      %v1467 = vunpack.c.l.b16 %v1451
      %v1468 = vunpack.c.l.b16 %v1452
      %v1469 = vunpack.c.l.b16 %v1453
      %v1470 = vunpack.c.l.b16 %v1454
      %v1471 = vunpack.c.l.b16 %v1455
      %v1472 = vunpack.c.l.b16 %v1456
      %v1473 = vunpack.c.l.b16 %v1457
      %v1474 = vunpack.c.l.b16 %v1458
      %v1475 = vpack.c.b16 %v1468, %v1467
      %v1476 = vpack.c.b16 %v1470, %v1469
      %v1477 = vpack.c.b16 %v1472, %v1471
      %v1478 = vpack.c.b16 %v1474, %v1473
      %v1484 = vsel %vm788, %v1442, 0
      %v1487 = vsel %vm788, %v1443, 0
      %v1490 = vsel %vm788, %v1444, 0
      %v1493 = vsel %vm788, %v1445, 0
      %v1496 = vsel %vm788, %v1446, 0
      %v1499 = vsel %vm788, %v1447, 0
      %v1502 = vsel %vm788, %v1448, 0
      %v1505 = vsel %vm788, %v1449, 0
      %1507 = vmatprep.subr.bf16.mxu0 0
      %1508 = vmatpush1.bf16.msra.mxu0 %v1475
      %1509 = vmatprep.subr.bf16.mxu0 0
      %1510 = vmatpush1.bf16.msra.mxu0 %v1476
      %1511 = vmatprep.subr.bf16.mxu0 0
      %1512 = vmatpush1.bf16.msra.mxu0 %v1477
      %1513 = vmatprep.subr.bf16.mxu0 0
      %1514 = vmatpush1.bf16.msra.mxu0 %v1478
      %1515 = vmatprep.subr.bf16.mxu0 0
      %1516 = vmatpush1.bf16.msra.mxu0 0
      %1517 = vmatprep.subr.bf16.mxu0 0
      %1518 = vmatpush1.bf16.msra.mxu0 0
      %1519 = vmatprep.subr.bf16.mxu0 0
      %1520 = vmatpush1.bf16.msra.mxu0 0
      %1521 = vmatprep.subr.bf16.mxu0 0
      %1522 = vmatpush1.bf16.msra.mxu0 0
      %1523 = vmatprep.subr.bf16.mxu0 0
      %1524 = vmatpush1.bf16.msra.mxu0 0
      %1525 = vmatprep.subr.bf16.mxu0 0
      %1526 = vmatpush1.bf16.msra.mxu0 0
      %1527 = vmatprep.subr.bf16.mxu0 0
      %1528 = vmatpush1.bf16.msra.mxu0 0
      %1529 = vmatprep.subr.bf16.mxu0 0
      %1530 = vmatpush1.bf16.msra.mxu0 0
      %1531 = vmatprep.subr.bf16.mxu0 0
      %1532 = vmatpush1.bf16.msra.mxu0 0
      %1533 = vmatprep.subr.bf16.mxu0 0
      %1534 = vmatpush1.bf16.msra.mxu0 0
      %1535 = vmatprep.subr.bf16.mxu0 0
      %1536 = vmatpush1.bf16.msra.mxu0 0
      %1537 = vmatprep.subr.bf16.mxu0 0
      %1538 = vmatpush1.bf16.msra.mxu0 0
      %1539 = vmatprep.mubr.bf16.mxu0 0
      %1540 = vmatmul.mubr.bf16.gmra.mrb[0].mxu0 %v1484
      %v1541 = vpop.f32.mrb[0].mxu0
      %v1542 = vadd.f32 0.0, %v1541
      %v1543 = vpop.f32.mrb[0].mxu0
      %v1544 = vpop.f32.mrb[0].mxu0
      %v1545 = vadd.f32 0.0, %v1544
      %v1546 = vpop.f32.mrb[0].mxu0
      %1547 = vmatprep.mubr.bf16.mxu0 0
      %1548 = vmatmul.mubr.bf16.gmra.mrb[0].mxu0 %v1487
      %v1549 = vpop.f32.mrb[0].mxu0
      %v1550 = vadd.f32 0.0, %v1549
      %v1551 = vpop.f32.mrb[0].mxu0
      %v1552 = vpop.f32.mrb[0].mxu0
      %v1553 = vadd.f32 0.0, %v1552
      %v1554 = vpop.f32.mrb[0].mxu0
      %1555 = vmatprep.mubr.bf16.mxu0 0
      %1556 = vmatmul.mubr.bf16.gmra.mrb[0].mxu0 %v1490
      %v1557 = vpop.f32.mrb[0].mxu0
      %v1558 = vadd.f32 0.0, %v1557
      %v1559 = vpop.f32.mrb[0].mxu0
      %v1560 = vpop.f32.mrb[0].mxu0
      %v1561 = vadd.f32 0.0, %v1560
      %v1562 = vpop.f32.mrb[0].mxu0
      %1563 = vmatprep.mubr.bf16.mxu0 0
      %1564 = vmatmul.mubr.bf16.gmra.mrb[0].mxu0 %v1493
      %v1565 = vpop.f32.mrb[0].mxu0
      %v1566 = vadd.f32 0.0, %v1565
      %v1567 = vpop.f32.mrb[0].mxu0
      %v1568 = vpop.f32.mrb[0].mxu0
      %v1569 = vadd.f32 0.0, %v1568
      %v1570 = vpop.f32.mrb[0].mxu0
      %1571 = vmatprep.mubr.bf16.mxu0 0
      %1572 = vmatmul.mubr.bf16.gmra.mrb[0].mxu0 %v1496
      %v1573 = vpop.f32.mrb[0].mxu0
      %v1574 = vadd.f32 0.0, %v1573
      %v1575 = vpop.f32.mrb[0].mxu0
      %v1576 = vpop.f32.mrb[0].mxu0
      %v1577 = vadd.f32 0.0, %v1576
      %v1578 = vpop.f32.mrb[0].mxu0
      %1579 = vmatprep.mubr.bf16.mxu0 0
      %1580 = vmatmul.mubr.bf16.gmra.mrb[0].mxu0 %v1499
      %v1581 = vpop.f32.mrb[0].mxu0
      %v1582 = vadd.f32 0.0, %v1581
      %v1583 = vpop.f32.mrb[0].mxu0
      %v1584 = vpop.f32.mrb[0].mxu0
      %v1585 = vadd.f32 0.0, %v1584
      %v1586 = vpop.f32.mrb[0].mxu0
      %1587 = vmatprep.mubr.bf16.mxu0 0
      %1588 = vmatmul.mubr.bf16.gmra.mrb[0].mxu0 %v1502
      %v1589 = vpop.f32.mrb[0].mxu0
      %v1590 = vadd.f32 0.0, %v1589
      %v1591 = vpop.f32.mrb[0].mxu0
      %v1592 = vpop.f32.mrb[0].mxu0
      %v1593 = vadd.f32 0.0, %v1592
      %v1594 = vpop.f32.mrb[0].mxu0
      %1595 = vmatprep.mubr.bf16.mxu0 0
      %1596 = vmatmul.mubr.bf16.gmra.mrb[0].mxu0 %v1505
      %v1597 = vpop.f32.mrb[0].mxu0
      %v1598 = vadd.f32 0.0, %v1597
      %v1599 = vpop.f32.mrb[0].mxu0
      %v1600 = vpop.f32.mrb[0].mxu0
      %v1601 = vadd.f32 0.0, %v1600
      %v1602 = vpop.f32.mrb[0].mxu0
      %1603 = vdwg.mxu0
      %v1604 = vadd.f32 %v1410, %v1542
      %v1605 = vadd.f32 %v1411, %v1545
      %v1606 = vadd.f32 %v1412, %v1550
      %v1607 = vadd.f32 %v1413, %v1553
      %v1608 = vadd.f32 %v1414, %v1558
      %v1609 = vadd.f32 %v1415, %v1561
      %v1610 = vadd.f32 %v1416, %v1566
      %v1611 = vadd.f32 %v1417, %v1569
      %v1612 = vadd.f32 %v1418, %v1574
      %v1613 = vadd.f32 %v1419, %v1577
      %v1614 = vadd.f32 %v1420, %v1582
      %v1615 = vadd.f32 %v1421, %v1585
      %v1616 = vadd.f32 %v1422, %v1590
      %v1617 = vadd.f32 %v1423, %v1593
      %v1618 = vadd.f32 %v1424, %v1598
      %v1619 = vadd.f32 %v1425, %v1601
      %v1620 = vld [vmem:[%s844 + $0x1] sm:$0xff]
      %v1621 = vld [vmem:[%s844 + $0x9] sm:$0xff]
      %v1622 = vld [vmem:[%s844 + $0x31] sm:$0xff]
      %v1623 = vld [vmem:[%s844 + $0x39] sm:$0xff]
      %v1624 = vld [vmem:[%s844 + $0x61] sm:$0xff]
      %v1625 = vld [vmem:[%s844 + $0x69] sm:$0xff]
      %v1626 = vld [vmem:[%s844 + $0x91] sm:$0xff]
      %v1627 = vld [vmem:[%s844 + $0x99] sm:$0xff]
      %v1628 = vld [vmem:[%s844 + $0xc1] sm:$0xff]
      %v1629 = vld [vmem:[%s844 + $0xc9] sm:$0xff]
      %v1630 = vld [vmem:[%s844 + $0xf1] sm:$0xff]
      %v1631 = vld [vmem:[%s844 + $0xf9] sm:$0xff]
      %v1632 = vld [vmem:[%s844 + $0x121] sm:$0xff]
      %v1633 = vld [vmem:[%s844 + $0x129] sm:$0xff]
      %v1634 = vld [vmem:[%s844 + $0x151] sm:$0xff]
      %v1635 = vld [vmem:[%s844 + $0x159] sm:$0xff]
      %v1636 = vpack.c.bf16 %v1621, %v1620
      %v1637 = vpack.c.bf16 %v1623, %v1622
      %v1638 = vpack.c.bf16 %v1625, %v1624
      %v1639 = vpack.c.bf16 %v1627, %v1626
      %v1640 = vpack.c.bf16 %v1629, %v1628
      %v1641 = vpack.c.bf16 %v1631, %v1630
      %v1642 = vpack.c.bf16 %v1633, %v1632
      %v1643 = vpack.c.bf16 %v1635, %v1634
      %s1644 = scalar_lea.vmem %s3, 128
      %v1645 = vld [vmem:[%s1644] sm:$0xf]
      %v1646 = vld [vmem:[%s1644 + $0x4] sm:$0xf]
      %v1647 = vld [vmem:[%s1644 + $0x8] sm:$0xf]
      %v1648 = vld [vmem:[%s1644 + $0xc] sm:$0xf]
      %v1649 = vld [vmem:[%s1644 + $0x10] sm:$0xf]
      %v1650 = vld [vmem:[%s1644 + $0x14] sm:$0xf]
      %v1651 = vld [vmem:[%s1644 + $0x18] sm:$0xf]
      %v1652 = vld [vmem:[%s1644 + $0x1c] sm:$0xf]
      %v1661 = vunpack.c.l.b16 %v1645
      %v1662 = vunpack.c.l.b16 %v1646
      %v1663 = vunpack.c.l.b16 %v1647
      %v1664 = vunpack.c.l.b16 %v1648
      %v1665 = vunpack.c.l.b16 %v1649
      %v1666 = vunpack.c.l.b16 %v1650
      %v1667 = vunpack.c.l.b16 %v1651
      %v1668 = vunpack.c.l.b16 %v1652
      %v1669 = vpack.c.b16 %v1662, %v1661
      %v1670 = vpack.c.b16 %v1664, %v1663
      %v1671 = vpack.c.b16 %v1666, %v1665
      %v1672 = vpack.c.b16 %v1668, %v1667
      %v1678 = vsel %vm788, %v1636, 0
      %v1681 = vsel %vm788, %v1637, 0
      %v1684 = vsel %vm788, %v1638, 0
      %v1687 = vsel %vm788, %v1639, 0
      %v1690 = vsel %vm788, %v1640, 0
      %v1693 = vsel %vm788, %v1641, 0
      %v1696 = vsel %vm788, %v1642, 0
      %v1699 = vsel %vm788, %v1643, 0
      %1701 = vmatprep.subr.bf16.mxu0 0
      %1702 = vmatpush1.bf16.msra.mxu0 %v1669
      %1703 = vmatprep.subr.bf16.mxu0 0
      %1704 = vmatpush1.bf16.msra.mxu0 %v1670
      %1705 = vmatprep.subr.bf16.mxu0 0
      %1706 = vmatpush1.bf16.msra.mxu0 %v1671
      %1707 = vmatprep.subr.bf16.mxu0 0
      %1708 = vmatpush1.bf16.msra.mxu0 %v1672
      %1709 = vmatprep.subr.bf16.mxu0 0
      %1710 = vmatpush1.bf16.msra.mxu0 0
      %1711 = vmatprep.subr.bf16.mxu0 0
      %1712 = vmatpush1.bf16.msra.mxu0 0
      %1713 = vmatprep.subr.bf16.mxu0 0
      %1714 = vmatpush1.bf16.msra.mxu0 0
      %1715 = vmatprep.subr.bf16.mxu0 0
      %1716 = vmatpush1.bf16.msra.mxu0 0
      %1717 = vmatprep.subr.bf16.mxu0 0
      %1718 = vmatpush1.bf16.msra.mxu0 0
      %1719 = vmatprep.subr.bf16.mxu0 0
      %1720 = vmatpush1.bf16.msra.mxu0 0
      %1721 = vmatprep.subr.bf16.mxu0 0
      %1722 = vmatpush1.bf16.msra.mxu0 0
      %1723 = vmatprep.subr.bf16.mxu0 0
      %1724 = vmatpush1.bf16.msra.mxu0 0
      %1725 = vmatprep.subr.bf16.mxu0 0
      %1726 = vmatpush1.bf16.msra.mxu0 0
      %1727 = vmatprep.subr.bf16.mxu0 0
      %1728 = vmatpush1.bf16.msra.mxu0 0
      %1729 = vmatprep.subr.bf16.mxu0 0
      %1730 = vmatpush1.bf16.msra.mxu0 0
      %1731 = vmatprep.subr.bf16.mxu0 0
      %1732 = vmatpush1.bf16.msra.mxu0 0
      %1733 = vmatprep.mubr.bf16.mxu0 0
      %1734 = vmatmul.mubr.bf16.gmra.mrb[0].mxu0 %v1678
      %v1735 = vpop.f32.mrb[0].mxu0
      %v1736 = vadd.f32 0.0, %v1735
      %v1737 = vpop.f32.mrb[0].mxu0
      %v1738 = vpop.f32.mrb[0].mxu0
      %v1739 = vadd.f32 0.0, %v1738
      %v1740 = vpop.f32.mrb[0].mxu0
      %1741 = vmatprep.mubr.bf16.mxu0 0
      %1742 = vmatmul.mubr.bf16.gmra.mrb[0].mxu0 %v1681
      %v1743 = vpop.f32.mrb[0].mxu0
      %v1744 = vadd.f32 0.0, %v1743
      %v1745 = vpop.f32.mrb[0].mxu0
      %v1746 = vpop.f32.mrb[0].mxu0
      %v1747 = vadd.f32 0.0, %v1746
      %v1748 = vpop.f32.mrb[0].mxu0
      %1749 = vmatprep.mubr.bf16.mxu0 0
      %1750 = vmatmul.mubr.bf16.gmra.mrb[0].mxu0 %v1684
      %v1751 = vpop.f32.mrb[0].mxu0
      %v1752 = vadd.f32 0.0, %v1751
      %v1753 = vpop.f32.mrb[0].mxu0
      %v1754 = vpop.f32.mrb[0].mxu0
      %v1755 = vadd.f32 0.0, %v1754
      %v1756 = vpop.f32.mrb[0].mxu0
      %1757 = vmatprep.mubr.bf16.mxu0 0
      %1758 = vmatmul.mubr.bf16.gmra.mrb[0].mxu0 %v1687
      %v1759 = vpop.f32.mrb[0].mxu0
      %v1760 = vadd.f32 0.0, %v1759
      %v1761 = vpop.f32.mrb[0].mxu0
      %v1762 = vpop.f32.mrb[0].mxu0
      %v1763 = vadd.f32 0.0, %v1762
      %v1764 = vpop.f32.mrb[0].mxu0
      %1765 = vmatprep.mubr.bf16.mxu0 0
      %1766 = vmatmul.mubr.bf16.gmra.mrb[0].mxu0 %v1690
      %v1767 = vpop.f32.mrb[0].mxu0
      %v1768 = vadd.f32 0.0, %v1767
      %v1769 = vpop.f32.mrb[0].mxu0
      %v1770 = vpop.f32.mrb[0].mxu0
      %v1771 = vadd.f32 0.0, %v1770
      %v1772 = vpop.f32.mrb[0].mxu0
      %1773 = vmatprep.mubr.bf16.mxu0 0
      %1774 = vmatmul.mubr.bf16.gmra.mrb[0].mxu0 %v1693
      %v1775 = vpop.f32.mrb[0].mxu0
      %v1776 = vadd.f32 0.0, %v1775
      %v1777 = vpop.f32.mrb[0].mxu0
      %v1778 = vpop.f32.mrb[0].mxu0
      %v1779 = vadd.f32 0.0, %v1778
      %v1780 = vpop.f32.mrb[0].mxu0
      %1781 = vmatprep.mubr.bf16.mxu0 0
      %1782 = vmatmul.mubr.bf16.gmra.mrb[0].mxu0 %v1696
      %v1783 = vpop.f32.mrb[0].mxu0
      %v1784 = vadd.f32 0.0, %v1783
      %v1785 = vpop.f32.mrb[0].mxu0
      %v1786 = vpop.f32.mrb[0].mxu0
      %v1787 = vadd.f32 0.0, %v1786
      %v1788 = vpop.f32.mrb[0].mxu0
      %1789 = vmatprep.mubr.bf16.mxu0 0
      %1790 = vmatmul.mubr.bf16.gmra.mrb[0].mxu0 %v1699
      %v1791 = vpop.f32.mrb[0].mxu0
      %v1792 = vadd.f32 0.0, %v1791
      %v1793 = vpop.f32.mrb[0].mxu0
      %v1794 = vpop.f32.mrb[0].mxu0
      %v1795 = vadd.f32 0.0, %v1794
      %v1796 = vpop.f32.mrb[0].mxu0
      %1797 = vdwg.mxu0
      %v1798 = vadd.f32 %v1604, %v1736
      %v1799 = vadd.f32 %v1605, %v1739
      %v1800 = vadd.f32 %v1606, %v1744
      %v1801 = vadd.f32 %v1607, %v1747
      %v1802 = vadd.f32 %v1608, %v1752
      %v1803 = vadd.f32 %v1609, %v1755
      %v1804 = vadd.f32 %v1610, %v1760
      %v1805 = vadd.f32 %v1611, %v1763
      %v1806 = vadd.f32 %v1612, %v1768
      %v1807 = vadd.f32 %v1613, %v1771
      %v1808 = vadd.f32 %v1614, %v1776
      %v1809 = vadd.f32 %v1615, %v1779
      %v1810 = vadd.f32 %v1616, %v1784
      %v1811 = vadd.f32 %v1617, %v1787
      %v1812 = vadd.f32 %v1618, %v1792
      %v1813 = vadd.f32 %v1619, %v1795
      %v1814 = vld [vmem:[%s844 + $0x2] sm:$0xff]
      %v1815 = vld [vmem:[%s844 + $0xa] sm:$0xff]
      %v1816 = vld [vmem:[%s844 + $0x32] sm:$0xff]
      %v1817 = vld [vmem:[%s844 + $0x3a] sm:$0xff]
      %v1818 = vld [vmem:[%s844 + $0x62] sm:$0xff]
      %v1819 = vld [vmem:[%s844 + $0x6a] sm:$0xff]
      %v1820 = vld [vmem:[%s844 + $0x92] sm:$0xff]
      %v1821 = vld [vmem:[%s844 + $0x9a] sm:$0xff]
      %v1822 = vld [vmem:[%s844 + $0xc2] sm:$0xff]
      %v1823 = vld [vmem:[%s844 + $0xca] sm:$0xff]
      %v1824 = vld [vmem:[%s844 + $0xf2] sm:$0xff]
      %v1825 = vld [vmem:[%s844 + $0xfa] sm:$0xff]
      %v1826 = vld [vmem:[%s844 + $0x122] sm:$0xff]
      %v1827 = vld [vmem:[%s844 + $0x12a] sm:$0xff]
      %v1828 = vld [vmem:[%s844 + $0x152] sm:$0xff]
      %v1829 = vld [vmem:[%s844 + $0x15a] sm:$0xff]
      %v1830 = vpack.c.bf16 %v1815, %v1814
      %v1831 = vpack.c.bf16 %v1817, %v1816
      %v1832 = vpack.c.bf16 %v1819, %v1818
      %v1833 = vpack.c.bf16 %v1821, %v1820
      %v1834 = vpack.c.bf16 %v1823, %v1822
      %v1835 = vpack.c.bf16 %v1825, %v1824
      %v1836 = vpack.c.bf16 %v1827, %v1826
      %v1837 = vpack.c.bf16 %v1829, %v1828
      %s1838 = scalar_lea.vmem %s3, 160
      %v1839 = vld [vmem:[%s1838] sm:$0xf]
      %v1840 = vld [vmem:[%s1838 + $0x4] sm:$0xf]
      %v1841 = vld [vmem:[%s1838 + $0x8] sm:$0xf]
      %v1842 = vld [vmem:[%s1838 + $0xc] sm:$0xf]
      %v1843 = vld [vmem:[%s1838 + $0x10] sm:$0xf]
      %v1844 = vld [vmem:[%s1838 + $0x14] sm:$0xf]
      %v1845 = vld [vmem:[%s1838 + $0x18] sm:$0xf]
      %v1846 = vld [vmem:[%s1838 + $0x1c] sm:$0xf]
      %v1855 = vunpack.c.l.b16 %v1839
      %v1856 = vunpack.c.l.b16 %v1840
      %v1857 = vunpack.c.l.b16 %v1841
      %v1858 = vunpack.c.l.b16 %v1842
      %v1859 = vunpack.c.l.b16 %v1843
      %v1860 = vunpack.c.l.b16 %v1844
      %v1861 = vunpack.c.l.b16 %v1845
      %v1862 = vunpack.c.l.b16 %v1846
      %v1863 = vpack.c.b16 %v1856, %v1855
      %v1864 = vpack.c.b16 %v1858, %v1857
      %v1865 = vpack.c.b16 %v1860, %v1859
      %v1866 = vpack.c.b16 %v1862, %v1861
      %v1872 = vsel %vm788, %v1830, 0
      %v1875 = vsel %vm788, %v1831, 0
      %v1878 = vsel %vm788, %v1832, 0
      %v1881 = vsel %vm788, %v1833, 0
      %v1884 = vsel %vm788, %v1834, 0
      %v1887 = vsel %vm788, %v1835, 0
      %v1890 = vsel %vm788, %v1836, 0
      %v1893 = vsel %vm788, %v1837, 0
      %1895 = vmatprep.subr.bf16.mxu0 0
      %1896 = vmatpush1.bf16.msra.mxu0 %v1863
      %1897 = vmatprep.subr.bf16.mxu0 0
      %1898 = vmatpush1.bf16.msra.mxu0 %v1864
      %1899 = vmatprep.subr.bf16.mxu0 0
      %1900 = vmatpush1.bf16.msra.mxu0 %v1865
      %1901 = vmatprep.subr.bf16.mxu0 0
      %1902 = vmatpush1.bf16.msra.mxu0 %v1866
      %1903 = vmatprep.subr.bf16.mxu0 0
      %1904 = vmatpush1.bf16.msra.mxu0 0
      %1905 = vmatprep.subr.bf16.mxu0 0
      %1906 = vmatpush1.bf16.msra.mxu0 0
      %1907 = vmatprep.subr.bf16.mxu0 0
      %1908 = vmatpush1.bf16.msra.mxu0 0
      %1909 = vmatprep.subr.bf16.mxu0 0
      %1910 = vmatpush1.bf16.msra.mxu0 0
      %1911 = vmatprep.subr.bf16.mxu0 0
      %1912 = vmatpush1.bf16.msra.mxu0 0
      %1913 = vmatprep.subr.bf16.mxu0 0
      %1914 = vmatpush1.bf16.msra.mxu0 0
      %1915 = vmatprep.subr.bf16.mxu0 0
      %1916 = vmatpush1.bf16.msra.mxu0 0
      %1917 = vmatprep.subr.bf16.mxu0 0
      %1918 = vmatpush1.bf16.msra.mxu0 0
      %1919 = vmatprep.subr.bf16.mxu0 0
      %1920 = vmatpush1.bf16.msra.mxu0 0
      %1921 = vmatprep.subr.bf16.mxu0 0
      %1922 = vmatpush1.bf16.msra.mxu0 0
      %1923 = vmatprep.subr.bf16.mxu0 0
      %1924 = vmatpush1.bf16.msra.mxu0 0
      %1925 = vmatprep.subr.bf16.mxu0 0
      %1926 = vmatpush1.bf16.msra.mxu0 0
      %1927 = vmatprep.mubr.bf16.mxu0 0
      %1928 = vmatmul.mubr.bf16.gmra.mrb[0].mxu0 %v1872
      %v1929 = vpop.f32.mrb[0].mxu0
      %v1930 = vadd.f32 0.0, %v1929
      %v1931 = vpop.f32.mrb[0].mxu0
      %v1932 = vpop.f32.mrb[0].mxu0
      %v1933 = vadd.f32 0.0, %v1932
      %v1934 = vpop.f32.mrb[0].mxu0
      %1935 = vmatprep.mubr.bf16.mxu0 0
      %1936 = vmatmul.mubr.bf16.gmra.mrb[0].mxu0 %v1875
      %v1937 = vpop.f32.mrb[0].mxu0
      %v1938 = vadd.f32 0.0, %v1937
      %v1939 = vpop.f32.mrb[0].mxu0
      %v1940 = vpop.f32.mrb[0].mxu0
      %v1941 = vadd.f32 0.0, %v1940
      %v1942 = vpop.f32.mrb[0].mxu0
      %1943 = vmatprep.mubr.bf16.mxu0 0
      %1944 = vmatmul.mubr.bf16.gmra.mrb[0].mxu0 %v1878
      %v1945 = vpop.f32.mrb[0].mxu0
      %v1946 = vadd.f32 0.0, %v1945
      %v1947 = vpop.f32.mrb[0].mxu0
      %v1948 = vpop.f32.mrb[0].mxu0
      %v1949 = vadd.f32 0.0, %v1948
      %v1950 = vpop.f32.mrb[0].mxu0
      %1951 = vmatprep.mubr.bf16.mxu0 0
      %1952 = vmatmul.mubr.bf16.gmra.mrb[0].mxu0 %v1881
      %v1953 = vpop.f32.mrb[0].mxu0
      %v1954 = vadd.f32 0.0, %v1953
      %v1955 = vpop.f32.mrb[0].mxu0
      %v1956 = vpop.f32.mrb[0].mxu0
      %v1957 = vadd.f32 0.0, %v1956
      %v1958 = vpop.f32.mrb[0].mxu0
      %1959 = vmatprep.mubr.bf16.mxu0 0
      %1960 = vmatmul.mubr.bf16.gmra.mrb[0].mxu0 %v1884
      %v1961 = vpop.f32.mrb[0].mxu0
      %v1962 = vadd.f32 0.0, %v1961
      %v1963 = vpop.f32.mrb[0].mxu0
      %v1964 = vpop.f32.mrb[0].mxu0
      %v1965 = vadd.f32 0.0, %v1964
      %v1966 = vpop.f32.mrb[0].mxu0
      %1967 = vmatprep.mubr.bf16.mxu0 0
      %1968 = vmatmul.mubr.bf16.gmra.mrb[0].mxu0 %v1887
      %v1969 = vpop.f32.mrb[0].mxu0
      %v1970 = vadd.f32 0.0, %v1969
      %v1971 = vpop.f32.mrb[0].mxu0
      %v1972 = vpop.f32.mrb[0].mxu0
      %v1973 = vadd.f32 0.0, %v1972
      %v1974 = vpop.f32.mrb[0].mxu0
      %1975 = vmatprep.mubr.bf16.mxu0 0
      %1976 = vmatmul.mubr.bf16.gmra.mrb[0].mxu0 %v1890
      %v1977 = vpop.f32.mrb[0].mxu0
      %v1978 = vadd.f32 0.0, %v1977
      %v1979 = vpop.f32.mrb[0].mxu0
      %v1980 = vpop.f32.mrb[0].mxu0
      %v1981 = vadd.f32 0.0, %v1980
      %v1982 = vpop.f32.mrb[0].mxu0
      %1983 = vmatprep.mubr.bf16.mxu0 0
      %1984 = vmatmul.mubr.bf16.gmra.mrb[0].mxu0 %v1893
      %v1985 = vpop.f32.mrb[0].mxu0
      %v1986 = vadd.f32 0.0, %v1985
      %v1987 = vpop.f32.mrb[0].mxu0
      %v1988 = vpop.f32.mrb[0].mxu0
      %v1989 = vadd.f32 0.0, %v1988
      %v1990 = vpop.f32.mrb[0].mxu0
      %1991 = vdwg.mxu0
      %v1992 = vadd.f32 %v1798, %v1930
      %v1993 = vadd.f32 %v1799, %v1933
      %v1994 = vadd.f32 %v1800, %v1938
      %v1995 = vadd.f32 %v1801, %v1941
      %v1996 = vadd.f32 %v1802, %v1946
      %v1997 = vadd.f32 %v1803, %v1949
      %v1998 = vadd.f32 %v1804, %v1954
      %v1999 = vadd.f32 %v1805, %v1957
      %v2000 = vadd.f32 %v1806, %v1962
      %v2001 = vadd.f32 %v1807, %v1965
      %v2002 = vadd.f32 %v1808, %v1970
      %v2003 = vadd.f32 %v1809, %v1973
      %v2004 = vadd.f32 %v1810, %v1978
      %v2005 = vadd.f32 %v1811, %v1981
      %v2006 = vadd.f32 %v1812, %v1986
      %v2007 = vadd.f32 %v1813, %v1989
      %s2008 = scalar_lea.vmem [#allocation2], 48
      %v2009 = vld [vmem:[%s2008] sm:$0xff]
      %v2010 = vld [vmem:[%s2008 + $0x8] sm:$0xff]
      %v2011 = vld [vmem:[%s2008 + $0x30] sm:$0xff]
      %v2012 = vld [vmem:[%s2008 + $0x38] sm:$0xff]
      %v2013 = vld [vmem:[%s2008 + $0x60] sm:$0xff]
      %v2014 = vld [vmem:[%s2008 + $0x68] sm:$0xff]
      %v2015 = vld [vmem:[%s2008 + $0x90] sm:$0xff]
      %v2016 = vld [vmem:[%s2008 + $0x98] sm:$0xff]
      %v2017 = vld [vmem:[%s2008 + $0xc0] sm:$0xff]
      %v2018 = vld [vmem:[%s2008 + $0xc8] sm:$0xff]
      %v2019 = vld [vmem:[%s2008 + $0xf0] sm:$0xff]
      %v2020 = vld [vmem:[%s2008 + $0xf8] sm:$0xff]
      %v2021 = vld [vmem:[%s2008 + $0x120] sm:$0xff]
      %v2022 = vld [vmem:[%s2008 + $0x128] sm:$0xff]
      %v2023 = vld [vmem:[%s2008 + $0x150] sm:$0xff]
      %v2024 = vld [vmem:[%s2008 + $0x158] sm:$0xff]
      %v2025 = vpack.c.bf16 %v2010, %v2009
      %v2026 = vpack.c.bf16 %v2012, %v2011
      %v2027 = vpack.c.bf16 %v2014, %v2013
      %v2028 = vpack.c.bf16 %v2016, %v2015
      %v2029 = vpack.c.bf16 %v2018, %v2017
      %v2030 = vpack.c.bf16 %v2020, %v2019
      %v2031 = vpack.c.bf16 %v2022, %v2021
      %v2032 = vpack.c.bf16 %v2024, %v2023
      %s2033 = scalar_lea.vmem %s3, 192
      %v2034 = vld [vmem:[%s2033] sm:$0xf]
      %v2035 = vld [vmem:[%s2033 + $0x4] sm:$0xf]
      %v2036 = vld [vmem:[%s2033 + $0x8] sm:$0xf]
      %v2037 = vld [vmem:[%s2033 + $0xc] sm:$0xf]
      %v2038 = vld [vmem:[%s2033 + $0x10] sm:$0xf]
      %v2039 = vld [vmem:[%s2033 + $0x14] sm:$0xf]
      %v2040 = vld [vmem:[%s2033 + $0x18] sm:$0xf]
      %v2041 = vld [vmem:[%s2033 + $0x1c] sm:$0xf]
      %v2050 = vunpack.c.l.b16 %v2034
      %v2051 = vunpack.c.l.b16 %v2035
      %v2052 = vunpack.c.l.b16 %v2036
      %v2053 = vunpack.c.l.b16 %v2037
      %v2054 = vunpack.c.l.b16 %v2038
      %v2055 = vunpack.c.l.b16 %v2039
      %v2056 = vunpack.c.l.b16 %v2040
      %v2057 = vunpack.c.l.b16 %v2041
      %v2058 = vpack.c.b16 %v2051, %v2050
      %v2059 = vpack.c.b16 %v2053, %v2052
      %v2060 = vpack.c.b16 %v2055, %v2054
      %v2061 = vpack.c.b16 %v2057, %v2056
      %v2067 = vsel %vm788, %v2025, 0
      %v2070 = vsel %vm788, %v2026, 0
      %v2073 = vsel %vm788, %v2027, 0
      %v2076 = vsel %vm788, %v2028, 0
      %v2079 = vsel %vm788, %v2029, 0
      %v2082 = vsel %vm788, %v2030, 0
      %v2085 = vsel %vm788, %v2031, 0
      %v2088 = vsel %vm788, %v2032, 0
      %2090 = vmatprep.subr.bf16.mxu0 0
      %2091 = vmatpush1.bf16.msra.mxu0 %v2058
      %2092 = vmatprep.subr.bf16.mxu0 0
      %2093 = vmatpush1.bf16.msra.mxu0 %v2059
      %2094 = vmatprep.subr.bf16.mxu0 0
      %2095 = vmatpush1.bf16.msra.mxu0 %v2060
      %2096 = vmatprep.subr.bf16.mxu0 0
      %2097 = vmatpush1.bf16.msra.mxu0 %v2061
      %2098 = vmatprep.subr.bf16.mxu0 0
      %2099 = vmatpush1.bf16.msra.mxu0 0
      %2100 = vmatprep.subr.bf16.mxu0 0
      %2101 = vmatpush1.bf16.msra.mxu0 0
      %2102 = vmatprep.subr.bf16.mxu0 0
      %2103 = vmatpush1.bf16.msra.mxu0 0
      %2104 = vmatprep.subr.bf16.mxu0 0
      %2105 = vmatpush1.bf16.msra.mxu0 0
      %2106 = vmatprep.subr.bf16.mxu0 0
      %2107 = vmatpush1.bf16.msra.mxu0 0
      %2108 = vmatprep.subr.bf16.mxu0 0
      %2109 = vmatpush1.bf16.msra.mxu0 0
      %2110 = vmatprep.subr.bf16.mxu0 0
      %2111 = vmatpush1.bf16.msra.mxu0 0
      %2112 = vmatprep.subr.bf16.mxu0 0
      %2113 = vmatpush1.bf16.msra.mxu0 0
      %2114 = vmatprep.subr.bf16.mxu0 0
      %2115 = vmatpush1.bf16.msra.mxu0 0
      %2116 = vmatprep.subr.bf16.mxu0 0
      %2117 = vmatpush1.bf16.msra.mxu0 0
      %2118 = vmatprep.subr.bf16.mxu0 0
      %2119 = vmatpush1.bf16.msra.mxu0 0
      %2120 = vmatprep.subr.bf16.mxu0 0
      %2121 = vmatpush1.bf16.msra.mxu0 0
      %2122 = vmatprep.mubr.bf16.mxu0 0
      %2123 = vmatmul.mubr.bf16.gmra.mrb[0].mxu0 %v2067
      %v2124 = vpop.f32.mrb[0].mxu0
      %v2125 = vadd.f32 0.0, %v2124
      %v2126 = vpop.f32.mrb[0].mxu0
      %v2127 = vpop.f32.mrb[0].mxu0
      %v2128 = vadd.f32 0.0, %v2127
      %v2129 = vpop.f32.mrb[0].mxu0
      %2130 = vmatprep.mubr.bf16.mxu0 0
      %2131 = vmatmul.mubr.bf16.gmra.mrb[0].mxu0 %v2070
      %v2132 = vpop.f32.mrb[0].mxu0
      %v2133 = vadd.f32 0.0, %v2132
      %v2134 = vpop.f32.mrb[0].mxu0
      %v2135 = vpop.f32.mrb[0].mxu0
      %v2136 = vadd.f32 0.0, %v2135
      %v2137 = vpop.f32.mrb[0].mxu0
      %2138 = vmatprep.mubr.bf16.mxu0 0
      %2139 = vmatmul.mubr.bf16.gmra.mrb[0].mxu0 %v2073
      %v2140 = vpop.f32.mrb[0].mxu0
      %v2141 = vadd.f32 0.0, %v2140
      %v2142 = vpop.f32.mrb[0].mxu0
      %v2143 = vpop.f32.mrb[0].mxu0
      %v2144 = vadd.f32 0.0, %v2143
      %v2145 = vpop.f32.mrb[0].mxu0
      %2146 = vmatprep.mubr.bf16.mxu0 0
      %2147 = vmatmul.mubr.bf16.gmra.mrb[0].mxu0 %v2076
      %v2148 = vpop.f32.mrb[0].mxu0
      %v2149 = vadd.f32 0.0, %v2148
      %v2150 = vpop.f32.mrb[0].mxu0
      %v2151 = vpop.f32.mrb[0].mxu0
      %v2152 = vadd.f32 0.0, %v2151
      %v2153 = vpop.f32.mrb[0].mxu0
      %2154 = vmatprep.mubr.bf16.mxu0 0
      %2155 = vmatmul.mubr.bf16.gmra.mrb[0].mxu0 %v2079
      %v2156 = vpop.f32.mrb[0].mxu0
      %v2157 = vadd.f32 0.0, %v2156
      %v2158 = vpop.f32.mrb[0].mxu0
      %v2159 = vpop.f32.mrb[0].mxu0
      %v2160 = vadd.f32 0.0, %v2159
      %v2161 = vpop.f32.mrb[0].mxu0
      %2162 = vmatprep.mubr.bf16.mxu0 0
      %2163 = vmatmul.mubr.bf16.gmra.mrb[0].mxu0 %v2082
      %v2164 = vpop.f32.mrb[0].mxu0
      %v2165 = vadd.f32 0.0, %v2164
      %v2166 = vpop.f32.mrb[0].mxu0
      %v2167 = vpop.f32.mrb[0].mxu0
      %v2168 = vadd.f32 0.0, %v2167
      %v2169 = vpop.f32.mrb[0].mxu0
      %2170 = vmatprep.mubr.bf16.mxu0 0
      %2171 = vmatmul.mubr.bf16.gmra.mrb[0].mxu0 %v2085
      %v2172 = vpop.f32.mrb[0].mxu0
      %v2173 = vadd.f32 0.0, %v2172
      %v2174 = vpop.f32.mrb[0].mxu0
      %v2175 = vpop.f32.mrb[0].mxu0
      %v2176 = vadd.f32 0.0, %v2175
      %v2177 = vpop.f32.mrb[0].mxu0
      %2178 = vmatprep.mubr.bf16.mxu0 0
      %2179 = vmatmul.mubr.bf16.gmra.mrb[0].mxu0 %v2088
      %v2180 = vpop.f32.mrb[0].mxu0
      %v2181 = vadd.f32 0.0, %v2180
      %v2182 = vpop.f32.mrb[0].mxu0
      %v2183 = vpop.f32.mrb[0].mxu0
      %v2184 = vadd.f32 0.0, %v2183
      %v2185 = vpop.f32.mrb[0].mxu0
      %2186 = vdwg.mxu0
      %v2187 = vadd.f32 %v1992, %v2125
      %v2188 = vadd.f32 %v1993, %v2128
      %v2189 = vadd.f32 %v1994, %v2133
      %v2190 = vadd.f32 %v1995, %v2136
      %v2191 = vadd.f32 %v1996, %v2141
      %v2192 = vadd.f32 %v1997, %v2144
      %v2193 = vadd.f32 %v1998, %v2149
      %v2194 = vadd.f32 %v1999, %v2152
      %v2195 = vadd.f32 %v2000, %v2157
      %v2196 = vadd.f32 %v2001, %v2160
      %v2197 = vadd.f32 %v2002, %v2165
      %v2198 = vadd.f32 %v2003, %v2168
      %v2199 = vadd.f32 %v2004, %v2173
      %v2200 = vadd.f32 %v2005, %v2176
      %v2201 = vadd.f32 %v2006, %v2181
      %v2202 = vadd.f32 %v2007, %v2184
      %v2203 = vld [vmem:[%s2008 + $0x1] sm:$0xff]
      %v2204 = vld [vmem:[%s2008 + $0x9] sm:$0xff]
      %v2205 = vld [vmem:[%s2008 + $0x31] sm:$0xff]
      %v2206 = vld [vmem:[%s2008 + $0x39] sm:$0xff]
      %v2207 = vld [vmem:[%s2008 + $0x61] sm:$0xff]
      %v2208 = vld [vmem:[%s2008 + $0x69] sm:$0xff]
      %v2209 = vld [vmem:[%s2008 + $0x91] sm:$0xff]
      %v2210 = vld [vmem:[%s2008 + $0x99] sm:$0xff]
      %v2211 = vld [vmem:[%s2008 + $0xc1] sm:$0xff]
      %v2212 = vld [vmem:[%s2008 + $0xc9] sm:$0xff]
      %v2213 = vld [vmem:[%s2008 + $0xf1] sm:$0xff]
      %v2214 = vld [vmem:[%s2008 + $0xf9] sm:$0xff]
      %v2215 = vld [vmem:[%s2008 + $0x121] sm:$0xff]
      %v2216 = vld [vmem:[%s2008 + $0x129] sm:$0xff]
      %v2217 = vld [vmem:[%s2008 + $0x151] sm:$0xff]
      %v2218 = vld [vmem:[%s2008 + $0x159] sm:$0xff]
      %v2219 = vpack.c.bf16 %v2204, %v2203
      %v2220 = vpack.c.bf16 %v2206, %v2205
      %v2221 = vpack.c.bf16 %v2208, %v2207
      %v2222 = vpack.c.bf16 %v2210, %v2209
      %v2223 = vpack.c.bf16 %v2212, %v2211
      %v2224 = vpack.c.bf16 %v2214, %v2213
      %v2225 = vpack.c.bf16 %v2216, %v2215
      %v2226 = vpack.c.bf16 %v2218, %v2217
      %s2227 = scalar_lea.vmem %s3, 224
      %v2228 = vld [vmem:[%s2227] sm:$0xf]
      %v2229 = vld [vmem:[%s2227 + $0x4] sm:$0xf]
      %v2230 = vld [vmem:[%s2227 + $0x8] sm:$0xf]
      %v2231 = vld [vmem:[%s2227 + $0xc] sm:$0xf]
      %v2232 = vld [vmem:[%s2227 + $0x10] sm:$0xf]
      %v2233 = vld [vmem:[%s2227 + $0x14] sm:$0xf]
      %v2234 = vld [vmem:[%s2227 + $0x18] sm:$0xf]
      %v2235 = vld [vmem:[%s2227 + $0x1c] sm:$0xf]
      %v2244 = vunpack.c.l.b16 %v2228
      %v2245 = vunpack.c.l.b16 %v2229
      %v2246 = vunpack.c.l.b16 %v2230
      %v2247 = vunpack.c.l.b16 %v2231
      %v2248 = vunpack.c.l.b16 %v2232
      %v2249 = vunpack.c.l.b16 %v2233
      %v2250 = vunpack.c.l.b16 %v2234
      %v2251 = vunpack.c.l.b16 %v2235
      %v2252 = vpack.c.b16 %v2245, %v2244
      %v2253 = vpack.c.b16 %v2247, %v2246
      %v2254 = vpack.c.b16 %v2249, %v2248
      %v2255 = vpack.c.b16 %v2251, %v2250
      %v2261 = vsel %vm788, %v2219, 0
      %v2264 = vsel %vm788, %v2220, 0
      %v2267 = vsel %vm788, %v2221, 0
      %v2270 = vsel %vm788, %v2222, 0
      %v2273 = vsel %vm788, %v2223, 0
      %v2276 = vsel %vm788, %v2224, 0
      %v2279 = vsel %vm788, %v2225, 0
      %v2282 = vsel %vm788, %v2226, 0
      %2284 = vmatprep.subr.bf16.mxu0 0
      %2285 = vmatpush1.bf16.msra.mxu0 %v2252
      %2286 = vmatprep.subr.bf16.mxu0 0
      %2287 = vmatpush1.bf16.msra.mxu0 %v2253
      %2288 = vmatprep.subr.bf16.mxu0 0
      %2289 = vmatpush1.bf16.msra.mxu0 %v2254
      %2290 = vmatprep.subr.bf16.mxu0 0
      %2291 = vmatpush1.bf16.msra.mxu0 %v2255
      %2292 = vmatprep.subr.bf16.mxu0 0
      %2293 = vmatpush1.bf16.msra.mxu0 0
      %2294 = vmatprep.subr.bf16.mxu0 0
      %2295 = vmatpush1.bf16.msra.mxu0 0
      %2296 = vmatprep.subr.bf16.mxu0 0
      %2297 = vmatpush1.bf16.msra.mxu0 0
      %2298 = vmatprep.subr.bf16.mxu0 0
      %2299 = vmatpush1.bf16.msra.mxu0 0
      %2300 = vmatprep.subr.bf16.mxu0 0
      %2301 = vmatpush1.bf16.msra.mxu0 0
      %2302 = vmatprep.subr.bf16.mxu0 0
      %2303 = vmatpush1.bf16.msra.mxu0 0
      %2304 = vmatprep.subr.bf16.mxu0 0
      %2305 = vmatpush1.bf16.msra.mxu0 0
      %2306 = vmatprep.subr.bf16.mxu0 0
      %2307 = vmatpush1.bf16.msra.mxu0 0
      %2308 = vmatprep.subr.bf16.mxu0 0
      %2309 = vmatpush1.bf16.msra.mxu0 0
      %2310 = vmatprep.subr.bf16.mxu0 0
      %2311 = vmatpush1.bf16.msra.mxu0 0
      %2312 = vmatprep.subr.bf16.mxu0 0
      %2313 = vmatpush1.bf16.msra.mxu0 0
      %2314 = vmatprep.subr.bf16.mxu0 0
      %2315 = vmatpush1.bf16.msra.mxu0 0
      %2316 = vmatprep.mubr.bf16.mxu0 0
      %2317 = vmatmul.mubr.bf16.gmra.mrb[0].mxu0 %v2261
      %v2318 = vpop.f32.mrb[0].mxu0
      %v2319 = vadd.f32 0.0, %v2318
      %v2320 = vpop.f32.mrb[0].mxu0
      %v2321 = vpop.f32.mrb[0].mxu0
      %v2322 = vadd.f32 0.0, %v2321
      %v2323 = vpop.f32.mrb[0].mxu0
      %2324 = vmatprep.mubr.bf16.mxu0 0
      %2325 = vmatmul.mubr.bf16.gmra.mrb[0].mxu0 %v2264
      %v2326 = vpop.f32.mrb[0].mxu0
      %v2327 = vadd.f32 0.0, %v2326
      %v2328 = vpop.f32.mrb[0].mxu0
      %v2329 = vpop.f32.mrb[0].mxu0
      %v2330 = vadd.f32 0.0, %v2329
      %v2331 = vpop.f32.mrb[0].mxu0
      %2332 = vmatprep.mubr.bf16.mxu0 0
      %2333 = vmatmul.mubr.bf16.gmra.mrb[0].mxu0 %v2267
      %v2334 = vpop.f32.mrb[0].mxu0
      %v2335 = vadd.f32 0.0, %v2334
      %v2336 = vpop.f32.mrb[0].mxu0
      %v2337 = vpop.f32.mrb[0].mxu0
      %v2338 = vadd.f32 0.0, %v2337
      %v2339 = vpop.f32.mrb[0].mxu0
      %2340 = vmatprep.mubr.bf16.mxu0 0
      %2341 = vmatmul.mubr.bf16.gmra.mrb[0].mxu0 %v2270
      %v2342 = vpop.f32.mrb[0].mxu0
      %v2343 = vadd.f32 0.0, %v2342
      %v2344 = vpop.f32.mrb[0].mxu0
      %v2345 = vpop.f32.mrb[0].mxu0
      %v2346 = vadd.f32 0.0, %v2345
      %v2347 = vpop.f32.mrb[0].mxu0
      %2348 = vmatprep.mubr.bf16.mxu0 0
      %2349 = vmatmul.mubr.bf16.gmra.mrb[0].mxu0 %v2273
      %v2350 = vpop.f32.mrb[0].mxu0
      %v2351 = vadd.f32 0.0, %v2350
      %v2352 = vpop.f32.mrb[0].mxu0
      %v2353 = vpop.f32.mrb[0].mxu0
      %v2354 = vadd.f32 0.0, %v2353
      %v2355 = vpop.f32.mrb[0].mxu0
      %2356 = vmatprep.mubr.bf16.mxu0 0
      %2357 = vmatmul.mubr.bf16.gmra.mrb[0].mxu0 %v2276
      %v2358 = vpop.f32.mrb[0].mxu0
      %v2359 = vadd.f32 0.0, %v2358
      %v2360 = vpop.f32.mrb[0].mxu0
      %v2361 = vpop.f32.mrb[0].mxu0
      %v2362 = vadd.f32 0.0, %v2361
      %v2363 = vpop.f32.mrb[0].mxu0
      %2364 = vmatprep.mubr.bf16.mxu0 0
      %2365 = vmatmul.mubr.bf16.gmra.mrb[0].mxu0 %v2279
      %v2366 = vpop.f32.mrb[0].mxu0
      %v2367 = vadd.f32 0.0, %v2366
      %v2368 = vpop.f32.mrb[0].mxu0
      %v2369 = vpop.f32.mrb[0].mxu0
      %v2370 = vadd.f32 0.0, %v2369
      %v2371 = vpop.f32.mrb[0].mxu0
      %2372 = vmatprep.mubr.bf16.mxu0 0
      %2373 = vmatmul.mubr.bf16.gmra.mrb[0].mxu0 %v2282
      %v2374 = vpop.f32.mrb[0].mxu0
      %v2375 = vadd.f32 0.0, %v2374
      %v2376 = vpop.f32.mrb[0].mxu0
      %v2377 = vpop.f32.mrb[0].mxu0
      %v2378 = vadd.f32 0.0, %v2377
      %v2379 = vpop.f32.mrb[0].mxu0
      %2380 = vdwg.mxu0
      %v2381 = vadd.f32 %v2187, %v2319
      %v2382 = vadd.f32 %v2188, %v2322
      %v2383 = vadd.f32 %v2189, %v2327
      %v2384 = vadd.f32 %v2190, %v2330
      %v2385 = vadd.f32 %v2191, %v2335
      %v2386 = vadd.f32 %v2192, %v2338
      %v2387 = vadd.f32 %v2193, %v2343
      %v2388 = vadd.f32 %v2194, %v2346
      %v2389 = vadd.f32 %v2195, %v2351
      %v2390 = vadd.f32 %v2196, %v2354
      %v2391 = vadd.f32 %v2197, %v2359
      %v2392 = vadd.f32 %v2198, %v2362
      %v2393 = vadd.f32 %v2199, %v2367
      %v2394 = vadd.f32 %v2200, %v2370
      %v2395 = vadd.f32 %v2201, %v2375
      %v2396 = vadd.f32 %v2202, %v2378
      %v2397 = vld [vmem:[%s2008 + $0x2] sm:$0xff]
      %v2398 = vld [vmem:[%s2008 + $0xa] sm:$0xff]
      %v2399 = vld [vmem:[%s2008 + $0x32] sm:$0xff]
      %v2400 = vld [vmem:[%s2008 + $0x3a] sm:$0xff]
      %v2401 = vld [vmem:[%s2008 + $0x62] sm:$0xff]
      %v2402 = vld [vmem:[%s2008 + $0x6a] sm:$0xff]
      %v2403 = vld [vmem:[%s2008 + $0x92] sm:$0xff]
      %v2404 = vld [vmem:[%s2008 + $0x9a] sm:$0xff]
      %v2405 = vld [vmem:[%s2008 + $0xc2] sm:$0xff]
      %v2406 = vld [vmem:[%s2008 + $0xca] sm:$0xff]
      %v2407 = vld [vmem:[%s2008 + $0xf2] sm:$0xff]
      %v2408 = vld [vmem:[%s2008 + $0xfa] sm:$0xff]
      %v2409 = vld [vmem:[%s2008 + $0x122] sm:$0xff]
      %v2410 = vld [vmem:[%s2008 + $0x12a] sm:$0xff]
      %v2411 = vld [vmem:[%s2008 + $0x152] sm:$0xff]
      %v2412 = vld [vmem:[%s2008 + $0x15a] sm:$0xff]
      %v2413 = vpack.c.bf16 %v2398, %v2397
      %v2414 = vpack.c.bf16 %v2400, %v2399
      %v2415 = vpack.c.bf16 %v2402, %v2401
      %v2416 = vpack.c.bf16 %v2404, %v2403
      %v2417 = vpack.c.bf16 %v2406, %v2405
      %v2418 = vpack.c.bf16 %v2408, %v2407
      %v2419 = vpack.c.bf16 %v2410, %v2409
      %v2420 = vpack.c.bf16 %v2412, %v2411
      %s2421 = scalar_lea.vmem %s3, 256
      %v2422 = vld [vmem:[%s2421] sm:$0xf]
      %v2423 = vld [vmem:[%s2421 + $0x4] sm:$0xf]
      %v2424 = vld [vmem:[%s2421 + $0x8] sm:$0xf]
      %v2425 = vld [vmem:[%s2421 + $0xc] sm:$0xf]
      %v2426 = vld [vmem:[%s2421 + $0x10] sm:$0xf]
      %v2427 = vld [vmem:[%s2421 + $0x14] sm:$0xf]
      %v2428 = vld [vmem:[%s2421 + $0x18] sm:$0xf]
      %v2429 = vld [vmem:[%s2421 + $0x1c] sm:$0xf]
      %v2438 = vunpack.c.l.b16 %v2422
      %v2439 = vunpack.c.l.b16 %v2423
      %v2440 = vunpack.c.l.b16 %v2424
      %v2441 = vunpack.c.l.b16 %v2425
      %v2442 = vunpack.c.l.b16 %v2426
      %v2443 = vunpack.c.l.b16 %v2427
      %v2444 = vunpack.c.l.b16 %v2428
      %v2445 = vunpack.c.l.b16 %v2429
      %v2446 = vpack.c.b16 %v2439, %v2438
      %v2447 = vpack.c.b16 %v2441, %v2440
      %v2448 = vpack.c.b16 %v2443, %v2442
      %v2449 = vpack.c.b16 %v2445, %v2444
      %v2455 = vsel %vm788, %v2413, 0
      %v2458 = vsel %vm788, %v2414, 0
      %v2461 = vsel %vm788, %v2415, 0
      %v2464 = vsel %vm788, %v2416, 0
      %v2467 = vsel %vm788, %v2417, 0
      %v2470 = vsel %vm788, %v2418, 0
      %v2473 = vsel %vm788, %v2419, 0
      %v2476 = vsel %vm788, %v2420, 0
      %2478 = vmatprep.subr.bf16.mxu0 0
      %2479 = vmatpush1.bf16.msra.mxu0 %v2446
      %2480 = vmatprep.subr.bf16.mxu0 0
      %2481 = vmatpush1.bf16.msra.mxu0 %v2447
      %2482 = vmatprep.subr.bf16.mxu0 0
      %2483 = vmatpush1.bf16.msra.mxu0 %v2448
      %2484 = vmatprep.subr.bf16.mxu0 0
      %2485 = vmatpush1.bf16.msra.mxu0 %v2449
      %2486 = vmatprep.subr.bf16.mxu0 0
      %2487 = vmatpush1.bf16.msra.mxu0 0
      %2488 = vmatprep.subr.bf16.mxu0 0
      %2489 = vmatpush1.bf16.msra.mxu0 0
      %2490 = vmatprep.subr.bf16.mxu0 0
      %2491 = vmatpush1.bf16.msra.mxu0 0
      %2492 = vmatprep.subr.bf16.mxu0 0
      %2493 = vmatpush1.bf16.msra.mxu0 0
      %2494 = vmatprep.subr.bf16.mxu0 0
      %2495 = vmatpush1.bf16.msra.mxu0 0
      %2496 = vmatprep.subr.bf16.mxu0 0
      %2497 = vmatpush1.bf16.msra.mxu0 0
      %2498 = vmatprep.subr.bf16.mxu0 0
      %2499 = vmatpush1.bf16.msra.mxu0 0
      %2500 = vmatprep.subr.bf16.mxu0 0
      %2501 = vmatpush1.bf16.msra.mxu0 0
      %2502 = vmatprep.subr.bf16.mxu0 0
      %2503 = vmatpush1.bf16.msra.mxu0 0
      %2504 = vmatprep.subr.bf16.mxu0 0
      %2505 = vmatpush1.bf16.msra.mxu0 0
      %2506 = vmatprep.subr.bf16.mxu0 0
      %2507 = vmatpush1.bf16.msra.mxu0 0
      %2508 = vmatprep.subr.bf16.mxu0 0
      %2509 = vmatpush1.bf16.msra.mxu0 0
      %2510 = vmatprep.mubr.bf16.mxu0 0
      %2511 = vmatmul.mubr.bf16.gmra.mrb[0].mxu0 %v2455
      %v2512 = vpop.f32.mrb[0].mxu0
      %v2513 = vadd.f32 0.0, %v2512
      %v2514 = vpop.f32.mrb[0].mxu0
      %v2515 = vpop.f32.mrb[0].mxu0
      %v2516 = vadd.f32 0.0, %v2515
      %v2517 = vpop.f32.mrb[0].mxu0
      %2518 = vmatprep.mubr.bf16.mxu0 0
      %2519 = vmatmul.mubr.bf16.gmra.mrb[0].mxu0 %v2458
      %v2520 = vpop.f32.mrb[0].mxu0
      %v2521 = vadd.f32 0.0, %v2520
      %v2522 = vpop.f32.mrb[0].mxu0
      %v2523 = vpop.f32.mrb[0].mxu0
      %v2524 = vadd.f32 0.0, %v2523
      %v2525 = vpop.f32.mrb[0].mxu0
      %2526 = vmatprep.mubr.bf16.mxu0 0
      %2527 = vmatmul.mubr.bf16.gmra.mrb[0].mxu0 %v2461
      %v2528 = vpop.f32.mrb[0].mxu0
      %v2529 = vadd.f32 0.0, %v2528
      %v2530 = vpop.f32.mrb[0].mxu0
      %v2531 = vpop.f32.mrb[0].mxu0
      %v2532 = vadd.f32 0.0, %v2531
      %v2533 = vpop.f32.mrb[0].mxu0
      %2534 = vmatprep.mubr.bf16.mxu0 0
      %2535 = vmatmul.mubr.bf16.gmra.mrb[0].mxu0 %v2464
      %v2536 = vpop.f32.mrb[0].mxu0
      %v2537 = vadd.f32 0.0, %v2536
      %v2538 = vpop.f32.mrb[0].mxu0
      %v2539 = vpop.f32.mrb[0].mxu0
      %v2540 = vadd.f32 0.0, %v2539
      %v2541 = vpop.f32.mrb[0].mxu0
      %2542 = vmatprep.mubr.bf16.mxu0 0
      %2543 = vmatmul.mubr.bf16.gmra.mrb[0].mxu0 %v2467
      %v2544 = vpop.f32.mrb[0].mxu0
      %v2545 = vadd.f32 0.0, %v2544
      %v2546 = vpop.f32.mrb[0].mxu0
      %v2547 = vpop.f32.mrb[0].mxu0
      %v2548 = vadd.f32 0.0, %v2547
      %v2549 = vpop.f32.mrb[0].mxu0
      %2550 = vmatprep.mubr.bf16.mxu0 0
      %2551 = vmatmul.mubr.bf16.gmra.mrb[0].mxu0 %v2470
      %v2552 = vpop.f32.mrb[0].mxu0
      %v2553 = vadd.f32 0.0, %v2552
      %v2554 = vpop.f32.mrb[0].mxu0
      %v2555 = vpop.f32.mrb[0].mxu0
      %v2556 = vadd.f32 0.0, %v2555
      %v2557 = vpop.f32.mrb[0].mxu0
      %2558 = vmatprep.mubr.bf16.mxu0 0
      %2559 = vmatmul.mubr.bf16.gmra.mrb[0].mxu0 %v2473
      %v2560 = vpop.f32.mrb[0].mxu0
      %v2561 = vadd.f32 0.0, %v2560
      %v2562 = vpop.f32.mrb[0].mxu0
      %v2563 = vpop.f32.mrb[0].mxu0
      %v2564 = vadd.f32 0.0, %v2563
      %v2565 = vpop.f32.mrb[0].mxu0
      %2566 = vmatprep.mubr.bf16.mxu0 0
      %2567 = vmatmul.mubr.bf16.gmra.mrb[0].mxu0 %v2476
      %v2568 = vpop.f32.mrb[0].mxu0
      %v2569 = vadd.f32 0.0, %v2568
      %v2570 = vpop.f32.mrb[0].mxu0
      %v2571 = vpop.f32.mrb[0].mxu0
      %v2572 = vadd.f32 0.0, %v2571
      %v2573 = vpop.f32.mrb[0].mxu0
      %2574 = vdwg.mxu0
      %v2575 = vadd.f32 %v2381, %v2513
      %v2576 = vadd.f32 %v2382, %v2516
      %v2577 = vadd.f32 %v2383, %v2521
      %v2578 = vadd.f32 %v2384, %v2524
      %v2579 = vadd.f32 %v2385, %v2529
      %v2580 = vadd.f32 %v2386, %v2532
      %v2581 = vadd.f32 %v2387, %v2537
      %v2582 = vadd.f32 %v2388, %v2540
      %v2583 = vadd.f32 %v2389, %v2545
      %v2584 = vadd.f32 %v2390, %v2548
      %v2585 = vadd.f32 %v2391, %v2553
      %v2586 = vadd.f32 %v2392, %v2556
      %v2587 = vadd.f32 %v2393, %v2561
      %v2588 = vadd.f32 %v2394, %v2564
      %v2589 = vadd.f32 %v2395, %v2569
      %v2590 = vadd.f32 %v2396, %v2572
      %v2591 = vlaneseq
      %v2592 = vshrl.u32 %v2591, 7
      %v2593 = vadd.s32 %v2592, 8
      %v2594 = vadd.s32 %v2592, 16
      %v2595 = vadd.s32 %v2592, 24
      %v2596 = vadd.s32 %v2592, 32
      %v2597 = vadd.s32 %v2592, 40
      %v2598 = vadd.s32 %v2592, 48
      %v2599 = vadd.s32 %v2592, 56
      %v2600 = vlaneseq
      %v2601 = vand.u32 %v2600, 127
      %v2602 = vmul.u32 %v2592, 2
      %v2603 = vmul.u32 %v2593, 2
      %v2604 = vmul.u32 %v2594, 2
      %v2605 = vmul.u32 %v2595, 2
      %v2606 = vmul.u32 %v2596, 2
      %v2607 = vmul.u32 %v2597, 2
      %v2608 = vmul.u32 %v2598, 2
      %v2609 = vmul.u32 %v2599, 2
      %vm2610 = vcmp.eq.s32.totalorder %v2601, %v2602
      %vm2611 = vcmp.eq.s32.totalorder %v2601, %v2603
      %vm2612 = vcmp.eq.s32.totalorder %v2601, %v2604
      %vm2613 = vcmp.eq.s32.totalorder %v2601, %v2605
      %vm2614 = vcmp.eq.s32.totalorder %v2601, %v2606
      %vm2615 = vcmp.eq.s32.totalorder %v2601, %v2607
      %vm2616 = vcmp.eq.s32.totalorder %v2601, %v2608
      %vm2617 = vcmp.eq.s32.totalorder %v2601, %v2609
      %v2618 = vsel %vm2610, 1, 0
      %v2619 = vsel %vm2611, 1, 0
      %v2620 = vsel %vm2612, 1, 0
      %v2621 = vsel %vm2613, 1, 0
      %v2622 = vsel %vm2614, 1, 0
      %v2623 = vsel %vm2615, 1, 0
      %v2624 = vsel %vm2616, 1, 0
      %v2625 = vsel %vm2617, 1, 0
      %v2626 = vcvt.s32.f32 %v2618
      %v2627 = vcvt.s32.f32 %v2619
      %v2628 = vcvt.s32.f32 %v2620
      %v2629 = vcvt.s32.f32 %v2621
      %v2630 = vcvt.s32.f32 %v2622
      %v2631 = vcvt.s32.f32 %v2623
      %v2632 = vcvt.s32.f32 %v2624
      %v2633 = vcvt.s32.f32 %v2625
      %v2634 = vld [vmem:[%s4] sm:$0x1]
      %v2636 = vlaneseq
      %v2637 = vshrl.u32 %v2636, 7
      %v2638 = vsub.s32 0, %v2637
      %v2639 = vrot.slane %v2634, %v2638
      %2641 = vmatprep.subr.mxu0 0.0
      %2642 = vmatpush1.msra.mxu0 %v2575
      %2643 = vmatprep.subr.mxu0 0.0
      %2644 = vmatpush1.msra.mxu0 %v2576
      %2645 = vmatprep.subr.mxu0 0.0
      %2646 = vmatpush1.msra.mxu0 %v2577
      %2647 = vmatprep.subr.mxu0 0.0
      %2648 = vmatpush1.msra.mxu0 %v2578
      %2649 = vmatprep.subr.mxu0 0.0
      %2650 = vmatpush1.msra.mxu0 %v2579
      %2651 = vmatprep.subr.mxu0 0.0
      %2652 = vmatpush1.msra.mxu0 %v2580
      %2653 = vmatprep.subr.mxu0 0.0
      %2654 = vmatpush1.msra.mxu0 %v2581
      %2655 = vmatprep.subr.mxu0 0.0
      %2656 = vmatpush1.msra.mxu0 %v2582
      %2657 = vmatprep.subr.mxu0 0.0
      %2658 = vmatpush1.msra.mxu0 %v2583
      %2659 = vmatprep.subr.mxu0 0.0
      %2660 = vmatpush1.msra.mxu0 %v2584
      %2661 = vmatprep.subr.mxu0 0.0
      %2662 = vmatpush1.msra.mxu0 %v2585
      %2663 = vmatprep.subr.mxu0 0.0
      %2664 = vmatpush1.msra.mxu0 %v2586
      %2665 = vmatprep.subr.mxu0 0.0
      %2666 = vmatpush1.msra.mxu0 %v2587
      %2667 = vmatprep.subr.mxu0 0.0
      %2668 = vmatpush1.msra.mxu0 %v2588
      %2669 = vmatprep.subr.mxu0 0.0
      %2670 = vmatpush1.msra.mxu0 %v2589
      %2671 = vmatprep.subr.mxu0 0.0
      %2672 = vmatpush1.msra.mxu0 %v2590
      %2673 = vmatprep.subr.mxu0 0.0
      %2674 = vmatpush1.msra.mxu0 0.0
      %2675 = vmatprep.subr.mxu0 0.0
      %2676 = vmatpush1.msra.mxu0 0.0
      %2677 = vmatprep.subr.mxu0 0.0
      %2678 = vmatpush1.msra.mxu0 0.0
      %2679 = vmatprep.subr.mxu0 0.0
      %2680 = vmatpush1.msra.mxu0 0.0
      %2681 = vmatprep.subr.mxu0 0.0
      %2682 = vmatpush1.msra.mxu0 0.0
      %2683 = vmatprep.subr.mxu0 0.0
      %2684 = vmatpush1.msra.mxu0 0.0
      %2685 = vmatprep.subr.mxu0 0.0
      %2686 = vmatpush1.msra.mxu0 0.0
      %2687 = vmatprep.subr.mxu0 0.0
      %2688 = vmatpush1.msra.mxu0 0.0
      %2689 = vmatprep.subr.mxu0 0.0
      %2690 = vmatpush1.msra.mxu0 0.0
      %2691 = vmatprep.subr.mxu0 0.0
      %2692 = vmatpush1.msra.mxu0 0.0
      %2693 = vmatprep.subr.mxu0 0.0
      %2694 = vmatpush1.msra.mxu0 0.0
      %2695 = vmatprep.subr.mxu0 0.0
      %2696 = vmatpush1.msra.mxu0 0.0
      %2697 = vmatprep.subr.mxu0 0.0
      %2698 = vmatpush1.msra.mxu0 0.0
      %2699 = vmatprep.subr.mxu0 0.0
      %2700 = vmatpush1.msra.mxu0 0.0
      %2701 = vmatprep.subr.mxu0 0.0
      %2702 = vmatpush1.msra.mxu0 0.0
      %2703 = vmatprep.subr.mxu0 0.0
      %2704 = vmatpush1.msra.mxu0 0.0
      %2705 = vmatprep.mubr.f32.mxu0 0.0
      %2706 = vmatmul.mubr.f32.gmra.mrb[0].mxu0 %v2626
      %v2707 = vpop.f32.mrb[0].mxu0
      %v2708 = vadd.f32 %v2639, %v2707
      %v2709 = vpop.f32.mrb[0].mxu0
      %2710 = vmatprep.mubr.f32.mxu0 0.0
      %2711 = vmatmul.mubr.f32.gmra.mrb[0].mxu0 %v2627
      %v2712 = vpop.f32.mrb[0].mxu0
      %v2713 = vadd.f32 %v2639, %v2712
      %v2714 = vpop.f32.mrb[0].mxu0
      %2715 = vmatprep.mubr.f32.mxu0 0.0
      %2716 = vmatmul.mubr.f32.gmra.mrb[0].mxu0 %v2628
      %v2717 = vpop.f32.mrb[0].mxu0
      %v2718 = vadd.f32 %v2639, %v2717
      %v2719 = vpop.f32.mrb[0].mxu0
      %2720 = vmatprep.mubr.f32.mxu0 0.0
      %2721 = vmatmul.mubr.f32.gmra.mrb[0].mxu0 %v2629
      %v2722 = vpop.f32.mrb[0].mxu0
      %v2723 = vadd.f32 %v2639, %v2722
      %v2724 = vpop.f32.mrb[0].mxu0
      %2725 = vmatprep.mubr.f32.mxu0 0.0
      %2726 = vmatmul.mubr.f32.gmra.mrb[0].mxu0 %v2630
      %v2727 = vpop.f32.mrb[0].mxu0
      %v2728 = vadd.f32 %v2639, %v2727
      %v2729 = vpop.f32.mrb[0].mxu0
      %2730 = vmatprep.mubr.f32.mxu0 0.0
      %2731 = vmatmul.mubr.f32.gmra.mrb[0].mxu0 %v2631
      %v2732 = vpop.f32.mrb[0].mxu0
      %v2733 = vadd.f32 %v2639, %v2732
      %v2734 = vpop.f32.mrb[0].mxu0
      %2735 = vmatprep.mubr.f32.mxu0 0.0
      %2736 = vmatmul.mubr.f32.gmra.mrb[0].mxu0 %v2632
      %v2737 = vpop.f32.mrb[0].mxu0
      %v2738 = vadd.f32 %v2639, %v2737
      %v2739 = vpop.f32.mrb[0].mxu0
      %2740 = vmatprep.mubr.f32.mxu0 0.0
      %2741 = vmatmul.mubr.f32.gmra.mrb[0].mxu0 %v2633
      %v2742 = vpop.f32.mrb[0].mxu0
      %v2743 = vadd.f32 %v2639, %v2742
      %v2744 = vpop.f32.mrb[0].mxu0
      %2745 = vdwg.mxu0
      %vm2746 = vcmp.ge.f32.partialorder %v2708, 0.0
      %vm2747 = vcmp.ge.f32.partialorder %v2713, 0.0
      %vm2748 = vcmp.ge.f32.partialorder %v2718, 0.0
      %vm2749 = vcmp.ge.f32.partialorder %v2723, 0.0
      %vm2750 = vcmp.ge.f32.partialorder %v2728, 0.0
      %vm2751 = vcmp.ge.f32.partialorder %v2733, 0.0
      %vm2752 = vcmp.ge.f32.partialorder %v2738, 0.0
      %vm2753 = vcmp.ge.f32.partialorder %v2743, 0.0
      %v2754 = vmul.f32 %v2708, 0.01
      %v2755 = vmul.f32 %v2713, 0.01
      %v2756 = vmul.f32 %v2718, 0.01
      %v2757 = vmul.f32 %v2723, 0.01
      %v2758 = vmul.f32 %v2728, 0.01
      %v2759 = vmul.f32 %v2733, 0.01
      %v2760 = vmul.f32 %v2738, 0.01
      %v2761 = vmul.f32 %v2743, 0.01
      %v2762 = vsel %vm2746, %v2708, %v2754
      %v2763 = vsel %vm2747, %v2713, %v2755
      %v2764 = vsel %vm2748, %v2718, %v2756
      %v2765 = vsel %vm2749, %v2723, %v2757
      %v2766 = vsel %vm2750, %v2728, %v2758
      %v2767 = vsel %vm2751, %v2733, %v2759
      %v2768 = vsel %vm2752, %v2738, %v2760
      %v2769 = vsel %vm2753, %v2743, %v2761
      %2770 = vst [vmem:[#allocation3] sm:$0xff] 0.0
      %2771 = vst [vmem:[#allocation3 + $0x8] sm:$0x3] 0.0
      %2772 = vst [vmem:[#allocation3 + $0x10] sm:$0xff] 0.0
      %2773 = vst [vmem:[#allocation3 + $0x18] sm:$0x3] 0.0
      %2774 = vst [vmem:[#allocation3 + $0x20] sm:$0xff] 0.0
      %2775 = vst [vmem:[#allocation3 + $0x28] sm:$0x3] 0.0
      %2776 = vst [vmem:[#allocation3 + $0x30] sm:$0xff] 0.0
      %2777 = vst [vmem:[#allocation3 + $0x38] sm:$0x3] 0.0
      %2778 = vst [vmem:[#allocation3 + $0x40] sm:$0xff] 0.0
      %2779 = vst [vmem:[#allocation3 + $0x48] sm:$0x3] 0.0
      %2780 = vst [vmem:[#allocation3 + $0x50] sm:$0xff] 0.0
      %2781 = vst [vmem:[#allocation3 + $0x58] sm:$0x3] 0.0
      %2782 = vst [vmem:[#allocation3 + $0x60] sm:$0xff] 0.0
      %2783 = vst [vmem:[#allocation3 + $0x68] sm:$0x3] 0.0
      %2784 = vst [vmem:[#allocation3 + $0x70] sm:$0xff] 0.0
      %2785 = vst [vmem:[#allocation3 + $0x78] sm:$0x3] 0.0
      %2786 = vst [vmem:[#allocation3 + $0x80] sm:$0xff] 0.0
      %2787 = vst [vmem:[#allocation3 + $0x88] sm:$0x3] 0.0
      %2788 = vst [vmem:[#allocation3 + $0x90] sm:$0xff] 0.0
      %2789 = vst [vmem:[#allocation3 + $0x98] sm:$0x3] 0.0
      %s2790 = scalar_lea.vmem [#allocation3], 16
      %2791 = vst [vmem:[%s2790 + $0x1] sm:$0xff] %v2762
      %2792 = vst [vmem:[%s2790 + $0x11] sm:$0xff] %v2763
      %2793 = vst [vmem:[%s2790 + $0x21] sm:$0xff] %v2764
      %2794 = vst [vmem:[%s2790 + $0x31] sm:$0xff] %v2765
      %2795 = vst [vmem:[%s2790 + $0x41] sm:$0xff] %v2766
      %2796 = vst [vmem:[%s2790 + $0x51] sm:$0xff] %v2767
      %2797 = vst [vmem:[%s2790 + $0x61] sm:$0xff] %v2768
      %2798 = vst [vmem:[%s2790 + $0x71] sm:$0xff] %v2769
      %v2799 = vld [vmem:[#allocation3] sm:$0xff]
      %v2800 = vld [vmem:[#allocation3 + $0x20] sm:$0xff]
      %v2801 = vld [vmem:[#allocation3 + $0x40] sm:$0xff]
      %v2802 = vld [vmem:[#allocation3 + $0x60] sm:$0xff]
      %v2803 = vpack.c.bf16 %v2800, %v2799
      %v2804 = vpack.c.bf16 %v2802, %v2801
      %v2805 = vld [vmem:[%s5] sm:$0xff]
      %v2806 = vld [vmem:[%s5 + $0x8] sm:$0xff]
      %v2807 = vld [vmem:[%s5 + $0x10] sm:$0xff]
      %v2808 = vld [vmem:[%s5 + $0x18] sm:$0xff]
      %v2809 = vld [vmem:[%s5 + $0x20] sm:$0xff]
      %v2810 = vld [vmem:[%s5 + $0x28] sm:$0xff]
      %v2811 = vld [vmem:[%s5 + $0x30] sm:$0xff]
      %v2812 = vld [vmem:[%s5 + $0x38] sm:$0xff]
      %v2813 = vld [vmem:[%s5 + $0x40] sm:$0xff]
      %v2814 = vld [vmem:[%s5 + $0x48] sm:$0xff]
      %v2815 = vld [vmem:[%s5 + $0x50] sm:$0xff]
      %v2816 = vld [vmem:[%s5 + $0x58] sm:$0xff]
      %v2817 = vld [vmem:[%s5 + $0x60] sm:$0xff]
      %v2818 = vld [vmem:[%s5 + $0x68] sm:$0xff]
      %v2819 = vld [vmem:[%s5 + $0x70] sm:$0xff]
      %v2820 = vld [vmem:[%s5 + $0x78] sm:$0xff]
      %v2821 = vld [vmem:[#allocation3 + $0x1] sm:$0xff]
      %v2822 = vld [vmem:[#allocation3 + $0x21] sm:$0xff]
      %v2823 = vld [vmem:[#allocation3 + $0x41] sm:$0xff]
      %v2824 = vld [vmem:[#allocation3 + $0x61] sm:$0xff]
      %v2825 = vpack.c.bf16 %v2822, %v2821
      %v2826 = vpack.c.bf16 %v2824, %v2823
      %s2827 = scalar_lea.vmem %s5, 128
      %v2828 = vld [vmem:[%s2827] sm:$0xff]
      %v2829 = vld [vmem:[%s2827 + $0x8] sm:$0xff]
      %v2830 = vld [vmem:[%s2827 + $0x10] sm:$0xff]
      %v2831 = vld [vmem:[%s2827 + $0x18] sm:$0xff]
      %v2832 = vld [vmem:[%s2827 + $0x20] sm:$0xff]
      %v2833 = vld [vmem:[%s2827 + $0x28] sm:$0xff]
      %v2834 = vld [vmem:[%s2827 + $0x30] sm:$0xff]
      %v2835 = vld [vmem:[%s2827 + $0x38] sm:$0xff]
      %v2836 = vld [vmem:[%s2827 + $0x40] sm:$0xff]
      %v2837 = vld [vmem:[%s2827 + $0x48] sm:$0xff]
      %v2838 = vld [vmem:[%s2827 + $0x50] sm:$0xff]
      %v2839 = vld [vmem:[%s2827 + $0x58] sm:$0xff]
      %v2840 = vld [vmem:[%s2827 + $0x60] sm:$0xff]
      %v2841 = vld [vmem:[%s2827 + $0x68] sm:$0xff]
      %v2842 = vld [vmem:[%s2827 + $0x70] sm:$0xff]
      %v2843 = vld [vmem:[%s2827 + $0x78] sm:$0xff]
      %v2860 = vunpack.c.l.b16 %v2828
      %v2861 = vunpack.c.h.b16 %v2828
      %v2862 = vunpack.c.l.b16 %v2829
      %v2863 = vunpack.c.h.b16 %v2829
      %v2864 = vunpack.c.l.b16 %v2830
      %v2865 = vunpack.c.h.b16 %v2830
      %v2866 = vunpack.c.l.b16 %v2831
      %v2867 = vunpack.c.h.b16 %v2831
      %v2868 = vunpack.c.l.b16 %v2832
      %v2869 = vunpack.c.h.b16 %v2832
      %v2870 = vunpack.c.l.b16 %v2833
      %v2871 = vunpack.c.h.b16 %v2833
      %v2872 = vunpack.c.l.b16 %v2834
      %v2873 = vunpack.c.h.b16 %v2834
      %v2874 = vunpack.c.l.b16 %v2835
      %v2875 = vunpack.c.h.b16 %v2835
      %v2876 = vunpack.c.l.b16 %v2836
      %v2877 = vunpack.c.h.b16 %v2836
      %v2878 = vunpack.c.l.b16 %v2837
      %v2879 = vunpack.c.h.b16 %v2837
      %v2880 = vunpack.c.l.b16 %v2838
      %v2881 = vunpack.c.h.b16 %v2838
      %v2882 = vunpack.c.l.b16 %v2839
      %v2883 = vunpack.c.h.b16 %v2839
      %v2884 = vunpack.c.l.b16 %v2840
      %v2885 = vunpack.c.h.b16 %v2840
      %v2886 = vunpack.c.l.b16 %v2841
      %v2887 = vunpack.c.h.b16 %v2841
      %v2888 = vunpack.c.l.b16 %v2842
      %v2889 = vunpack.c.h.b16 %v2842
      %v2890 = vunpack.c.l.b16 %v2843
      %v2891 = vunpack.c.h.b16 %v2843
      %v2892 = vpack.c.b16 %v2862, %v2860
      %v2893 = vpack.c.b16 %v2863, %v2861
      %v2894 = vpack.c.b16 %v2866, %v2864
      %v2895 = vpack.c.b16 %v2867, %v2865
      %v2896 = vpack.c.b16 %v2870, %v2868
      %v2897 = vpack.c.b16 %v2871, %v2869
      %v2898 = vpack.c.b16 %v2874, %v2872
      %v2899 = vpack.c.b16 %v2875, %v2873
      %v2900 = vpack.c.b16 %v2878, %v2876
      %v2901 = vpack.c.b16 %v2879, %v2877
      %v2902 = vpack.c.b16 %v2882, %v2880
      %v2903 = vpack.c.b16 %v2883, %v2881
      %v2904 = vpack.c.b16 %v2886, %v2884
      %v2905 = vpack.c.b16 %v2887, %v2885
      %v2906 = vpack.c.b16 %v2890, %v2888
      %v2907 = vpack.c.b16 %v2891, %v2889
      %2924 = vmatprep.subr.bf16.mxu0 %v2893
      %2925 = vmatpush1.bf16.msra.mxu0 %v2892
      %2926 = vmatprep.subr.bf16.mxu0 %v2895
      %2927 = vmatpush1.bf16.msra.mxu0 %v2894
      %2928 = vmatprep.subr.bf16.mxu0 %v2897
      %2929 = vmatpush1.bf16.msra.mxu0 %v2896
      %2930 = vmatprep.subr.bf16.mxu0 %v2899
      %2931 = vmatpush1.bf16.msra.mxu0 %v2898
      %2932 = vmatprep.subr.bf16.mxu0 %v2901
      %2933 = vmatpush1.bf16.msra.mxu0 %v2900
      %2934 = vmatprep.subr.bf16.mxu0 %v2903
      %2935 = vmatpush1.bf16.msra.mxu0 %v2902
      %2936 = vmatprep.subr.bf16.mxu0 %v2905
      %2937 = vmatpush1.bf16.msra.mxu0 %v2904
      %2938 = vmatprep.subr.bf16.mxu0 %v2907
      %2939 = vmatpush1.bf16.msra.mxu0 %v2906
      %2940 = vmatprep.subr.bf16.mxu0 0
      %2941 = vmatpush1.bf16.msra.mxu0 0
      %2942 = vmatprep.subr.bf16.mxu0 0
      %2943 = vmatpush1.bf16.msra.mxu0 0
      %2944 = vmatprep.subr.bf16.mxu0 0
      %2945 = vmatpush1.bf16.msra.mxu0 0
      %2946 = vmatprep.subr.bf16.mxu0 0
      %2947 = vmatpush1.bf16.msra.mxu0 0
      %2948 = vmatprep.subr.bf16.mxu0 0
      %2949 = vmatpush1.bf16.msra.mxu0 0
      %2950 = vmatprep.subr.bf16.mxu0 0
      %2951 = vmatpush1.bf16.msra.mxu0 0
      %2952 = vmatprep.subr.bf16.mxu0 0
      %2953 = vmatpush1.bf16.msra.mxu0 0
      %2954 = vmatprep.subr.bf16.mxu0 0
      %2955 = vmatpush1.bf16.msra.mxu0 0
      %2956 = vmatprep.mubr.bf16.mxu0 0
      %2957 = vmatmul.mubr.bf16.gmra.mrb[0].mxu0 %v2825
      %v2958 = vpop.f32.mrb[0].mxu0
      %v2959 = vadd.f32 0.0, %v2958
      %v2960 = vpop.f32.mrb[0].mxu0
      %v2961 = vadd.f32 0.0, %v2960
      %v2962 = vpop.f32.mrb[0].mxu0
      %v2963 = vadd.f32 0.0, %v2962
      %v2964 = vpop.f32.mrb[0].mxu0
      %v2965 = vadd.f32 0.0, %v2964
      %2966 = vmatprep.mubr.bf16.mxu0 0
      %2967 = vmatmul.mubr.bf16.gmra.mrb[0].mxu0 %v2826
      %v2968 = vpop.f32.mrb[0].mxu0
      %v2969 = vadd.f32 0.0, %v2968
      %v2970 = vpop.f32.mrb[0].mxu0
      %v2971 = vadd.f32 0.0, %v2970
      %v2972 = vpop.f32.mrb[0].mxu0
      %v2973 = vadd.f32 0.0, %v2972
      %v2974 = vpop.f32.mrb[0].mxu0
      %v2975 = vadd.f32 0.0, %v2974
      %2976 = vdwg.mxu0
      %v2993 = vunpack.c.l.b16 %v2805
      %v2994 = vunpack.c.h.b16 %v2805
      %v2995 = vunpack.c.l.b16 %v2806
      %v2996 = vunpack.c.h.b16 %v2806
      %v2997 = vunpack.c.l.b16 %v2807
      %v2998 = vunpack.c.h.b16 %v2807
      %v2999 = vunpack.c.l.b16 %v2808
      %v3000 = vunpack.c.h.b16 %v2808
      %v3001 = vunpack.c.l.b16 %v2809
      %v3002 = vunpack.c.h.b16 %v2809
      %v3003 = vunpack.c.l.b16 %v2810
      %v3004 = vunpack.c.h.b16 %v2810
      %v3005 = vunpack.c.l.b16 %v2811
      %v3006 = vunpack.c.h.b16 %v2811
      %v3007 = vunpack.c.l.b16 %v2812
      %v3008 = vunpack.c.h.b16 %v2812
      %v3009 = vunpack.c.l.b16 %v2813
      %v3010 = vunpack.c.h.b16 %v2813
      %v3011 = vunpack.c.l.b16 %v2814
      %v3012 = vunpack.c.h.b16 %v2814
      %v3013 = vunpack.c.l.b16 %v2815
      %v3014 = vunpack.c.h.b16 %v2815
      %v3015 = vunpack.c.l.b16 %v2816
      %v3016 = vunpack.c.h.b16 %v2816
      %v3017 = vunpack.c.l.b16 %v2817
      %v3018 = vunpack.c.h.b16 %v2817
      %v3019 = vunpack.c.l.b16 %v2818
      %v3020 = vunpack.c.h.b16 %v2818
      %v3021 = vunpack.c.l.b16 %v2819
      %v3022 = vunpack.c.h.b16 %v2819
      %v3023 = vunpack.c.l.b16 %v2820
      %v3024 = vunpack.c.h.b16 %v2820
      %v3025 = vpack.c.b16 %v2995, %v2993
      %v3026 = vpack.c.b16 %v2996, %v2994
      %v3027 = vpack.c.b16 %v2999, %v2997
      %v3028 = vpack.c.b16 %v3000, %v2998
      %v3029 = vpack.c.b16 %v3003, %v3001
      %v3030 = vpack.c.b16 %v3004, %v3002
      %v3031 = vpack.c.b16 %v3007, %v3005
      %v3032 = vpack.c.b16 %v3008, %v3006
      %v3033 = vpack.c.b16 %v3011, %v3009
      %v3034 = vpack.c.b16 %v3012, %v3010
      %v3035 = vpack.c.b16 %v3015, %v3013
      %v3036 = vpack.c.b16 %v3016, %v3014
      %v3037 = vpack.c.b16 %v3019, %v3017
      %v3038 = vpack.c.b16 %v3020, %v3018
      %v3039 = vpack.c.b16 %v3023, %v3021
      %v3040 = vpack.c.b16 %v3024, %v3022
      %3057 = vmatprep.subr.bf16.mxu0 %v3026
      %3058 = vmatpush1.bf16.msra.mxu0 %v3025
      %3059 = vmatprep.subr.bf16.mxu0 %v3028
      %3060 = vmatpush1.bf16.msra.mxu0 %v3027
      %3061 = vmatprep.subr.bf16.mxu0 %v3030
      %3062 = vmatpush1.bf16.msra.mxu0 %v3029
      %3063 = vmatprep.subr.bf16.mxu0 %v3032
      %3064 = vmatpush1.bf16.msra.mxu0 %v3031
      %3065 = vmatprep.subr.bf16.mxu0 %v3034
      %3066 = vmatpush1.bf16.msra.mxu0 %v3033
      %3067 = vmatprep.subr.bf16.mxu0 %v3036
      %3068 = vmatpush1.bf16.msra.mxu0 %v3035
      %3069 = vmatprep.subr.bf16.mxu0 %v3038
      %3070 = vmatpush1.bf16.msra.mxu0 %v3037
      %3071 = vmatprep.subr.bf16.mxu0 %v3040
      %3072 = vmatpush1.bf16.msra.mxu0 %v3039
      %3073 = vmatprep.subr.bf16.mxu0 0
      %3074 = vmatpush1.bf16.msra.mxu0 0
      %3075 = vmatprep.subr.bf16.mxu0 0
      %3076 = vmatpush1.bf16.msra.mxu0 0
      %3077 = vmatprep.subr.bf16.mxu0 0
      %3078 = vmatpush1.bf16.msra.mxu0 0
      %3079 = vmatprep.subr.bf16.mxu0 0
      %3080 = vmatpush1.bf16.msra.mxu0 0
      %3081 = vmatprep.subr.bf16.mxu0 0
      %3082 = vmatpush1.bf16.msra.mxu0 0
      %3083 = vmatprep.subr.bf16.mxu0 0
      %3084 = vmatpush1.bf16.msra.mxu0 0
      %3085 = vmatprep.subr.bf16.mxu0 0
      %3086 = vmatpush1.bf16.msra.mxu0 0
      %3087 = vmatprep.subr.bf16.mxu0 0
      %3088 = vmatpush1.bf16.msra.mxu0 0
      %3089 = vmatprep.mubr.bf16.mxu0 0
      %3090 = vmatmul.mubr.bf16.gmra.mrb[0].mxu0 %v2803
      %v3091 = vpop.f32.mrb[0].mxu0
      %v3092 = vadd.f32 %v2959, %v3091
      %v3093 = vpop.f32.mrb[0].mxu0
      %v3094 = vadd.f32 %v2961, %v3093
      %v3095 = vpop.f32.mrb[0].mxu0
      %v3096 = vadd.f32 %v2963, %v3095
      %v3097 = vpop.f32.mrb[0].mxu0
      %v3098 = vadd.f32 %v2965, %v3097
      %3099 = vmatprep.mubr.bf16.mxu0 0
      %3100 = vmatmul.mubr.bf16.gmra.mrb[0].mxu0 %v2804
      %v3101 = vpop.f32.mrb[0].mxu0
      %v3102 = vadd.f32 %v2969, %v3101
      %v3103 = vpop.f32.mrb[0].mxu0
      %v3104 = vadd.f32 %v2971, %v3103
      %v3105 = vpop.f32.mrb[0].mxu0
      %v3106 = vadd.f32 %v2973, %v3105
      %v3107 = vpop.f32.mrb[0].mxu0
      %v3108 = vadd.f32 %v2975, %v3107
      %3109 = vdwg.mxu0
      %v3110 = vld [vmem:[#allocation3 + $0x2] sm:$0xff]
      %v3111 = vld [vmem:[#allocation3 + $0x22] sm:$0xff]
      %v3112 = vld [vmem:[#allocation3 + $0x42] sm:$0xff]
      %v3113 = vld [vmem:[#allocation3 + $0x62] sm:$0xff]
      %v3114 = vpack.c.bf16 %v3111, %v3110
      %v3115 = vpack.c.bf16 %v3113, %v3112
      %s3116 = scalar_lea.vmem %s5, 256
      %v3117 = vld [vmem:[%s3116] sm:$0xff]
      %v3118 = vld [vmem:[%s3116 + $0x8] sm:$0xff]
      %v3119 = vld [vmem:[%s3116 + $0x10] sm:$0xff]
      %v3120 = vld [vmem:[%s3116 + $0x18] sm:$0xff]
      %v3121 = vld [vmem:[%s3116 + $0x20] sm:$0xff]
      %v3122 = vld [vmem:[%s3116 + $0x28] sm:$0xff]
      %v3123 = vld [vmem:[%s3116 + $0x30] sm:$0xff]
      %v3124 = vld [vmem:[%s3116 + $0x38] sm:$0xff]
      %v3125 = vld [vmem:[%s3116 + $0x40] sm:$0xff]
      %v3126 = vld [vmem:[%s3116 + $0x48] sm:$0xff]
      %v3127 = vld [vmem:[%s3116 + $0x50] sm:$0xff]
      %v3128 = vld [vmem:[%s3116 + $0x58] sm:$0xff]
      %v3129 = vld [vmem:[%s3116 + $0x60] sm:$0xff]
      %v3130 = vld [vmem:[%s3116 + $0x68] sm:$0xff]
      %v3131 = vld [vmem:[%s3116 + $0x70] sm:$0xff]
      %v3132 = vld [vmem:[%s3116 + $0x78] sm:$0xff]
      %v3149 = vunpack.c.l.b16 %v3117
      %v3150 = vunpack.c.h.b16 %v3117
      %v3151 = vunpack.c.l.b16 %v3118
      %v3152 = vunpack.c.h.b16 %v3118
      %v3153 = vunpack.c.l.b16 %v3119
      %v3154 = vunpack.c.h.b16 %v3119
      %v3155 = vunpack.c.l.b16 %v3120
      %v3156 = vunpack.c.h.b16 %v3120
      %v3157 = vunpack.c.l.b16 %v3121
      %v3158 = vunpack.c.h.b16 %v3121
      %v3159 = vunpack.c.l.b16 %v3122
      %v3160 = vunpack.c.h.b16 %v3122
      %v3161 = vunpack.c.l.b16 %v3123
      %v3162 = vunpack.c.h.b16 %v3123
      %v3163 = vunpack.c.l.b16 %v3124
      %v3164 = vunpack.c.h.b16 %v3124
      %v3165 = vunpack.c.l.b16 %v3125
      %v3166 = vunpack.c.h.b16 %v3125
      %v3167 = vunpack.c.l.b16 %v3126
      %v3168 = vunpack.c.h.b16 %v3126
      %v3169 = vunpack.c.l.b16 %v3127
      %v3170 = vunpack.c.h.b16 %v3127
      %v3171 = vunpack.c.l.b16 %v3128
      %v3172 = vunpack.c.h.b16 %v3128
      %v3173 = vunpack.c.l.b16 %v3129
      %v3174 = vunpack.c.h.b16 %v3129
      %v3175 = vunpack.c.l.b16 %v3130
      %v3176 = vunpack.c.h.b16 %v3130
      %v3177 = vunpack.c.l.b16 %v3131
      %v3178 = vunpack.c.h.b16 %v3131
      %v3179 = vunpack.c.l.b16 %v3132
      %v3180 = vunpack.c.h.b16 %v3132
      %v3181 = vpack.c.b16 %v3151, %v3149
      %v3182 = vpack.c.b16 %v3152, %v3150
      %v3183 = vpack.c.b16 %v3155, %v3153
      %v3184 = vpack.c.b16 %v3156, %v3154
      %v3185 = vpack.c.b16 %v3159, %v3157
      %v3186 = vpack.c.b16 %v3160, %v3158
      %v3187 = vpack.c.b16 %v3163, %v3161
      %v3188 = vpack.c.b16 %v3164, %v3162
      %v3189 = vpack.c.b16 %v3167, %v3165
      %v3190 = vpack.c.b16 %v3168, %v3166
      %v3191 = vpack.c.b16 %v3171, %v3169
      %v3192 = vpack.c.b16 %v3172, %v3170
      %v3193 = vpack.c.b16 %v3175, %v3173
      %v3194 = vpack.c.b16 %v3176, %v3174
      %v3195 = vpack.c.b16 %v3179, %v3177
      %v3196 = vpack.c.b16 %v3180, %v3178
      %3213 = vmatprep.subr.bf16.mxu0 %v3182
      %3214 = vmatpush1.bf16.msra.mxu0 %v3181
      %3215 = vmatprep.subr.bf16.mxu0 %v3184
      %3216 = vmatpush1.bf16.msra.mxu0 %v3183
      %3217 = vmatprep.subr.bf16.mxu0 %v3186
      %3218 = vmatpush1.bf16.msra.mxu0 %v3185
      %3219 = vmatprep.subr.bf16.mxu0 %v3188
      %3220 = vmatpush1.bf16.msra.mxu0 %v3187
      %3221 = vmatprep.subr.bf16.mxu0 %v3190
      %3222 = vmatpush1.bf16.msra.mxu0 %v3189
      %3223 = vmatprep.subr.bf16.mxu0 %v3192
      %3224 = vmatpush1.bf16.msra.mxu0 %v3191
      %3225 = vmatprep.subr.bf16.mxu0 %v3194
      %3226 = vmatpush1.bf16.msra.mxu0 %v3193
      %3227 = vmatprep.subr.bf16.mxu0 %v3196
      %3228 = vmatpush1.bf16.msra.mxu0 %v3195
      %3229 = vmatprep.subr.bf16.mxu0 0
      %3230 = vmatpush1.bf16.msra.mxu0 0
      %3231 = vmatprep.subr.bf16.mxu0 0
      %3232 = vmatpush1.bf16.msra.mxu0 0
      %3233 = vmatprep.subr.bf16.mxu0 0
      %3234 = vmatpush1.bf16.msra.mxu0 0
      %3235 = vmatprep.subr.bf16.mxu0 0
      %3236 = vmatpush1.bf16.msra.mxu0 0
      %3237 = vmatprep.subr.bf16.mxu0 0
      %3238 = vmatpush1.bf16.msra.mxu0 0
      %3239 = vmatprep.subr.bf16.mxu0 0
      %3240 = vmatpush1.bf16.msra.mxu0 0
      %3241 = vmatprep.subr.bf16.mxu0 0
      %3242 = vmatpush1.bf16.msra.mxu0 0
      %3243 = vmatprep.subr.bf16.mxu0 0
      %3244 = vmatpush1.bf16.msra.mxu0 0
      %3245 = vmatprep.mubr.bf16.mxu0 0
      %3246 = vmatmul.mubr.bf16.gmra.mrb[0].mxu0 %v3114
      %v3247 = vpop.f32.mrb[0].mxu0
      %v3248 = vadd.f32 0.0, %v3247
      %v3249 = vpop.f32.mrb[0].mxu0
      %v3250 = vadd.f32 0.0, %v3249
      %v3251 = vpop.f32.mrb[0].mxu0
      %v3252 = vadd.f32 0.0, %v3251
      %v3253 = vpop.f32.mrb[0].mxu0
      %v3254 = vadd.f32 0.0, %v3253
      %3255 = vmatprep.mubr.bf16.mxu0 0
      %3256 = vmatmul.mubr.bf16.gmra.mrb[0].mxu0 %v3115
      %v3257 = vpop.f32.mrb[0].mxu0
      %v3258 = vadd.f32 0.0, %v3257
      %v3259 = vpop.f32.mrb[0].mxu0
      %v3260 = vadd.f32 0.0, %v3259
      %v3261 = vpop.f32.mrb[0].mxu0
      %v3262 = vadd.f32 0.0, %v3261
      %v3263 = vpop.f32.mrb[0].mxu0
      %v3264 = vadd.f32 0.0, %v3263
      %3265 = vdwg.mxu0
      %v3266 = vadd.f32 %v3092, %v3248
      %v3267 = vadd.f32 %v3094, %v3250
      %v3268 = vadd.f32 %v3096, %v3252
      %v3269 = vadd.f32 %v3098, %v3254
      %v3270 = vadd.f32 %v3102, %v3258
      %v3271 = vadd.f32 %v3104, %v3260
      %v3272 = vadd.f32 %v3106, %v3262
      %v3273 = vadd.f32 %v3108, %v3264
      %v3274 = vld [vmem:[%s2790] sm:$0xff]
      %v3275 = vld [vmem:[%s2790 + $0x20] sm:$0xff]
      %v3276 = vld [vmem:[%s2790 + $0x40] sm:$0xff]
      %v3277 = vld [vmem:[%s2790 + $0x60] sm:$0xff]
      %v3278 = vpack.c.bf16 %v3275, %v3274
      %v3279 = vpack.c.bf16 %v3277, %v3276
      %s3280 = scalar_lea.vmem %s5, 384
      %v3281 = vld [vmem:[%s3280] sm:$0xff]
      %v3282 = vld [vmem:[%s3280 + $0x8] sm:$0xff]
      %v3283 = vld [vmem:[%s3280 + $0x10] sm:$0xff]
      %v3284 = vld [vmem:[%s3280 + $0x18] sm:$0xff]
      %v3285 = vld [vmem:[%s3280 + $0x20] sm:$0xff]
      %v3286 = vld [vmem:[%s3280 + $0x28] sm:$0xff]
      %v3287 = vld [vmem:[%s3280 + $0x30] sm:$0xff]
      %v3288 = vld [vmem:[%s3280 + $0x38] sm:$0xff]
      %v3289 = vld [vmem:[%s3280 + $0x40] sm:$0xff]
      %v3290 = vld [vmem:[%s3280 + $0x48] sm:$0xff]
      %v3291 = vld [vmem:[%s3280 + $0x50] sm:$0xff]
      %v3292 = vld [vmem:[%s3280 + $0x58] sm:$0xff]
      %v3293 = vld [vmem:[%s3280 + $0x60] sm:$0xff]
      %v3294 = vld [vmem:[%s3280 + $0x68] sm:$0xff]
      %v3295 = vld [vmem:[%s3280 + $0x70] sm:$0xff]
      %v3296 = vld [vmem:[%s3280 + $0x78] sm:$0xff]
      %v3313 = vunpack.c.l.b16 %v3281
      %v3314 = vunpack.c.h.b16 %v3281
      %v3315 = vunpack.c.l.b16 %v3282
      %v3316 = vunpack.c.h.b16 %v3282
      %v3317 = vunpack.c.l.b16 %v3283
      %v3318 = vunpack.c.h.b16 %v3283
      %v3319 = vunpack.c.l.b16 %v3284
      %v3320 = vunpack.c.h.b16 %v3284
      %v3321 = vunpack.c.l.b16 %v3285
      %v3322 = vunpack.c.h.b16 %v3285
      %v3323 = vunpack.c.l.b16 %v3286
      %v3324 = vunpack.c.h.b16 %v3286
      %v3325 = vunpack.c.l.b16 %v3287
      %v3326 = vunpack.c.h.b16 %v3287
      %v3327 = vunpack.c.l.b16 %v3288
      %v3328 = vunpack.c.h.b16 %v3288
      %v3329 = vunpack.c.l.b16 %v3289
      %v3330 = vunpack.c.h.b16 %v3289
      %v3331 = vunpack.c.l.b16 %v3290
      %v3332 = vunpack.c.h.b16 %v3290
      %v3333 = vunpack.c.l.b16 %v3291
      %v3334 = vunpack.c.h.b16 %v3291
      %v3335 = vunpack.c.l.b16 %v3292
      %v3336 = vunpack.c.h.b16 %v3292
      %v3337 = vunpack.c.l.b16 %v3293
      %v3338 = vunpack.c.h.b16 %v3293
      %v3339 = vunpack.c.l.b16 %v3294
      %v3340 = vunpack.c.h.b16 %v3294
      %v3341 = vunpack.c.l.b16 %v3295
      %v3342 = vunpack.c.h.b16 %v3295
      %v3343 = vunpack.c.l.b16 %v3296
      %v3344 = vunpack.c.h.b16 %v3296
      %v3345 = vpack.c.b16 %v3315, %v3313
      %v3346 = vpack.c.b16 %v3316, %v3314
      %v3347 = vpack.c.b16 %v3319, %v3317
      %v3348 = vpack.c.b16 %v3320, %v3318
      %v3349 = vpack.c.b16 %v3323, %v3321
      %v3350 = vpack.c.b16 %v3324, %v3322
      %v3351 = vpack.c.b16 %v3327, %v3325
      %v3352 = vpack.c.b16 %v3328, %v3326
      %v3353 = vpack.c.b16 %v3331, %v3329
      %v3354 = vpack.c.b16 %v3332, %v3330
      %v3355 = vpack.c.b16 %v3335, %v3333
      %v3356 = vpack.c.b16 %v3336, %v3334
      %v3357 = vpack.c.b16 %v3339, %v3337
      %v3358 = vpack.c.b16 %v3340, %v3338
      %v3359 = vpack.c.b16 %v3343, %v3341
      %v3360 = vpack.c.b16 %v3344, %v3342
      %3377 = vmatprep.subr.bf16.mxu0 %v3346
      %3378 = vmatpush1.bf16.msra.mxu0 %v3345
      %3379 = vmatprep.subr.bf16.mxu0 %v3348
      %3380 = vmatpush1.bf16.msra.mxu0 %v3347
      %3381 = vmatprep.subr.bf16.mxu0 %v3350
      %3382 = vmatpush1.bf16.msra.mxu0 %v3349
      %3383 = vmatprep.subr.bf16.mxu0 %v3352
      %3384 = vmatpush1.bf16.msra.mxu0 %v3351
      %3385 = vmatprep.subr.bf16.mxu0 %v3354
      %3386 = vmatpush1.bf16.msra.mxu0 %v3353
      %3387 = vmatprep.subr.bf16.mxu0 %v3356
      %3388 = vmatpush1.bf16.msra.mxu0 %v3355
      %3389 = vmatprep.subr.bf16.mxu0 %v3358
      %3390 = vmatpush1.bf16.msra.mxu0 %v3357
      %3391 = vmatprep.subr.bf16.mxu0 %v3360
      %3392 = vmatpush1.bf16.msra.mxu0 %v3359
      %3393 = vmatprep.subr.bf16.mxu0 0
      %3394 = vmatpush1.bf16.msra.mxu0 0
      %3395 = vmatprep.subr.bf16.mxu0 0
      %3396 = vmatpush1.bf16.msra.mxu0 0
      %3397 = vmatprep.subr.bf16.mxu0 0
      %3398 = vmatpush1.bf16.msra.mxu0 0
      %3399 = vmatprep.subr.bf16.mxu0 0
      %3400 = vmatpush1.bf16.msra.mxu0 0
      %3401 = vmatprep.subr.bf16.mxu0 0
      %3402 = vmatpush1.bf16.msra.mxu0 0
      %3403 = vmatprep.subr.bf16.mxu0 0
      %3404 = vmatpush1.bf16.msra.mxu0 0
      %3405 = vmatprep.subr.bf16.mxu0 0
      %3406 = vmatpush1.bf16.msra.mxu0 0
      %3407 = vmatprep.subr.bf16.mxu0 0
      %3408 = vmatpush1.bf16.msra.mxu0 0
      %3409 = vmatprep.mubr.bf16.mxu0 0
      %3410 = vmatmul.mubr.bf16.gmra.mrb[0].mxu0 %v3278
      %v3411 = vpop.f32.mrb[0].mxu0
      %v3412 = vadd.f32 0.0, %v3411
      %v3413 = vpop.f32.mrb[0].mxu0
      %v3414 = vadd.f32 0.0, %v3413
      %v3415 = vpop.f32.mrb[0].mxu0
      %v3416 = vadd.f32 0.0, %v3415
      %v3417 = vpop.f32.mrb[0].mxu0
      %v3418 = vadd.f32 0.0, %v3417
      %3419 = vmatprep.mubr.bf16.mxu0 0
      %3420 = vmatmul.mubr.bf16.gmra.mrb[0].mxu0 %v3279
      %v3421 = vpop.f32.mrb[0].mxu0
      %v3422 = vadd.f32 0.0, %v3421
      %v3423 = vpop.f32.mrb[0].mxu0
      %v3424 = vadd.f32 0.0, %v3423
      %v3425 = vpop.f32.mrb[0].mxu0
      %v3426 = vadd.f32 0.0, %v3425
      %v3427 = vpop.f32.mrb[0].mxu0
      %v3428 = vadd.f32 0.0, %v3427
      %3429 = vdwg.mxu0
      %v3430 = vadd.f32 %v3266, %v3412
      %v3431 = vadd.f32 %v3267, %v3414
      %v3432 = vadd.f32 %v3268, %v3416
      %v3433 = vadd.f32 %v3269, %v3418
      %v3434 = vadd.f32 %v3270, %v3422
      %v3435 = vadd.f32 %v3271, %v3424
      %v3436 = vadd.f32 %v3272, %v3426
      %v3437 = vadd.f32 %v3273, %v3428
      %v3438 = vld [vmem:[%s2790 + $0x1] sm:$0xff]
      %v3439 = vld [vmem:[%s2790 + $0x21] sm:$0xff]
      %v3440 = vld [vmem:[%s2790 + $0x41] sm:$0xff]
      %v3441 = vld [vmem:[%s2790 + $0x61] sm:$0xff]
      %v3442 = vpack.c.bf16 %v3439, %v3438
      %v3443 = vpack.c.bf16 %v3441, %v3440
      %s3444 = scalar_lea.vmem %s5, 512
      %v3445 = vld [vmem:[%s3444] sm:$0xff]
      %v3446 = vld [vmem:[%s3444 + $0x8] sm:$0xff]
      %v3447 = vld [vmem:[%s3444 + $0x10] sm:$0xff]
      %v3448 = vld [vmem:[%s3444 + $0x18] sm:$0xff]
      %v3449 = vld [vmem:[%s3444 + $0x20] sm:$0xff]
      %v3450 = vld [vmem:[%s3444 + $0x28] sm:$0xff]
      %v3451 = vld [vmem:[%s3444 + $0x30] sm:$0xff]
      %v3452 = vld [vmem:[%s3444 + $0x38] sm:$0xff]
      %v3453 = vld [vmem:[%s3444 + $0x40] sm:$0xff]
      %v3454 = vld [vmem:[%s3444 + $0x48] sm:$0xff]
      %v3455 = vld [vmem:[%s3444 + $0x50] sm:$0xff]
      %v3456 = vld [vmem:[%s3444 + $0x58] sm:$0xff]
      %v3457 = vld [vmem:[%s3444 + $0x60] sm:$0xff]
      %v3458 = vld [vmem:[%s3444 + $0x68] sm:$0xff]
      %v3459 = vld [vmem:[%s3444 + $0x70] sm:$0xff]
      %v3460 = vld [vmem:[%s3444 + $0x78] sm:$0xff]
      %v3477 = vunpack.c.l.b16 %v3445
      %v3478 = vunpack.c.h.b16 %v3445
      %v3479 = vunpack.c.l.b16 %v3446
      %v3480 = vunpack.c.h.b16 %v3446
      %v3481 = vunpack.c.l.b16 %v3447
      %v3482 = vunpack.c.h.b16 %v3447
      %v3483 = vunpack.c.l.b16 %v3448
      %v3484 = vunpack.c.h.b16 %v3448
      %v3485 = vunpack.c.l.b16 %v3449
      %v3486 = vunpack.c.h.b16 %v3449
      %v3487 = vunpack.c.l.b16 %v3450
      %v3488 = vunpack.c.h.b16 %v3450
      %v3489 = vunpack.c.l.b16 %v3451
      %v3490 = vunpack.c.h.b16 %v3451
      %v3491 = vunpack.c.l.b16 %v3452
      %v3492 = vunpack.c.h.b16 %v3452
      %v3493 = vunpack.c.l.b16 %v3453
      %v3494 = vunpack.c.h.b16 %v3453
      %v3495 = vunpack.c.l.b16 %v3454
      %v3496 = vunpack.c.h.b16 %v3454
      %v3497 = vunpack.c.l.b16 %v3455
      %v3498 = vunpack.c.h.b16 %v3455
      %v3499 = vunpack.c.l.b16 %v3456
      %v3500 = vunpack.c.h.b16 %v3456
      %v3501 = vunpack.c.l.b16 %v3457
      %v3502 = vunpack.c.h.b16 %v3457
      %v3503 = vunpack.c.l.b16 %v3458
      %v3504 = vunpack.c.h.b16 %v3458
      %v3505 = vunpack.c.l.b16 %v3459
      %v3506 = vunpack.c.h.b16 %v3459
      %v3507 = vunpack.c.l.b16 %v3460
      %v3508 = vunpack.c.h.b16 %v3460
      %v3509 = vpack.c.b16 %v3479, %v3477
      %v3510 = vpack.c.b16 %v3480, %v3478
      %v3511 = vpack.c.b16 %v3483, %v3481
      %v3512 = vpack.c.b16 %v3484, %v3482
      %v3513 = vpack.c.b16 %v3487, %v3485
      %v3514 = vpack.c.b16 %v3488, %v3486
      %v3515 = vpack.c.b16 %v3491, %v3489
      %v3516 = vpack.c.b16 %v3492, %v3490
      %v3517 = vpack.c.b16 %v3495, %v3493
      %v3518 = vpack.c.b16 %v3496, %v3494
      %v3519 = vpack.c.b16 %v3499, %v3497
      %v3520 = vpack.c.b16 %v3500, %v3498
      %v3521 = vpack.c.b16 %v3503, %v3501
      %v3522 = vpack.c.b16 %v3504, %v3502
      %v3523 = vpack.c.b16 %v3507, %v3505
      %v3524 = vpack.c.b16 %v3508, %v3506
      %3541 = vmatprep.subr.bf16.mxu0 %v3510
      %3542 = vmatpush1.bf16.msra.mxu0 %v3509
      %3543 = vmatprep.subr.bf16.mxu0 %v3512
      %3544 = vmatpush1.bf16.msra.mxu0 %v3511
      %3545 = vmatprep.subr.bf16.mxu0 %v3514
      %3546 = vmatpush1.bf16.msra.mxu0 %v3513
      %3547 = vmatprep.subr.bf16.mxu0 %v3516
      %3548 = vmatpush1.bf16.msra.mxu0 %v3515
      %3549 = vmatprep.subr.bf16.mxu0 %v3518
      %3550 = vmatpush1.bf16.msra.mxu0 %v3517
      %3551 = vmatprep.subr.bf16.mxu0 %v3520
      %3552 = vmatpush1.bf16.msra.mxu0 %v3519
      %3553 = vmatprep.subr.bf16.mxu0 %v3522
      %3554 = vmatpush1.bf16.msra.mxu0 %v3521
      %3555 = vmatprep.subr.bf16.mxu0 %v3524
      %3556 = vmatpush1.bf16.msra.mxu0 %v3523
      %3557 = vmatprep.subr.bf16.mxu0 0
      %3558 = vmatpush1.bf16.msra.mxu0 0
      %3559 = vmatprep.subr.bf16.mxu0 0
      %3560 = vmatpush1.bf16.msra.mxu0 0
      %3561 = vmatprep.subr.bf16.mxu0 0
      %3562 = vmatpush1.bf16.msra.mxu0 0
      %3563 = vmatprep.subr.bf16.mxu0 0
      %3564 = vmatpush1.bf16.msra.mxu0 0
      %3565 = vmatprep.subr.bf16.mxu0 0
      %3566 = vmatpush1.bf16.msra.mxu0 0
      %3567 = vmatprep.subr.bf16.mxu0 0
      %3568 = vmatpush1.bf16.msra.mxu0 0
      %3569 = vmatprep.subr.bf16.mxu0 0
      %3570 = vmatpush1.bf16.msra.mxu0 0
      %3571 = vmatprep.subr.bf16.mxu0 0
      %3572 = vmatpush1.bf16.msra.mxu0 0
      %3573 = vmatprep.mubr.bf16.mxu0 0
      %3574 = vmatmul.mubr.bf16.gmra.mrb[0].mxu0 %v3442
      %v3575 = vpop.f32.mrb[0].mxu0
      %v3576 = vadd.f32 0.0, %v3575
      %v3577 = vpop.f32.mrb[0].mxu0
      %v3578 = vadd.f32 0.0, %v3577
      %v3579 = vpop.f32.mrb[0].mxu0
      %v3580 = vadd.f32 0.0, %v3579
      %v3581 = vpop.f32.mrb[0].mxu0
      %v3582 = vadd.f32 0.0, %v3581
      %3583 = vmatprep.mubr.bf16.mxu0 0
      %3584 = vmatmul.mubr.bf16.gmra.mrb[0].mxu0 %v3443
      %v3585 = vpop.f32.mrb[0].mxu0
      %v3586 = vadd.f32 0.0, %v3585
      %v3587 = vpop.f32.mrb[0].mxu0
      %v3588 = vadd.f32 0.0, %v3587
      %v3589 = vpop.f32.mrb[0].mxu0
      %v3590 = vadd.f32 0.0, %v3589
      %v3591 = vpop.f32.mrb[0].mxu0
      %v3592 = vadd.f32 0.0, %v3591
      %3593 = vdwg.mxu0
      %v3594 = vadd.f32 %v3430, %v3576
      %v3595 = vadd.f32 %v3431, %v3578
      %v3596 = vadd.f32 %v3432, %v3580
      %v3597 = vadd.f32 %v3433, %v3582
      %v3598 = vadd.f32 %v3434, %v3586
      %v3599 = vadd.f32 %v3435, %v3588
      %v3600 = vadd.f32 %v3436, %v3590
      %v3601 = vadd.f32 %v3437, %v3592
      %v3602 = vld [vmem:[%s2790 + $0x2] sm:$0xff]
      %v3603 = vld [vmem:[%s2790 + $0x22] sm:$0xff]
      %v3604 = vld [vmem:[%s2790 + $0x42] sm:$0xff]
      %v3605 = vld [vmem:[%s2790 + $0x62] sm:$0xff]
      %v3606 = vpack.c.bf16 %v3603, %v3602
      %v3607 = vpack.c.bf16 %v3605, %v3604
      %s3608 = scalar_lea.vmem %s5, 640
      %v3609 = vld [vmem:[%s3608] sm:$0xff]
      %v3610 = vld [vmem:[%s3608 + $0x8] sm:$0xff]
      %v3611 = vld [vmem:[%s3608 + $0x10] sm:$0xff]
      %v3612 = vld [vmem:[%s3608 + $0x18] sm:$0xff]
      %v3613 = vld [vmem:[%s3608 + $0x20] sm:$0xff]
      %v3614 = vld [vmem:[%s3608 + $0x28] sm:$0xff]
      %v3615 = vld [vmem:[%s3608 + $0x30] sm:$0xff]
      %v3616 = vld [vmem:[%s3608 + $0x38] sm:$0xff]
      %v3617 = vld [vmem:[%s3608 + $0x40] sm:$0xff]
      %v3618 = vld [vmem:[%s3608 + $0x48] sm:$0xff]
      %v3619 = vld [vmem:[%s3608 + $0x50] sm:$0xff]
      %v3620 = vld [vmem:[%s3608 + $0x58] sm:$0xff]
      %v3621 = vld [vmem:[%s3608 + $0x60] sm:$0xff]
      %v3622 = vld [vmem:[%s3608 + $0x68] sm:$0xff]
      %v3623 = vld [vmem:[%s3608 + $0x70] sm:$0xff]
      %v3624 = vld [vmem:[%s3608 + $0x78] sm:$0xff]
      %v3641 = vunpack.c.l.b16 %v3609
      %v3642 = vunpack.c.h.b16 %v3609
      %v3643 = vunpack.c.l.b16 %v3610
      %v3644 = vunpack.c.h.b16 %v3610
      %v3645 = vunpack.c.l.b16 %v3611
      %v3646 = vunpack.c.h.b16 %v3611
      %v3647 = vunpack.c.l.b16 %v3612
      %v3648 = vunpack.c.h.b16 %v3612
      %v3649 = vunpack.c.l.b16 %v3613
      %v3650 = vunpack.c.h.b16 %v3613
      %v3651 = vunpack.c.l.b16 %v3614
      %v3652 = vunpack.c.h.b16 %v3614
      %v3653 = vunpack.c.l.b16 %v3615
      %v3654 = vunpack.c.h.b16 %v3615
      %v3655 = vunpack.c.l.b16 %v3616
      %v3656 = vunpack.c.h.b16 %v3616
      %v3657 = vunpack.c.l.b16 %v3617
      %v3658 = vunpack.c.h.b16 %v3617
      %v3659 = vunpack.c.l.b16 %v3618
      %v3660 = vunpack.c.h.b16 %v3618
      %v3661 = vunpack.c.l.b16 %v3619
      %v3662 = vunpack.c.h.b16 %v3619
      %v3663 = vunpack.c.l.b16 %v3620
      %v3664 = vunpack.c.h.b16 %v3620
      %v3665 = vunpack.c.l.b16 %v3621
      %v3666 = vunpack.c.h.b16 %v3621
      %v3667 = vunpack.c.l.b16 %v3622
      %v3668 = vunpack.c.h.b16 %v3622
      %v3669 = vunpack.c.l.b16 %v3623
      %v3670 = vunpack.c.h.b16 %v3623
      %v3671 = vunpack.c.l.b16 %v3624
      %v3672 = vunpack.c.h.b16 %v3624
      %v3673 = vpack.c.b16 %v3643, %v3641
      %v3674 = vpack.c.b16 %v3644, %v3642
      %v3675 = vpack.c.b16 %v3647, %v3645
      %v3676 = vpack.c.b16 %v3648, %v3646
      %v3677 = vpack.c.b16 %v3651, %v3649
      %v3678 = vpack.c.b16 %v3652, %v3650
      %v3679 = vpack.c.b16 %v3655, %v3653
      %v3680 = vpack.c.b16 %v3656, %v3654
      %v3681 = vpack.c.b16 %v3659, %v3657
      %v3682 = vpack.c.b16 %v3660, %v3658
      %v3683 = vpack.c.b16 %v3663, %v3661
      %v3684 = vpack.c.b16 %v3664, %v3662
      %v3685 = vpack.c.b16 %v3667, %v3665
      %v3686 = vpack.c.b16 %v3668, %v3666
      %v3687 = vpack.c.b16 %v3671, %v3669
      %v3688 = vpack.c.b16 %v3672, %v3670
      %3705 = vmatprep.subr.bf16.mxu0 %v3674
      %3706 = vmatpush1.bf16.msra.mxu0 %v3673
      %3707 = vmatprep.subr.bf16.mxu0 %v3676
      %3708 = vmatpush1.bf16.msra.mxu0 %v3675
      %3709 = vmatprep.subr.bf16.mxu0 %v3678
      %3710 = vmatpush1.bf16.msra.mxu0 %v3677
      %3711 = vmatprep.subr.bf16.mxu0 %v3680
      %3712 = vmatpush1.bf16.msra.mxu0 %v3679
      %3713 = vmatprep.subr.bf16.mxu0 %v3682
      %3714 = vmatpush1.bf16.msra.mxu0 %v3681
      %3715 = vmatprep.subr.bf16.mxu0 %v3684
      %3716 = vmatpush1.bf16.msra.mxu0 %v3683
      %3717 = vmatprep.subr.bf16.mxu0 %v3686
      %3718 = vmatpush1.bf16.msra.mxu0 %v3685
      %3719 = vmatprep.subr.bf16.mxu0 %v3688
      %3720 = vmatpush1.bf16.msra.mxu0 %v3687
      %3721 = vmatprep.subr.bf16.mxu0 0
      %3722 = vmatpush1.bf16.msra.mxu0 0
      %3723 = vmatprep.subr.bf16.mxu0 0
      %3724 = vmatpush1.bf16.msra.mxu0 0
      %3725 = vmatprep.subr.bf16.mxu0 0
      %3726 = vmatpush1.bf16.msra.mxu0 0
      %3727 = vmatprep.subr.bf16.mxu0 0
      %3728 = vmatpush1.bf16.msra.mxu0 0
      %3729 = vmatprep.subr.bf16.mxu0 0
      %3730 = vmatpush1.bf16.msra.mxu0 0
      %3731 = vmatprep.subr.bf16.mxu0 0
      %3732 = vmatpush1.bf16.msra.mxu0 0
      %3733 = vmatprep.subr.bf16.mxu0 0
      %3734 = vmatpush1.bf16.msra.mxu0 0
      %3735 = vmatprep.subr.bf16.mxu0 0
      %3736 = vmatpush1.bf16.msra.mxu0 0
      %3737 = vmatprep.mubr.bf16.mxu0 0
      %3738 = vmatmul.mubr.bf16.gmra.mrb[0].mxu0 %v3606
      %v3739 = vpop.f32.mrb[0].mxu0
      %v3740 = vadd.f32 0.0, %v3739
      %v3741 = vpop.f32.mrb[0].mxu0
      %v3742 = vadd.f32 0.0, %v3741
      %v3743 = vpop.f32.mrb[0].mxu0
      %v3744 = vadd.f32 0.0, %v3743
      %v3745 = vpop.f32.mrb[0].mxu0
      %v3746 = vadd.f32 0.0, %v3745
      %3747 = vmatprep.mubr.bf16.mxu0 0
      %3748 = vmatmul.mubr.bf16.gmra.mrb[0].mxu0 %v3607
      %v3749 = vpop.f32.mrb[0].mxu0
      %v3750 = vadd.f32 0.0, %v3749
      %v3751 = vpop.f32.mrb[0].mxu0
      %v3752 = vadd.f32 0.0, %v3751
      %v3753 = vpop.f32.mrb[0].mxu0
      %v3754 = vadd.f32 0.0, %v3753
      %v3755 = vpop.f32.mrb[0].mxu0
      %v3756 = vadd.f32 0.0, %v3755
      %3757 = vdwg.mxu0
      %v3758 = vadd.f32 %v3594, %v3740
      %v3759 = vadd.f32 %v3595, %v3742
      %v3760 = vadd.f32 %v3596, %v3744
      %v3761 = vadd.f32 %v3597, %v3746
      %v3762 = vadd.f32 %v3598, %v3750
      %v3763 = vadd.f32 %v3599, %v3752
      %v3764 = vadd.f32 %v3600, %v3754
      %v3765 = vadd.f32 %v3601, %v3756
      %s3766 = scalar_lea.vmem [#allocation3], 32
      %v3767 = vld [vmem:[%s3766] sm:$0xff]
      %v3768 = vld [vmem:[%s3766 + $0x20] sm:$0xff]
      %v3769 = vld [vmem:[%s3766 + $0x40] sm:$0xff]
      %v3770 = vld [vmem:[%s3766 + $0x60] sm:$0xff]
      %v3771 = vpack.c.bf16 %v3768, %v3767
      %v3772 = vpack.c.bf16 %v3770, %v3769
      %s3773 = scalar_lea.vmem %s5, 768
      %v3774 = vld [vmem:[%s3773] sm:$0xff]
      %v3775 = vld [vmem:[%s3773 + $0x8] sm:$0xff]
      %v3776 = vld [vmem:[%s3773 + $0x10] sm:$0xff]
      %v3777 = vld [vmem:[%s3773 + $0x18] sm:$0xff]
      %v3778 = vld [vmem:[%s3773 + $0x20] sm:$0xff]
      %v3779 = vld [vmem:[%s3773 + $0x28] sm:$0xff]
      %v3780 = vld [vmem:[%s3773 + $0x30] sm:$0xff]
      %v3781 = vld [vmem:[%s3773 + $0x38] sm:$0xff]
      %v3782 = vld [vmem:[%s3773 + $0x40] sm:$0xff]
      %v3783 = vld [vmem:[%s3773 + $0x48] sm:$0xff]
      %v3784 = vld [vmem:[%s3773 + $0x50] sm:$0xff]
      %v3785 = vld [vmem:[%s3773 + $0x58] sm:$0xff]
      %v3786 = vld [vmem:[%s3773 + $0x60] sm:$0xff]
      %v3787 = vld [vmem:[%s3773 + $0x68] sm:$0xff]
      %v3788 = vld [vmem:[%s3773 + $0x70] sm:$0xff]
      %v3789 = vld [vmem:[%s3773 + $0x78] sm:$0xff]
      %v3806 = vunpack.c.l.b16 %v3774
      %v3807 = vunpack.c.h.b16 %v3774
      %v3808 = vunpack.c.l.b16 %v3775
      %v3809 = vunpack.c.h.b16 %v3775
      %v3810 = vunpack.c.l.b16 %v3776
      %v3811 = vunpack.c.h.b16 %v3776
      %v3812 = vunpack.c.l.b16 %v3777
      %v3813 = vunpack.c.h.b16 %v3777
      %v3814 = vunpack.c.l.b16 %v3778
      %v3815 = vunpack.c.h.b16 %v3778
      %v3816 = vunpack.c.l.b16 %v3779
      %v3817 = vunpack.c.h.b16 %v3779
      %v3818 = vunpack.c.l.b16 %v3780
      %v3819 = vunpack.c.h.b16 %v3780
      %v3820 = vunpack.c.l.b16 %v3781
      %v3821 = vunpack.c.h.b16 %v3781
      %v3822 = vunpack.c.l.b16 %v3782
      %v3823 = vunpack.c.h.b16 %v3782
      %v3824 = vunpack.c.l.b16 %v3783
      %v3825 = vunpack.c.h.b16 %v3783
      %v3826 = vunpack.c.l.b16 %v3784
      %v3827 = vunpack.c.h.b16 %v3784
      %v3828 = vunpack.c.l.b16 %v3785
      %v3829 = vunpack.c.h.b16 %v3785
      %v3830 = vunpack.c.l.b16 %v3786
      %v3831 = vunpack.c.h.b16 %v3786
      %v3832 = vunpack.c.l.b16 %v3787
      %v3833 = vunpack.c.h.b16 %v3787
      %v3834 = vunpack.c.l.b16 %v3788
      %v3835 = vunpack.c.h.b16 %v3788
      %v3836 = vunpack.c.l.b16 %v3789
      %v3837 = vunpack.c.h.b16 %v3789
      %v3838 = vpack.c.b16 %v3808, %v3806
      %v3839 = vpack.c.b16 %v3809, %v3807
      %v3840 = vpack.c.b16 %v3812, %v3810
      %v3841 = vpack.c.b16 %v3813, %v3811
      %v3842 = vpack.c.b16 %v3816, %v3814
      %v3843 = vpack.c.b16 %v3817, %v3815
      %v3844 = vpack.c.b16 %v3820, %v3818
      %v3845 = vpack.c.b16 %v3821, %v3819
      %v3846 = vpack.c.b16 %v3824, %v3822
      %v3847 = vpack.c.b16 %v3825, %v3823
      %v3848 = vpack.c.b16 %v3828, %v3826
      %v3849 = vpack.c.b16 %v3829, %v3827
      %v3850 = vpack.c.b16 %v3832, %v3830
      %v3851 = vpack.c.b16 %v3833, %v3831
      %v3852 = vpack.c.b16 %v3836, %v3834
      %v3853 = vpack.c.b16 %v3837, %v3835
      %3870 = vmatprep.subr.bf16.mxu0 %v3839
      %3871 = vmatpush1.bf16.msra.mxu0 %v3838
      %3872 = vmatprep.subr.bf16.mxu0 %v3841
      %3873 = vmatpush1.bf16.msra.mxu0 %v3840
      %3874 = vmatprep.subr.bf16.mxu0 %v3843
      %3875 = vmatpush1.bf16.msra.mxu0 %v3842
      %3876 = vmatprep.subr.bf16.mxu0 %v3845
      %3877 = vmatpush1.bf16.msra.mxu0 %v3844
      %3878 = vmatprep.subr.bf16.mxu0 %v3847
      %3879 = vmatpush1.bf16.msra.mxu0 %v3846
      %3880 = vmatprep.subr.bf16.mxu0 %v3849
      %3881 = vmatpush1.bf16.msra.mxu0 %v3848
      %3882 = vmatprep.subr.bf16.mxu0 %v3851
      %3883 = vmatpush1.bf16.msra.mxu0 %v3850
      %3884 = vmatprep.subr.bf16.mxu0 %v3853
      %3885 = vmatpush1.bf16.msra.mxu0 %v3852
      %3886 = vmatprep.subr.bf16.mxu0 0
      %3887 = vmatpush1.bf16.msra.mxu0 0
      %3888 = vmatprep.subr.bf16.mxu0 0
      %3889 = vmatpush1.bf16.msra.mxu0 0
      %3890 = vmatprep.subr.bf16.mxu0 0
      %3891 = vmatpush1.bf16.msra.mxu0 0
      %3892 = vmatprep.subr.bf16.mxu0 0
      %3893 = vmatpush1.bf16.msra.mxu0 0
      %3894 = vmatprep.subr.bf16.mxu0 0
      %3895 = vmatpush1.bf16.msra.mxu0 0
      %3896 = vmatprep.subr.bf16.mxu0 0
      %3897 = vmatpush1.bf16.msra.mxu0 0
      %3898 = vmatprep.subr.bf16.mxu0 0
      %3899 = vmatpush1.bf16.msra.mxu0 0
      %3900 = vmatprep.subr.bf16.mxu0 0
      %3901 = vmatpush1.bf16.msra.mxu0 0
      %3902 = vmatprep.mubr.bf16.mxu0 0
      %3903 = vmatmul.mubr.bf16.gmra.mrb[0].mxu0 %v3771
      %v3904 = vpop.f32.mrb[0].mxu0
      %v3905 = vadd.f32 0.0, %v3904
      %v3906 = vpop.f32.mrb[0].mxu0
      %v3907 = vadd.f32 0.0, %v3906
      %v3908 = vpop.f32.mrb[0].mxu0
      %v3909 = vadd.f32 0.0, %v3908
      %v3910 = vpop.f32.mrb[0].mxu0
      %v3911 = vadd.f32 0.0, %v3910
      %3912 = vmatprep.mubr.bf16.mxu0 0
      %3913 = vmatmul.mubr.bf16.gmra.mrb[0].mxu0 %v3772
      %v3914 = vpop.f32.mrb[0].mxu0
      %v3915 = vadd.f32 0.0, %v3914
      %v3916 = vpop.f32.mrb[0].mxu0
      %v3917 = vadd.f32 0.0, %v3916
      %v3918 = vpop.f32.mrb[0].mxu0
      %v3919 = vadd.f32 0.0, %v3918
      %v3920 = vpop.f32.mrb[0].mxu0
      %v3921 = vadd.f32 0.0, %v3920
      %3922 = vdwg.mxu0
      %v3923 = vadd.f32 %v3758, %v3905
      %v3924 = vadd.f32 %v3759, %v3907
      %v3925 = vadd.f32 %v3760, %v3909
      %v3926 = vadd.f32 %v3761, %v3911
      %v3927 = vadd.f32 %v3762, %v3915
      %v3928 = vadd.f32 %v3763, %v3917
      %v3929 = vadd.f32 %v3764, %v3919
      %v3930 = vadd.f32 %v3765, %v3921
      %v3931 = vld [vmem:[%s3766 + $0x1] sm:$0xff]
      %v3932 = vld [vmem:[%s3766 + $0x21] sm:$0xff]
      %v3933 = vld [vmem:[%s3766 + $0x41] sm:$0xff]
      %v3934 = vld [vmem:[%s3766 + $0x61] sm:$0xff]
      %v3935 = vpack.c.bf16 %v3932, %v3931
      %v3936 = vpack.c.bf16 %v3934, %v3933
      %s3937 = scalar_lea.vmem %s5, 896
      %v3938 = vld [vmem:[%s3937] sm:$0xff]
      %v3939 = vld [vmem:[%s3937 + $0x8] sm:$0xff]
      %v3940 = vld [vmem:[%s3937 + $0x10] sm:$0xff]
      %v3941 = vld [vmem:[%s3937 + $0x18] sm:$0xff]
      %v3942 = vld [vmem:[%s3937 + $0x20] sm:$0xff]
      %v3943 = vld [vmem:[%s3937 + $0x28] sm:$0xff]
      %v3944 = vld [vmem:[%s3937 + $0x30] sm:$0xff]
      %v3945 = vld [vmem:[%s3937 + $0x38] sm:$0xff]
      %v3946 = vld [vmem:[%s3937 + $0x40] sm:$0xff]
      %v3947 = vld [vmem:[%s3937 + $0x48] sm:$0xff]
      %v3948 = vld [vmem:[%s3937 + $0x50] sm:$0xff]
      %v3949 = vld [vmem:[%s3937 + $0x58] sm:$0xff]
      %v3950 = vld [vmem:[%s3937 + $0x60] sm:$0xff]
      %v3951 = vld [vmem:[%s3937 + $0x68] sm:$0xff]
      %v3952 = vld [vmem:[%s3937 + $0x70] sm:$0xff]
      %v3953 = vld [vmem:[%s3937 + $0x78] sm:$0xff]
      %v3970 = vunpack.c.l.b16 %v3938
      %v3971 = vunpack.c.h.b16 %v3938
      %v3972 = vunpack.c.l.b16 %v3939
      %v3973 = vunpack.c.h.b16 %v3939
      %v3974 = vunpack.c.l.b16 %v3940
      %v3975 = vunpack.c.h.b16 %v3940
      %v3976 = vunpack.c.l.b16 %v3941
      %v3977 = vunpack.c.h.b16 %v3941
      %v3978 = vunpack.c.l.b16 %v3942
      %v3979 = vunpack.c.h.b16 %v3942
      %v3980 = vunpack.c.l.b16 %v3943
      %v3981 = vunpack.c.h.b16 %v3943
      %v3982 = vunpack.c.l.b16 %v3944
      %v3983 = vunpack.c.h.b16 %v3944
      %v3984 = vunpack.c.l.b16 %v3945
      %v3985 = vunpack.c.h.b16 %v3945
      %v3986 = vunpack.c.l.b16 %v3946
      %v3987 = vunpack.c.h.b16 %v3946
      %v3988 = vunpack.c.l.b16 %v3947
      %v3989 = vunpack.c.h.b16 %v3947
      %v3990 = vunpack.c.l.b16 %v3948
      %v3991 = vunpack.c.h.b16 %v3948
      %v3992 = vunpack.c.l.b16 %v3949
      %v3993 = vunpack.c.h.b16 %v3949
      %v3994 = vunpack.c.l.b16 %v3950
      %v3995 = vunpack.c.h.b16 %v3950
      %v3996 = vunpack.c.l.b16 %v3951
      %v3997 = vunpack.c.h.b16 %v3951
      %v3998 = vunpack.c.l.b16 %v3952
      %v3999 = vunpack.c.h.b16 %v3952
      %v4000 = vunpack.c.l.b16 %v3953
      %v4001 = vunpack.c.h.b16 %v3953
      %v4002 = vpack.c.b16 %v3972, %v3970
      %v4003 = vpack.c.b16 %v3973, %v3971
      %v4004 = vpack.c.b16 %v3976, %v3974
      %v4005 = vpack.c.b16 %v3977, %v3975
      %v4006 = vpack.c.b16 %v3980, %v3978
      %v4007 = vpack.c.b16 %v3981, %v3979
      %v4008 = vpack.c.b16 %v3984, %v3982
      %v4009 = vpack.c.b16 %v3985, %v3983
      %v4010 = vpack.c.b16 %v3988, %v3986
      %v4011 = vpack.c.b16 %v3989, %v3987
      %v4012 = vpack.c.b16 %v3992, %v3990
      %v4013 = vpack.c.b16 %v3993, %v3991
      %v4014 = vpack.c.b16 %v3996, %v3994
      %v4015 = vpack.c.b16 %v3997, %v3995
      %v4016 = vpack.c.b16 %v4000, %v3998
      %v4017 = vpack.c.b16 %v4001, %v3999
      %4034 = vmatprep.subr.bf16.mxu0 %v4003
      %4035 = vmatpush1.bf16.msra.mxu0 %v4002
      %4036 = vmatprep.subr.bf16.mxu0 %v4005
      %4037 = vmatpush1.bf16.msra.mxu0 %v4004
      %4038 = vmatprep.subr.bf16.mxu0 %v4007
      %4039 = vmatpush1.bf16.msra.mxu0 %v4006
      %4040 = vmatprep.subr.bf16.mxu0 %v4009
      %4041 = vmatpush1.bf16.msra.mxu0 %v4008
      %4042 = vmatprep.subr.bf16.mxu0 %v4011
      %4043 = vmatpush1.bf16.msra.mxu0 %v4010
      %4044 = vmatprep.subr.bf16.mxu0 %v4013
      %4045 = vmatpush1.bf16.msra.mxu0 %v4012
      %4046 = vmatprep.subr.bf16.mxu0 %v4015
      %4047 = vmatpush1.bf16.msra.mxu0 %v4014
      %4048 = vmatprep.subr.bf16.mxu0 %v4017
      %4049 = vmatpush1.bf16.msra.mxu0 %v4016
      %4050 = vmatprep.subr.bf16.mxu0 0
      %4051 = vmatpush1.bf16.msra.mxu0 0
      %4052 = vmatprep.subr.bf16.mxu0 0
      %4053 = vmatpush1.bf16.msra.mxu0 0
      %4054 = vmatprep.subr.bf16.mxu0 0
      %4055 = vmatpush1.bf16.msra.mxu0 0
      %4056 = vmatprep.subr.bf16.mxu0 0
      %4057 = vmatpush1.bf16.msra.mxu0 0
      %4058 = vmatprep.subr.bf16.mxu0 0
      %4059 = vmatpush1.bf16.msra.mxu0 0
      %4060 = vmatprep.subr.bf16.mxu0 0
      %4061 = vmatpush1.bf16.msra.mxu0 0
      %4062 = vmatprep.subr.bf16.mxu0 0
      %4063 = vmatpush1.bf16.msra.mxu0 0
      %4064 = vmatprep.subr.bf16.mxu0 0
      %4065 = vmatpush1.bf16.msra.mxu0 0
      %4066 = vmatprep.mubr.bf16.mxu0 0
      %4067 = vmatmul.mubr.bf16.gmra.mrb[0].mxu0 %v3935
      %v4068 = vpop.f32.mrb[0].mxu0
      %v4069 = vadd.f32 0.0, %v4068
      %v4070 = vpop.f32.mrb[0].mxu0
      %v4071 = vadd.f32 0.0, %v4070
      %v4072 = vpop.f32.mrb[0].mxu0
      %v4073 = vadd.f32 0.0, %v4072
      %v4074 = vpop.f32.mrb[0].mxu0
      %v4075 = vadd.f32 0.0, %v4074
      %4076 = vmatprep.mubr.bf16.mxu0 0
      %4077 = vmatmul.mubr.bf16.gmra.mrb[0].mxu0 %v3936
      %v4078 = vpop.f32.mrb[0].mxu0
      %v4079 = vadd.f32 0.0, %v4078
      %v4080 = vpop.f32.mrb[0].mxu0
      %v4081 = vadd.f32 0.0, %v4080
      %v4082 = vpop.f32.mrb[0].mxu0
      %v4083 = vadd.f32 0.0, %v4082
      %v4084 = vpop.f32.mrb[0].mxu0
      %v4085 = vadd.f32 0.0, %v4084
      %4086 = vdwg.mxu0
      %v4087 = vadd.f32 %v3923, %v4069
      %v4088 = vadd.f32 %v3924, %v4071
      %v4089 = vadd.f32 %v3925, %v4073
      %v4090 = vadd.f32 %v3926, %v4075
      %v4091 = vadd.f32 %v3927, %v4079
      %v4092 = vadd.f32 %v3928, %v4081
      %v4093 = vadd.f32 %v3929, %v4083
      %v4094 = vadd.f32 %v3930, %v4085
      %v4095 = vld [vmem:[%s3766 + $0x2] sm:$0xff]
      %v4096 = vld [vmem:[%s3766 + $0x22] sm:$0xff]
      %v4097 = vld [vmem:[%s3766 + $0x42] sm:$0xff]
      %v4098 = vld [vmem:[%s3766 + $0x62] sm:$0xff]
      %v4099 = vpack.c.bf16 %v4096, %v4095
      %v4100 = vpack.c.bf16 %v4098, %v4097
      %s4101 = scalar_lea.vmem %s5, 1024
      %v4102 = vld [vmem:[%s4101] sm:$0xff]
      %v4103 = vld [vmem:[%s4101 + $0x8] sm:$0xff]
      %v4104 = vld [vmem:[%s4101 + $0x10] sm:$0xff]
      %v4105 = vld [vmem:[%s4101 + $0x18] sm:$0xff]
      %v4106 = vld [vmem:[%s4101 + $0x20] sm:$0xff]
      %v4107 = vld [vmem:[%s4101 + $0x28] sm:$0xff]
      %v4108 = vld [vmem:[%s4101 + $0x30] sm:$0xff]
      %v4109 = vld [vmem:[%s4101 + $0x38] sm:$0xff]
      %v4110 = vld [vmem:[%s4101 + $0x40] sm:$0xff]
      %v4111 = vld [vmem:[%s4101 + $0x48] sm:$0xff]
      %v4112 = vld [vmem:[%s4101 + $0x50] sm:$0xff]
      %v4113 = vld [vmem:[%s4101 + $0x58] sm:$0xff]
      %v4114 = vld [vmem:[%s4101 + $0x60] sm:$0xff]
      %v4115 = vld [vmem:[%s4101 + $0x68] sm:$0xff]
      %v4116 = vld [vmem:[%s4101 + $0x70] sm:$0xff]
      %v4117 = vld [vmem:[%s4101 + $0x78] sm:$0xff]
      %v4134 = vunpack.c.l.b16 %v4102
      %v4135 = vunpack.c.h.b16 %v4102
      %v4136 = vunpack.c.l.b16 %v4103
      %v4137 = vunpack.c.h.b16 %v4103
      %v4138 = vunpack.c.l.b16 %v4104
      %v4139 = vunpack.c.h.b16 %v4104
      %v4140 = vunpack.c.l.b16 %v4105
      %v4141 = vunpack.c.h.b16 %v4105
      %v4142 = vunpack.c.l.b16 %v4106
      %v4143 = vunpack.c.h.b16 %v4106
      %v4144 = vunpack.c.l.b16 %v4107
      %v4145 = vunpack.c.h.b16 %v4107
      %v4146 = vunpack.c.l.b16 %v4108
      %v4147 = vunpack.c.h.b16 %v4108
      %v4148 = vunpack.c.l.b16 %v4109
      %v4149 = vunpack.c.h.b16 %v4109
      %v4150 = vunpack.c.l.b16 %v4110
      %v4151 = vunpack.c.h.b16 %v4110
      %v4152 = vunpack.c.l.b16 %v4111
      %v4153 = vunpack.c.h.b16 %v4111
      %v4154 = vunpack.c.l.b16 %v4112
      %v4155 = vunpack.c.h.b16 %v4112
      %v4156 = vunpack.c.l.b16 %v4113
      %v4157 = vunpack.c.h.b16 %v4113
      %v4158 = vunpack.c.l.b16 %v4114
      %v4159 = vunpack.c.h.b16 %v4114
      %v4160 = vunpack.c.l.b16 %v4115
      %v4161 = vunpack.c.h.b16 %v4115
      %v4162 = vunpack.c.l.b16 %v4116
      %v4163 = vunpack.c.h.b16 %v4116
      %v4164 = vunpack.c.l.b16 %v4117
      %v4165 = vunpack.c.h.b16 %v4117
      %v4166 = vpack.c.b16 %v4136, %v4134
      %v4167 = vpack.c.b16 %v4137, %v4135
      %v4168 = vpack.c.b16 %v4140, %v4138
      %v4169 = vpack.c.b16 %v4141, %v4139
      %v4170 = vpack.c.b16 %v4144, %v4142
      %v4171 = vpack.c.b16 %v4145, %v4143
      %v4172 = vpack.c.b16 %v4148, %v4146
      %v4173 = vpack.c.b16 %v4149, %v4147
      %v4174 = vpack.c.b16 %v4152, %v4150
      %v4175 = vpack.c.b16 %v4153, %v4151
      %v4176 = vpack.c.b16 %v4156, %v4154
      %v4177 = vpack.c.b16 %v4157, %v4155
      %v4178 = vpack.c.b16 %v4160, %v4158
      %v4179 = vpack.c.b16 %v4161, %v4159
      %v4180 = vpack.c.b16 %v4164, %v4162
      %v4181 = vpack.c.b16 %v4165, %v4163
      %4198 = vmatprep.subr.bf16.mxu0 %v4167
      %4199 = vmatpush1.bf16.msra.mxu0 %v4166
      %4200 = vmatprep.subr.bf16.mxu0 %v4169
      %4201 = vmatpush1.bf16.msra.mxu0 %v4168
      %4202 = vmatprep.subr.bf16.mxu0 %v4171
      %4203 = vmatpush1.bf16.msra.mxu0 %v4170
      %4204 = vmatprep.subr.bf16.mxu0 %v4173
      %4205 = vmatpush1.bf16.msra.mxu0 %v4172
      %4206 = vmatprep.subr.bf16.mxu0 %v4175
      %4207 = vmatpush1.bf16.msra.mxu0 %v4174
      %4208 = vmatprep.subr.bf16.mxu0 %v4177
      %4209 = vmatpush1.bf16.msra.mxu0 %v4176
      %4210 = vmatprep.subr.bf16.mxu0 %v4179
      %4211 = vmatpush1.bf16.msra.mxu0 %v4178
      %4212 = vmatprep.subr.bf16.mxu0 %v4181
      %4213 = vmatpush1.bf16.msra.mxu0 %v4180
      %4214 = vmatprep.subr.bf16.mxu0 0
      %4215 = vmatpush1.bf16.msra.mxu0 0
      %4216 = vmatprep.subr.bf16.mxu0 0
      %4217 = vmatpush1.bf16.msra.mxu0 0
      %4218 = vmatprep.subr.bf16.mxu0 0
      %4219 = vmatpush1.bf16.msra.mxu0 0
      %4220 = vmatprep.subr.bf16.mxu0 0
      %4221 = vmatpush1.bf16.msra.mxu0 0
      %4222 = vmatprep.subr.bf16.mxu0 0
      %4223 = vmatpush1.bf16.msra.mxu0 0
      %4224 = vmatprep.subr.bf16.mxu0 0
      %4225 = vmatpush1.bf16.msra.mxu0 0
      %4226 = vmatprep.subr.bf16.mxu0 0
      %4227 = vmatpush1.bf16.msra.mxu0 0
      %4228 = vmatprep.subr.bf16.mxu0 0
      %4229 = vmatpush1.bf16.msra.mxu0 0
      %4230 = vmatprep.mubr.bf16.mxu0 0
      %4231 = vmatmul.mubr.bf16.gmra.mrb[0].mxu0 %v4099
      %v4232 = vpop.f32.mrb[0].mxu0
      %v4233 = vadd.f32 0.0, %v4232
      %v4234 = vpop.f32.mrb[0].mxu0
      %v4235 = vadd.f32 0.0, %v4234
      %v4236 = vpop.f32.mrb[0].mxu0
      %v4237 = vadd.f32 0.0, %v4236
      %v4238 = vpop.f32.mrb[0].mxu0
      %v4239 = vadd.f32 0.0, %v4238
      %4240 = vmatprep.mubr.bf16.mxu0 0
      %4241 = vmatmul.mubr.bf16.gmra.mrb[0].mxu0 %v4100
      %v4242 = vpop.f32.mrb[0].mxu0
      %v4243 = vadd.f32 0.0, %v4242
      %v4244 = vpop.f32.mrb[0].mxu0
      %v4245 = vadd.f32 0.0, %v4244
      %v4246 = vpop.f32.mrb[0].mxu0
      %v4247 = vadd.f32 0.0, %v4246
      %v4248 = vpop.f32.mrb[0].mxu0
      %v4249 = vadd.f32 0.0, %v4248
      %4250 = vdwg.mxu0
      %v4251 = vadd.f32 %v4087, %v4233
      %v4252 = vadd.f32 %v4088, %v4235
      %v4253 = vadd.f32 %v4089, %v4237
      %v4254 = vadd.f32 %v4090, %v4239
      %v4255 = vadd.f32 %v4091, %v4243
      %v4256 = vadd.f32 %v4092, %v4245
      %v4257 = vadd.f32 %v4093, %v4247
      %v4258 = vadd.f32 %v4094, %v4249
      %v4259 = vld [vmem:[%s6] sm:$0x3]
      %v4261 = vlaneseq
      %v4262 = vshrl.u32 %v4261, 7
      %v4263 = vsub.s32 0, %v4262
      %v4264 = vrot.slane %v4259, %v4263
      %v4265 = vlaneseq
      %v4266 = vshrl.u32 %v4265, 7
      %v4267 = vsub.s32 1, %v4266
      %v4268 = vrot.slane %v4259, %v4267
      %vm4271 = vcmask 261120
      %v4273 = vsel %vm4271, %v2626, 0
      %v4276 = vsel %vm4271, %v2627, 0
      %4278 = vmatprep.subr.mxu0 %v4252
      %4279 = vmatpush1.msra.mxu0 %v4251
      %4280 = vmatprep.subr.mxu0 %v4254
      %4281 = vmatpush1.msra.mxu0 %v4253
      %4282 = vmatprep.subr.mxu0 %v4256
      %4283 = vmatpush1.msra.mxu0 %v4255
      %4284 = vmatprep.subr.mxu0 %v4258
      %4285 = vmatpush1.msra.mxu0 %v4257
      %4286 = vmatprep.subr.mxu0 0.0
      %4287 = vmatpush1.msra.mxu0 0.0
      %4288 = vmatprep.subr.mxu0 0.0
      %4289 = vmatpush1.msra.mxu0 0.0
      %4290 = vmatprep.subr.mxu0 0.0
      %4291 = vmatpush1.msra.mxu0 0.0
      %4292 = vmatprep.subr.mxu0 0.0
      %4293 = vmatpush1.msra.mxu0 0.0
      %4294 = vmatprep.subr.mxu0 0.0
      %4295 = vmatpush1.msra.mxu0 0.0
      %4296 = vmatprep.subr.mxu0 0.0
      %4297 = vmatpush1.msra.mxu0 0.0
      %4298 = vmatprep.subr.mxu0 0.0
      %4299 = vmatpush1.msra.mxu0 0.0
      %4300 = vmatprep.subr.mxu0 0.0
      %4301 = vmatpush1.msra.mxu0 0.0
      %4302 = vmatprep.subr.mxu0 0.0
      %4303 = vmatpush1.msra.mxu0 0.0
      %4304 = vmatprep.subr.mxu0 0.0
      %4305 = vmatpush1.msra.mxu0 0.0
      %4306 = vmatprep.subr.mxu0 0.0
      %4307 = vmatpush1.msra.mxu0 0.0
      %4308 = vmatprep.subr.mxu0 0.0
      %4309 = vmatpush1.msra.mxu0 0.0
      %4310 = vmatprep.subr.mxu0 0.0
      %4311 = vmatpush1.msra.mxu0 0.0
      %4312 = vmatprep.subr.mxu0 0.0
      %4313 = vmatpush1.msra.mxu0 0.0
      %4314 = vmatprep.subr.mxu0 0.0
      %4315 = vmatpush1.msra.mxu0 0.0
      %4316 = vmatprep.subr.mxu0 0.0
      %4317 = vmatpush1.msra.mxu0 0.0
      %4318 = vmatprep.subr.mxu0 0.0
      %4319 = vmatpush1.msra.mxu0 0.0
      %4320 = vmatprep.subr.mxu0 0.0
      %4321 = vmatpush1.msra.mxu0 0.0
      %4322 = vmatprep.subr.mxu0 0.0
      %4323 = vmatpush1.msra.mxu0 0.0
      %4324 = vmatprep.subr.mxu0 0.0
      %4325 = vmatpush1.msra.mxu0 0.0
      %4326 = vmatprep.subr.mxu0 0.0
      %4327 = vmatpush1.msra.mxu0 0.0
      %4328 = vmatprep.subr.mxu0 0.0
      %4329 = vmatpush1.msra.mxu0 0.0
      %4330 = vmatprep.subr.mxu0 0.0
      %4331 = vmatpush1.msra.mxu0 0.0
      %4332 = vmatprep.subr.mxu0 0.0
      %4333 = vmatpush1.msra.mxu0 0.0
      %4334 = vmatprep.subr.mxu0 0.0
      %4335 = vmatpush1.msra.mxu0 0.0
      %4336 = vmatprep.subr.mxu0 0.0
      %4337 = vmatpush1.msra.mxu0 0.0
      %4338 = vmatprep.subr.mxu0 0.0
      %4339 = vmatpush1.msra.mxu0 0.0
      %4340 = vmatprep.subr.mxu0 0.0
      %4341 = vmatpush1.msra.mxu0 0.0
      %4342 = vmatprep.mubr.f32.mxu0 0.0
      %4343 = vmatmul.mubr.f32.gmra.mrb[0].mxu0 %v4273
      %v4344 = vpop.f32.mrb[0].mxu0
      %v4345 = vadd.f32 %v4264, %v4344
      %v4346 = vpop.f32.mrb[0].mxu0
      %v4347 = vadd.f32 %v4268, %v4346
      %4348 = vmatprep.mubr.f32.mxu0 0.0
      %4349 = vmatmul.mubr.f32.gmra.mrb[0].mxu0 %v4276
      %v4350 = vpop.f32.mrb[0].mxu0
      %v4351 = vadd.f32 %v4264, %v4350
      %v4352 = vpop.f32.mrb[0].mxu0
      %v4353 = vadd.f32 %v4268, %v4352
      %4354 = vdwg.mxu0
      %vm4355 = vcmp.ge.f32.partialorder %v4345, 0.0
      %vm4356 = vcmp.ge.f32.partialorder %v4347, 0.0
      %vm4357 = vcmp.ge.f32.partialorder %v4351, 0.0
      %vm4358 = vcmp.ge.f32.partialorder %v4353, 0.0
      %v4359 = vmul.f32 %v4345, 0.01
      %v4360 = vmul.f32 %v4347, 0.01
      %v4361 = vmul.f32 %v4351, 0.01
      %v4362 = vmul.f32 %v4353, 0.01
      %v4363 = vsel %vm4355, %v4345, %v4359
      %v4364 = vsel %vm4356, %v4347, %v4360
      %v4365 = vsel %vm4357, %v4351, %v4361
      %v4366 = vsel %vm4358, %v4353, %v4362
      %v4367 = vld [vmem:[%s7] sm:$0xff]
      %v4368 = vld [vmem:[%s7 + $0x8] sm:$0xff]
      %v4369 = vld [vmem:[%s7 + $0x10] sm:$0xff]
      %v4370 = vld [vmem:[%s7 + $0x18] sm:$0xff]
      %v4371 = vmul.f32 %v4363, %v4367
      %v4372 = vmul.f32 %v4364, %v4368
      %v4373 = vmul.f32 %v4365, %v4369
      %v4374 = vmul.f32 %v4366, %v4370
      %v4375 = vadd.f32 %v4371, %v4372
      %4376 = vadd.xlane.f32.xlu0 %v4375
      %v4377 = vpop.xlane.xlu0 %4376
      %v4378 = vadd.f32 %v4373, %v4374
      %4379 = vadd.xlane.f32.xlu0 %v4378
      %v4380 = vpop.xlane.xlu0 %4379
      %v4381 = vadd.f32 %v4377, %v4380
      %v4382 = vrot.slane %v4381, 4
      %v4383 = vadd.f32 %v4381, %v4382
      %v4384 = vrot.slane %v4383, 2
      %v4385 = vadd.f32 %v4383, %v4384
      %v4386 = vrot.slane %v4385, 1
      %v4387 = vadd.f32 %v4385, %v4386
      %v4388 = vld [vmem:[#allocation4] sm:$0x1]
      %v4389 = vadd.f32 %v4387, %v4388
      %4391 = vset.pattern.permute.xlu0 0
      %4392 = vperm.xlu0 %4391, %v4389
      %v4393 = vpop.permute.xlu0 %4392
      %v4395 = vlaneseq
      %v4396 = vshrl.u32 %v4395, 7
      %v4397 = vsub.s32 0, %v4396
      %v4398 = vrot.slane %v4393, %v4397
      %4399 = vst [vmem:[%s330] sm:$0x1] %v4398
      %p4400 = scmp.lt.s32.totalorder %s22, 1
      %s4401 = scalar_select %p4400, %s22, 1
      %s4402 = scalar_lea.vmem %s9, %s4401
      // Predicated region
      $region57: #{discriminator_forward.1} parent=55 // pred_check
        %p4403 = pneg %p234
      $region58: #{discriminator_forward.1} parent=55 // pred_check_branch
        %4405 = sbr.rel (%p4403) target = $region60
      $region59: #{discriminator_forward.1} parent=55 // pred_region
        _
      $region60: #{discriminator_forward.1} parent=55 // pred_fallthru
        _
    $region56: #{discriminator_forward.1} parent=5 // pred_fallthru
      _
    %p4406 = scmp.le.s32.totalorder 2, %s17
    // Predicated region
    $region61: #{discriminator_forward.1} parent=5 // pred_check
      %p4407 = pneg %p4406
    $region62: #{discriminator_forward.1} parent=5 // pred_check_branch
      %4409 = sbr.rel (%p4407) target = $region64
    $region63: #{discriminator_forward.1} parent=5 // pred_region
      %s4410 = ssub.s32 %s17, 2
      // Predicated region
      $region65: #{discriminator_forward.1} parent=63 // pred_check
        %p4411 = pneg %p240
      $region66: #{discriminator_forward.1} parent=63 // pred_check_branch
        %4413 = sbr.rel (%p4411) target = $region68
      $region67: #{discriminator_forward.1} parent=63 // pred_region
        %p4414 = scmp.lt.s32.totalorder %s23, 1
        %s4415 = scalar_select %p4414, %s23, 1
        %s4416 = scalar_lea.vmem %s9, %s4415
      $region68: #{discriminator_forward.1} parent=63 // pred_fallthru
        _
    $region64: #{discriminator_forward.1} parent=5 // pred_fallthru
      _
  $region6: #{discriminator_forward.1} parent=0 // loop_footer
    %s21 = sadd.s32 1, %s17
  $region7: #{discriminator_forward.1} parent=0 // loop_footer_branch
    %16 = sbr.rel target = $region3
  $region8: #{discriminator_forward.1} parent=0 // loop_exit
    _

</llo_original>
